<compile_context>
chip_gen: v5e
topology: v5e:2x2
jax: 0.10.0
libtpu: 0.0.40
codegen_flags: <defaults>
</compile_context>

<pallas_src>
import functools

import jax
import jax.numpy as jnp
from jax import lax
from jax.experimental import pallas as pl
from jax.experimental.pallas import tpu as pltpu

NEG_SLOPE = 0.2


def _phase_taps(ks, st, pd):
    """Per output phase p in [0, st): list of (t, k) with k = st*t + p + pd in [0, ks).

    Output row oh = st*qh + p receives contributions from input rows ih = qh - t with
    kernel tap k.  Taps are ordered by decreasing t so the padded-window offset
    (pad_lo - t) increases with the tap index.
    """
    per_phase = []
    for p in range(st):
        taps = [((k - p - pd) // st, k) for k in range(ks) if (k - p - pd) % st == 0]
        taps.sort(key=lambda tk: -tk[0])
        per_phase.append(taps)
    return per_phase


def _cup_phase_kernel(xp_ref, wf_ref, b_ref, o_ref, *, H, W, st, Td, offs):
    # xp_ref: (1, Hp, Wp, Cin)            padded (un-dilated) input, one batch element
    # wf_ref: (st*st*Td*Td, Cin, st*Cout) per-(h-phase, w-phase, tap) weight slices,
    #                                     w-phase fused into the output-channel dim
    # b_ref : (1, st*Cout)                bias tiled once per w-phase
    # o_ref : (1, H, st, W, st*Cout)      phase-interleaved output slab (== NHWC bits)
    for ph in range(st):                         # static loops: phases & taps
        acc = None
        for pw in range(st):
            for dh in range(Td):
                for dw in range(Td):
                    ah = offs[ph][dh]
                    aw = offs[pw][dw]
                    patch = xp_ref[0, ah:ah + H, aw:aw + W, :]        # (H, W, Cin)
                    widx = ((ph * st + pw) * Td + dh) * Td + dw
                    d = lax.dot_general(
                        patch, wf_ref[widx],                          # (Cin, st*Cout)
                        dimension_numbers=(((2,), (0,)), ((), ())),
                        preferred_element_type=jnp.float32)
                    acc = d if acc is None else acc + d
        y = acc + b_ref[...]                                          # (H, W, st*Cout)
        y = jnp.where(y > 0, y, NEG_SLOPE * y)                        # LeakyReLU(0.2)
        o_ref[0, :, ph, :, :] = y.astype(o_ref.dtype)


@functools.partial(jax.jit, static_argnames=("ks", "st", "pd", "compute_dtype"))
def cup_forward_nhwc(x_nhwc, weight, bias, *, ks=4, st=2, pd=1, compute_dtype=None):
    """ConvTranspose2d(ks, st, pd) + LeakyReLU(0.2).  NHWC in / NHWC out (native)."""
    N, H, W, Cin = x_nhwc.shape
    Cout = weight.shape[1]
    Ho = (H - 1) * st - 2 * pd + ks
    Wo = (W - 1) * st - 2 * pd + ks
    assert Ho == st * H and Wo == st * W, "phase decomposition requires ks == st + 2*pd"

    taps = _phase_taps(ks, st, pd)
    Td = len(taps[0])
    assert all(len(t) == Td for t in taps), "non-uniform taps per phase unsupported"

    pad_lo = max(0, max(max(t for t, _ in tp) for tp in taps))
    pad_hi = max(0, max(max(-t for t, _ in tp) for tp in taps))
    offs = tuple(tuple(pad_lo - t for t, _ in tp) for tp in taps)     # static ints

    if compute_dtype is not None:                 # e.g. jnp.bfloat16 on v6e/v7x
        x_c = x_nhwc.astype(compute_dtype)
        w_c = weight.astype(compute_dtype)
    else:
        x_c, w_c = x_nhwc, weight

    xp = jnp.pad(x_c, ((0, 0), (pad_lo, pad_hi), (pad_lo, pad_hi), (0, 0)))
    Hp, Wp = xp.shape[1], xp.shape[2]

    # wf[((ph*st+pw)*Td+dh)*Td+dw, ic, pw*Cout+oc] = weight[ic, oc, kh(ph,dh), kw(pw,dw)]
    wblocks = []
    for ph in range(st):
        for pw in range(st):
            for dh in range(Td):
                for dw in range(Td):
                    kh = taps[ph][dh][1]
                    kw = taps[pw][dw][1]
                    blk = w_c[:, :, kh, kw]                           # (Cin, Cout)
                    blk = jnp.pad(blk, ((0, 0), (pw * Cout, (st - 1 - pw) * Cout)))
                    wblocks.append(blk)
    wf = jnp.stack(wblocks, axis=0)               # (st*st*Td*Td, Cin, st*Cout)
    b_row = jnp.tile(bias, st).reshape(1, st * Cout)

    kernel = functools.partial(_cup_phase_kernel, H=H, W=W, st=st, Td=Td, offs=offs)

    out5 = pl.pallas_call(
        kernel,
        out_shape=jax.ShapeDtypeStruct((N, H, st, W, st * Cout), x_nhwc.dtype),
        grid_spec=pltpu.PrefetchScalarGridSpec(
            num_scalar_prefetch=0,
            grid=(N,),
            in_specs=[
                pl.BlockSpec((1, Hp, Wp, Cin), lambda n: (n, 0, 0, 0)),
                pl.BlockSpec((st * st * Td * Td, Cin, st * Cout), lambda n: (0, 0, 0)),
                pl.BlockSpec((1, st * Cout), lambda n: (0, 0)),
            ],
            out_specs=pl.BlockSpec((1, H, st, W, st * Cout),
                                   lambda n: (n, 0, 0, 0, 0)),
        ),
        compiler_params=pltpu.CompilerParams(
            dimension_semantics=("parallel",),
            vmem_limit_bytes=32 * 1024 * 1024,
        ),
    )(xp, wf, b_row)

    # (N, H, st, W, st*Cout) and (N, Ho, Wo, Cout) have identical row-major layouts:
    # this reshape is free (no extra HBM pass).
    return out5.reshape(N, Ho, Wo, Cout)


@functools.partial(jax.jit, static_argnames=("ks", "st", "pd", "compute_dtype"))
def cup_forward(x_nchw, weight, bias, *, ks=4, st=2, pd=1, compute_dtype=None):
    """PyTorch-facing layout: x (N, Cin, H, W) -> (N, Cout, Ho, Wo).

    The transposes below exist only for NCHW API parity; use cup_forward_nhwc in an
    NHWC pipeline to avoid them entirely.
    """
    x_nhwc = jnp.transpose(x_nchw, (0, 2, 3, 1))
    out = cup_forward_nhwc(x_nhwc, weight, bias, ks=ks, st=st, pd=pd,
                           compute_dtype=compute_dtype)
    return jnp.transpose(out, (0, 3, 1, 2))


def _reference(x_nchw, weight, bias, *, ks=4, st=2, pd=1):
    """Pure-JAX reference matching PyTorch ConvTranspose2d + LeakyReLU(0.2)."""
    w_oihw = jnp.transpose(weight[:, :, ::-1, ::-1], (1, 0, 2, 3))
    edge = ks - 1 - pd
    y = lax.conv_general_dilated(
        x_nchw, w_oihw,
        window_strides=(1, 1),
        padding=[(edge, edge), (edge, edge)],
        lhs_dilation=(st, st),
        rhs_dilation=(1, 1),
        dimension_numbers=("NCHW", "OIHW", "NCHW"))
    y = y + bias[None, :, None, None]
    return jnp.where(y > 0, y, NEG_SLOPE * y)


if __name__ == "__main__":
    N, in_c, out_c, H, W = 2, 4, 8, 16, 16
    ks, st, pd = 4, 2, 1

    key = jax.random.PRNGKey(0)
    kx, kw, kb = jax.random.split(key, 3)
    x = jax.random.normal(kx, (N, in_c, H, W), jnp.float32)
    # ConvTranspose2d weight shape: (in_c, out_c, ks, ks); bias: (out_c,)
    fan = in_c * ks * ks
    bound = 1.0 / (fan ** 0.5)
    weight = jax.random.uniform(kw, (in_c, out_c, ks, ks), jnp.float32, -bound, bound)
    bias = jax.random.uniform(kb, (out_c,), jnp.float32, -bound, bound)

    out = cup_forward(x, weight, bias, ks=ks, st=st, pd=pd)
    out = jax.block_until_ready(out)

    ref = _reference(x, weight, bias, ks=ks, st=st, pd=pd)
    Ho = (H - 1) * st - 2 * pd + ks
    Wo = (W - 1) * st - 2 * pd + ks
    assert out.shape == (N, out_c, Ho, Wo)
    assert jnp.allclose(out, ref, atol=1e-4, rtol=1e-4), "mismatch vs reference"

    print("KERNEL_OK")
</pallas_src>

<mosaic_0001>
module attributes {stable_mosaic.version = 11 : i64} {
  func.func @_cup_phase_kernel(%arg0: i32, %arg1: memref<1x18x18x4xf32, #tpu.memory_space<vmem>>, %arg2: memref<16x4x16xf32, #tpu.memory_space<vmem>>, %arg3: memref<1x16xf32, #tpu.memory_space<vmem>>, %arg4: memref<1x16x2x16x16xf32, #tpu.memory_space<vmem>>) attributes {dimension_semantics = [#tpu.dimension_semantics<parallel>], iteration_bounds = array<i64: 2>, scalar_prefetch = 0 : i64, scratch_operands = 0 : i64, tpu.core_type = #tpu.core_type<tc>, window_params = [{transform_indices = @transform_0, window_bounds = array<i64: 1, 18, 18, 4>}, {pipeline_mode = #tpu.pipeline_mode<synchronous>, transform_indices = @transform_1, window_bounds = array<i64: 16, 4, 16>}, {pipeline_mode = #tpu.pipeline_mode<synchronous>, transform_indices = @transform_2, window_bounds = array<i64: 1, 16>}, {transform_indices = @transform_3, window_bounds = array<i64: 1, 16, 2, 16, 16>}]} {
    %c0 = arith.constant 0 : index
    %c0_0 = arith.constant 0 : index
    %c0_1 = arith.constant 0 : index
    %c0_2 = arith.constant 0 : index
    %0 = vector.load %arg1[%c0, %c0_0, %c0_1, %c0_2] : memref<1x18x18x4xf32, #tpu.memory_space<vmem>>, vector<1x16x16x4xf32>
    %1 = vector.shape_cast %0 : vector<1x16x16x4xf32> to vector<16x16x4xf32>
    %c0_3 = arith.constant 0 : index
    %c0_4 = arith.constant 0 : index
    %c0_5 = arith.constant 0 : index
    %2 = vector.load %arg2[%c0_3, %c0_4, %c0_5] : memref<16x4x16xf32, #tpu.memory_space<vmem>>, vector<1x4x16xf32>
    %3 = vector.shape_cast %2 : vector<1x4x16xf32> to vector<4x16xf32>
    %cst = arith.constant dense<0.000000e+00> : vector<16x16x16xf32>
    %4 = tpu.matmul %1, %3, %cst {dimension_numbers = #tpu.dot_dimension_numbers<[2], [0], [0, 1], [1], [0, 0, 0, 1, 1, 1], [], []>} : vector<16x16x4xf32>, vector<4x16xf32>, vector<16x16x16xf32> -> vector<16x16x16xf32>
    %c0_6 = arith.constant 0 : index
    %c0_7 = arith.constant 0 : index
    %c1 = arith.constant 1 : index
    %c0_8 = arith.constant 0 : index
    %5 = vector.load %arg1[%c0_6, %c0_7, %c1, %c0_8] : memref<1x18x18x4xf32, #tpu.memory_space<vmem>>, vector<1x16x16x4xf32>
    %6 = vector.shape_cast %5 : vector<1x16x16x4xf32> to vector<16x16x4xf32>
    %c1_9 = arith.constant 1 : index
    %c0_10 = arith.constant 0 : index
    %c0_11 = arith.constant 0 : index
    %7 = vector.load %arg2[%c1_9, %c0_10, %c0_11] : memref<16x4x16xf32, #tpu.memory_space<vmem>>, vector<1x4x16xf32>
    %8 = vector.shape_cast %7 : vector<1x4x16xf32> to vector<4x16xf32>
    %cst_12 = arith.constant dense<0.000000e+00> : vector<16x16x16xf32>
    %9 = tpu.matmul %6, %8, %cst_12 {dimension_numbers = #tpu.dot_dimension_numbers<[2], [0], [0, 1], [1], [0, 0, 0, 1, 1, 1], [], []>} : vector<16x16x4xf32>, vector<4x16xf32>, vector<16x16x16xf32> -> vector<16x16x16xf32>
    %10 = arith.addf %4, %9 : vector<16x16x16xf32>
    %c0_13 = arith.constant 0 : index
    %c1_14 = arith.constant 1 : index
    %c0_15 = arith.constant 0 : index
    %c0_16 = arith.constant 0 : index
    %11 = vector.load %arg1[%c0_13, %c1_14, %c0_15, %c0_16] : memref<1x18x18x4xf32, #tpu.memory_space<vmem>>, vector<1x16x16x4xf32>
    %12 = vector.shape_cast %11 : vector<1x16x16x4xf32> to vector<16x16x4xf32>
    %c2 = arith.constant 2 : index
    %c0_17 = arith.constant 0 : index
    %c0_18 = arith.constant 0 : index
    %13 = vector.load %arg2[%c2, %c0_17, %c0_18] : memref<16x4x16xf32, #tpu.memory_space<vmem>>, vector<1x4x16xf32>
    %14 = vector.shape_cast %13 : vector<1x4x16xf32> to vector<4x16xf32>
    %cst_19 = arith.constant dense<0.000000e+00> : vector<16x16x16xf32>
    %15 = tpu.matmul %12, %14, %cst_19 {dimension_numbers = #tpu.dot_dimension_numbers<[2], [0], [0, 1], [1], [0, 0, 0, 1, 1, 1], [], []>} : vector<16x16x4xf32>, vector<4x16xf32>, vector<16x16x16xf32> -> vector<16x16x16xf32>
    %16 = arith.addf %10, %15 : vector<16x16x16xf32>
    %c0_20 = arith.constant 0 : index
    %c1_21 = arith.constant 1 : index
    %c1_22 = arith.constant 1 : index
    %c0_23 = arith.constant 0 : index
    %17 = vector.load %arg1[%c0_20, %c1_21, %c1_22, %c0_23] : memref<1x18x18x4xf32, #tpu.memory_space<vmem>>, vector<1x16x16x4xf32>
    %18 = vector.shape_cast %17 : vector<1x16x16x4xf32> to vector<16x16x4xf32>
    %c3 = arith.constant 3 : index
    %c0_24 = arith.constant 0 : index
    %c0_25 = arith.constant 0 : index
    %19 = vector.load %arg2[%c3, %c0_24, %c0_25] : memref<16x4x16xf32, #tpu.memory_space<vmem>>, vector<1x4x16xf32>
    %20 = vector.shape_cast %19 : vector<1x4x16xf32> to vector<4x16xf32>
    %cst_26 = arith.constant dense<0.000000e+00> : vector<16x16x16xf32>
    %21 = tpu.matmul %18, %20, %cst_26 {dimension_numbers = #tpu.dot_dimension_numbers<[2], [0], [0, 1], [1], [0, 0, 0, 1, 1, 1], [], []>} : vector<16x16x4xf32>, vector<4x16xf32>, vector<16x16x16xf32> -> vector<16x16x16xf32>
    %22 = arith.addf %16, %21 : vector<16x16x16xf32>
    %c0_27 = arith.constant 0 : index
    %c0_28 = arith.constant 0 : index
    %c1_29 = arith.constant 1 : index
    %c0_30 = arith.constant 0 : index
    %23 = vector.load %arg1[%c0_27, %c0_28, %c1_29, %c0_30] : memref<1x18x18x4xf32, #tpu.memory_space<vmem>>, vector<1x16x16x4xf32>
    %24 = vector.shape_cast %23 : vector<1x16x16x4xf32> to vector<16x16x4xf32>
    %c4 = arith.constant 4 : index
    %c0_31 = arith.constant 0 : index
    %c0_32 = arith.constant 0 : index
    %25 = vector.load %arg2[%c4, %c0_31, %c0_32] : memref<16x4x16xf32, #tpu.memory_space<vmem>>, vector<1x4x16xf32>
    %26 = vector.shape_cast %25 : vector<1x4x16xf32> to vector<4x16xf32>
    %cst_33 = arith.constant dense<0.000000e+00> : vector<16x16x16xf32>
    %27 = tpu.matmul %24, %26, %cst_33 {dimension_numbers = #tpu.dot_dimension_numbers<[2], [0], [0, 1], [1], [0, 0, 0, 1, 1, 1], [], []>} : vector<16x16x4xf32>, vector<4x16xf32>, vector<16x16x16xf32> -> vector<16x16x16xf32>
    %28 = arith.addf %22, %27 : vector<16x16x16xf32>
    %c0_34 = arith.constant 0 : index
    %c0_35 = arith.constant 0 : index
    %c2_36 = arith.constant 2 : index
    %c0_37 = arith.constant 0 : index
    %29 = vector.load %arg1[%c0_34, %c0_35, %c2_36, %c0_37] : memref<1x18x18x4xf32, #tpu.memory_space<vmem>>, vector<1x16x16x4xf32>
    %30 = vector.shape_cast %29 : vector<1x16x16x4xf32> to vector<16x16x4xf32>
    %c5 = arith.constant 5 : index
    %c0_38 = arith.constant 0 : index
    %c0_39 = arith.constant 0 : index
    %31 = vector.load %arg2[%c5, %c0_38, %c0_39] : memref<16x4x16xf32, #tpu.memory_space<vmem>>, vector<1x4x16xf32>
    %32 = vector.shape_cast %31 : vector<1x4x16xf32> to vector<4x16xf32>
    %cst_40 = arith.constant dense<0.000000e+00> : vector<16x16x16xf32>
    %33 = tpu.matmul %30, %32, %cst_40 {dimension_numbers = #tpu.dot_dimension_numbers<[2], [0], [0, 1], [1], [0, 0, 0, 1, 1, 1], [], []>} : vector<16x16x4xf32>, vector<4x16xf32>, vector<16x16x16xf32> -> vector<16x16x16xf32>
    %34 = arith.addf %28, %33 : vector<16x16x16xf32>
    %c0_41 = arith.constant 0 : index
    %c1_42 = arith.constant 1 : index
    %c1_43 = arith.constant 1 : index
    %c0_44 = arith.constant 0 : index
    %35 = vector.load %arg1[%c0_41, %c1_42, %c1_43, %c0_44] : memref<1x18x18x4xf32, #tpu.memory_space<vmem>>, vector<1x16x16x4xf32>
    %36 = vector.shape_cast %35 : vector<1x16x16x4xf32> to vector<16x16x4xf32>
    %c6 = arith.constant 6 : index
    %c0_45 = arith.constant 0 : index
    %c0_46 = arith.constant 0 : index
    %37 = vector.load %arg2[%c6, %c0_45, %c0_46] : memref<16x4x16xf32, #tpu.memory_space<vmem>>, vector<1x4x16xf32>
    %38 = vector.shape_cast %37 : vector<1x4x16xf32> to vector<4x16xf32>
    %cst_47 = arith.constant dense<0.000000e+00> : vector<16x16x16xf32>
    %39 = tpu.matmul %36, %38, %cst_47 {dimension_numbers = #tpu.dot_dimension_numbers<[2], [0], [0, 1], [1], [0, 0, 0, 1, 1, 1], [], []>} : vector<16x16x4xf32>, vector<4x16xf32>, vector<16x16x16xf32> -> vector<16x16x16xf32>
    %40 = arith.addf %34, %39 : vector<16x16x16xf32>
    %c0_48 = arith.constant 0 : index
    %c1_49 = arith.constant 1 : index
    %c2_50 = arith.constant 2 : index
    %c0_51 = arith.constant 0 : index
    %41 = vector.load %arg1[%c0_48, %c1_49, %c2_50, %c0_51] : memref<1x18x18x4xf32, #tpu.memory_space<vmem>>, vector<1x16x16x4xf32>
    %42 = vector.shape_cast %41 : vector<1x16x16x4xf32> to vector<16x16x4xf32>
    %c7 = arith.constant 7 : index
    %c0_52 = arith.constant 0 : index
    %c0_53 = arith.constant 0 : index
    %43 = vector.load %arg2[%c7, %c0_52, %c0_53] : memref<16x4x16xf32, #tpu.memory_space<vmem>>, vector<1x4x16xf32>
    %44 = vector.shape_cast %43 : vector<1x4x16xf32> to vector<4x16xf32>
    %cst_54 = arith.constant dense<0.000000e+00> : vector<16x16x16xf32>
    %45 = tpu.matmul %42, %44, %cst_54 {dimension_numbers = #tpu.dot_dimension_numbers<[2], [0], [0, 1], [1], [0, 0, 0, 1, 1, 1], [], []>} : vector<16x16x4xf32>, vector<4x16xf32>, vector<16x16x16xf32> -> vector<16x16x16xf32>
    %46 = arith.addf %40, %45 : vector<16x16x16xf32>
    %c0_55 = arith.constant 0 : index
    %c0_56 = arith.constant 0 : index
    %47 = vector.load %arg3[%c0_55, %c0_56] : memref<1x16xf32, #tpu.memory_space<vmem>>, vector<1x16xf32>
    %48 = vector.shape_cast %47 : vector<1x16xf32> to vector<1x1x16xf32>
    %49 = vector.broadcast %48 : vector<1x1x16xf32> to vector<16x16x16xf32>
    %50 = arith.addf %46, %49 : vector<16x16x16xf32>
    %cst_57 = arith.constant 0.000000e+00 : f32
    %51 = vector.broadcast %cst_57 : f32 to vector<16x16x16xf32>
    %52 = arith.cmpf ogt, %50, %51 : vector<16x16x16xf32>
    %cst_58 = arith.constant 2.000000e-01 : f32
    %53 = vector.broadcast %cst_58 : f32 to vector<16x16x16xf32>
    %54 = arith.mulf %53, %50 : vector<16x16x16xf32>
    %55 = arith.select %52, %50, %54 : vector<16x16x16xi1>, vector<16x16x16xf32>
    %c0_59 = arith.constant 0 : index
    %c0_60 = arith.constant 0 : index
    %c0_61 = arith.constant 0 : index
    %c0_62 = arith.constant 0 : index
    %c0_63 = arith.constant 0 : index
    %56 = vector.load %arg4[%c0_59, %c0_60, %c0_61, %c0_62, %c0_63] : memref<1x16x2x16x16xf32, #tpu.memory_space<vmem>>, vector<1x16x1x16x16xf32>
    %57 = vector.shape_cast %56 : vector<1x16x1x16x16xf32> to vector<16x16x16xf32>
    %58 = vector.shape_cast %55 : vector<16x16x16xf32> to vector<1x16x1x16x16xf32>
    tpu.vector_store %arg4[%c0_59, %c0_60, %c0_61, %c0_62, %c0_63], %58 {strides = array<i32>} : memref<1x16x2x16x16xf32, #tpu.memory_space<vmem>>, vector<1x16x1x16x16xf32>,
    %c0_64 = arith.constant 0 : index
    %c1_65 = arith.constant 1 : index
    %c0_66 = arith.constant 0 : index
    %c0_67 = arith.constant 0 : index
    %59 = vector.load %arg1[%c0_64, %c1_65, %c0_66, %c0_67] : memref<1x18x18x4xf32, #tpu.memory_space<vmem>>, vector<1x16x16x4xf32>
    %60 = vector.shape_cast %59 : vector<1x16x16x4xf32> to vector<16x16x4xf32>
    %c8 = arith.constant 8 : index
    %c0_68 = arith.constant 0 : index
    %c0_69 = arith.constant 0 : index
    %61 = vector.load %arg2[%c8, %c0_68, %c0_69] : memref<16x4x16xf32, #tpu.memory_space<vmem>>, vector<1x4x16xf32>
    %62 = vector.shape_cast %61 : vector<1x4x16xf32> to vector<4x16xf32>
    %cst_70 = arith.constant dense<0.000000e+00> : vector<16x16x16xf32>
    %63 = tpu.matmul %60, %62, %cst_70 {dimension_numbers = #tpu.dot_dimension_numbers<[2], [0], [0, 1], [1], [0, 0, 0, 1, 1, 1], [], []>} : vector<16x16x4xf32>, vector<4x16xf32>, vector<16x16x16xf32> -> vector<16x16x16xf32>
    %c0_71 = arith.constant 0 : index
    %c1_72 = arith.constant 1 : index
    %c1_73 = arith.constant 1 : index
    %c0_74 = arith.constant 0 : index
    %64 = vector.load %arg1[%c0_71, %c1_72, %c1_73, %c0_74] : memref<1x18x18x4xf32, #tpu.memory_space<vmem>>, vector<1x16x16x4xf32>
    %65 = vector.shape_cast %64 : vector<1x16x16x4xf32> to vector<16x16x4xf32>
    %c9 = arith.constant 9 : index
    %c0_75 = arith.constant 0 : index
    %c0_76 = arith.constant 0 : index
    %66 = vector.load %arg2[%c9, %c0_75, %c0_76] : memref<16x4x16xf32, #tpu.memory_space<vmem>>, vector<1x4x16xf32>
    %67 = vector.shape_cast %66 : vector<1x4x16xf32> to vector<4x16xf32>
    %cst_77 = arith.constant dense<0.000000e+00> : vector<16x16x16xf32>
    %68 = tpu.matmul %65, %67, %cst_77 {dimension_numbers = #tpu.dot_dimension_numbers<[2], [0], [0, 1], [1], [0, 0, 0, 1, 1, 1], [], []>} : vector<16x16x4xf32>, vector<4x16xf32>, vector<16x16x16xf32> -> vector<16x16x16xf32>
    %69 = arith.addf %63, %68 : vector<16x16x16xf32>
    %c0_78 = arith.constant 0 : index
    %c2_79 = arith.constant 2 : index
    %c0_80 = arith.constant 0 : index
    %c0_81 = arith.constant 0 : index
    %70 = vector.load %arg1[%c0_78, %c2_79, %c0_80, %c0_81] : memref<1x18x18x4xf32, #tpu.memory_space<vmem>>, vector<1x16x16x4xf32>
    %71 = vector.shape_cast %70 : vector<1x16x16x4xf32> to vector<16x16x4xf32>
    %c10 = arith.constant 10 : index
    %c0_82 = arith.constant 0 : index
    %c0_83 = arith.constant 0 : index
    %72 = vector.load %arg2[%c10, %c0_82, %c0_83] : memref<16x4x16xf32, #tpu.memory_space<vmem>>, vector<1x4x16xf32>
    %73 = vector.shape_cast %72 : vector<1x4x16xf32> to vector<4x16xf32>
    %cst_84 = arith.constant dense<0.000000e+00> : vector<16x16x16xf32>
    %74 = tpu.matmul %71, %73, %cst_84 {dimension_numbers = #tpu.dot_dimension_numbers<[2], [0], [0, 1], [1], [0, 0, 0, 1, 1, 1], [], []>} : vector<16x16x4xf32>, vector<4x16xf32>, vector<16x16x16xf32> -> vector<16x16x16xf32>
    %75 = arith.addf %69, %74 : vector<16x16x16xf32>
    %c0_85 = arith.constant 0 : index
    %c2_86 = arith.constant 2 : index
    %c1_87 = arith.constant 1 : index
    %c0_88 = arith.constant 0 : index
    %76 = vector.load %arg1[%c0_85, %c2_86, %c1_87, %c0_88] : memref<1x18x18x4xf32, #tpu.memory_space<vmem>>, vector<1x16x16x4xf32>
    %77 = vector.shape_cast %76 : vector<1x16x16x4xf32> to vector<16x16x4xf32>
    %c11 = arith.constant 11 : index
    %c0_89 = arith.constant 0 : index
    %c0_90 = arith.constant 0 : index
    %78 = vector.load %arg2[%c11, %c0_89, %c0_90] : memref<16x4x16xf32, #tpu.memory_space<vmem>>, vector<1x4x16xf32>
    %79 = vector.shape_cast %78 : vector<1x4x16xf32> to vector<4x16xf32>
    %cst_91 = arith.constant dense<0.000000e+00> : vector<16x16x16xf32>
    %80 = tpu.matmul %77, %79, %cst_91 {dimension_numbers = #tpu.dot_dimension_numbers<[2], [0], [0, 1], [1], [0, 0, 0, 1, 1, 1], [], []>} : vector<16x16x4xf32>, vector<4x16xf32>, vector<16x16x16xf32> -> vector<16x16x16xf32>
    %81 = arith.addf %75, %80 : vector<16x16x16xf32>
    %c0_92 = arith.constant 0 : index
    %c1_93 = arith.constant 1 : index
    %c1_94 = arith.constant 1 : index
    %c0_95 = arith.constant 0 : index
    %82 = vector.load %arg1[%c0_92, %c1_93, %c1_94, %c0_95] : memref<1x18x18x4xf32, #tpu.memory_space<vmem>>, vector<1x16x16x4xf32>
    %83 = vector.shape_cast %82 : vector<1x16x16x4xf32> to vector<16x16x4xf32>
    %c12 = arith.constant 12 : index
    %c0_96 = arith.constant 0 : index
    %c0_97 = arith.constant 0 : index
    %84 = vector.load %arg2[%c12, %c0_96, %c0_97] : memref<16x4x16xf32, #tpu.memory_space<vmem>>, vector<1x4x16xf32>
    %85 = vector.shape_cast %84 : vector<1x4x16xf32> to vector<4x16xf32>
    %cst_98 = arith.constant dense<0.000000e+00> : vector<16x16x16xf32>
    %86 = tpu.matmul %83, %85, %cst_98 {dimension_numbers = #tpu.dot_dimension_numbers<[2], [0], [0, 1], [1], [0, 0, 0, 1, 1, 1], [], []>} : vector<16x16x4xf32>, vector<4x16xf32>, vector<16x16x16xf32> -> vector<16x16x16xf32>
    %87 = arith.addf %81, %86 : vector<16x16x16xf32>
    %c0_99 = arith.constant 0 : index
    %c1_100 = arith.constant 1 : index
    %c2_101 = arith.constant 2 : index
    %c0_102 = arith.constant 0 : index
    %88 = vector.load %arg1[%c0_99, %c1_100, %c2_101, %c0_102] : memref<1x18x18x4xf32, #tpu.memory_space<vmem>>, vector<1x16x16x4xf32>
    %89 = vector.shape_cast %88 : vector<1x16x16x4xf32> to vector<16x16x4xf32>
    %c13 = arith.constant 13 : index
    %c0_103 = arith.constant 0 : index
    %c0_104 = arith.constant 0 : index
    %90 = vector.load %arg2[%c13, %c0_103, %c0_104] : memref<16x4x16xf32, #tpu.memory_space<vmem>>, vector<1x4x16xf32>
    %91 = vector.shape_cast %90 : vector<1x4x16xf32> to vector<4x16xf32>
    %cst_105 = arith.constant dense<0.000000e+00> : vector<16x16x16xf32>
    %92 = tpu.matmul %89, %91, %cst_105 {dimension_numbers = #tpu.dot_dimension_numbers<[2], [0], [0, 1], [1], [0, 0, 0, 1, 1, 1], [], []>} : vector<16x16x4xf32>, vector<4x16xf32>, vector<16x16x16xf32> -> vector<16x16x16xf32>
    %93 = arith.addf %87, %92 : vector<16x16x16xf32>
    %c0_106 = arith.constant 0 : index
    %c2_107 = arith.constant 2 : index
    %c1_108 = arith.constant 1 : index
    %c0_109 = arith.constant 0 : index
    %94 = vector.load %arg1[%c0_106, %c2_107, %c1_108, %c0_109] : memref<1x18x18x4xf32, #tpu.memory_space<vmem>>, vector<1x16x16x4xf32>
    %95 = vector.shape_cast %94 : vector<1x16x16x4xf32> to vector<16x16x4xf32>
    %c14 = arith.constant 14 : index
    %c0_110 = arith.constant 0 : index
    %c0_111 = arith.constant 0 : index
    %96 = vector.load %arg2[%c14, %c0_110, %c0_111] : memref<16x4x16xf32, #tpu.memory_space<vmem>>, vector<1x4x16xf32>
    %97 = vector.shape_cast %96 : vector<1x4x16xf32> to vector<4x16xf32>
    %cst_112 = arith.constant dense<0.000000e+00> : vector<16x16x16xf32>
    %98 = tpu.matmul %95, %97, %cst_112 {dimension_numbers = #tpu.dot_dimension_numbers<[2], [0], [0, 1], [1], [0, 0, 0, 1, 1, 1], [], []>} : vector<16x16x4xf32>, vector<4x16xf32>, vector<16x16x16xf32> -> vector<16x16x16xf32>
    %99 = arith.addf %93, %98 : vector<16x16x16xf32>
    %c0_113 = arith.constant 0 : index
    %c2_114 = arith.constant 2 : index
    %c2_115 = arith.constant 2 : index
    %c0_116 = arith.constant 0 : index
    %100 = vector.load %arg1[%c0_113, %c2_114, %c2_115, %c0_116] : memref<1x18x18x4xf32, #tpu.memory_space<vmem>>, vector<1x16x16x4xf32>
    %101 = vector.shape_cast %100 : vector<1x16x16x4xf32> to vector<16x16x4xf32>
    %c15 = arith.constant 15 : index
    %c0_117 = arith.constant 0 : index
    %c0_118 = arith.constant 0 : index
    %102 = vector.load %arg2[%c15, %c0_117, %c0_118] : memref<16x4x16xf32, #tpu.memory_space<vmem>>, vector<1x4x16xf32>
    %103 = vector.shape_cast %102 : vector<1x4x16xf32> to vector<4x16xf32>
    %cst_119 = arith.constant dense<0.000000e+00> : vector<16x16x16xf32>
    %104 = tpu.matmul %101, %103, %cst_119 {dimension_numbers = #tpu.dot_dimension_numbers<[2], [0], [0, 1], [1], [0, 0, 0, 1, 1, 1], [], []>} : vector<16x16x4xf32>, vector<4x16xf32>, vector<16x16x16xf32> -> vector<16x16x16xf32>
    %105 = arith.addf %99, %104 : vector<16x16x16xf32>
    %c0_120 = arith.constant 0 : index
    %c0_121 = arith.constant 0 : index
    %106 = vector.load %arg3[%c0_120, %c0_121] : memref<1x16xf32, #tpu.memory_space<vmem>>, vector<1x16xf32>
    %107 = vector.shape_cast %106 : vector<1x16xf32> to vector<1x1x16xf32>
    %108 = vector.broadcast %107 : vector<1x1x16xf32> to vector<16x16x16xf32>
    %109 = arith.addf %105, %108 : vector<16x16x16xf32>
    %cst_122 = arith.constant 0.000000e+00 : f32
    %110 = vector.broadcast %cst_122 : f32 to vector<16x16x16xf32>
    %111 = arith.cmpf ogt, %109, %110 : vector<16x16x16xf32>
    %cst_123 = arith.constant 2.000000e-01 : f32
    %112 = vector.broadcast %cst_123 : f32 to vector<16x16x16xf32>
    %113 = arith.mulf %112, %109 : vector<16x16x16xf32>
    %114 = arith.select %111, %109, %113 : vector<16x16x16xi1>, vector<16x16x16xf32>
    %c0_124 = arith.constant 0 : index
    %c0_125 = arith.constant 0 : index
    %c1_126 = arith.constant 1 : index
    %c0_127 = arith.constant 0 : index
    %c0_128 = arith.constant 0 : index
    %115 = vector.load %arg4[%c0_124, %c0_125, %c1_126, %c0_127, %c0_128] : memref<1x16x2x16x16xf32, #tpu.memory_space<vmem>>, vector<1x16x1x16x16xf32>
    %116 = vector.shape_cast %115 : vector<1x16x1x16x16xf32> to vector<16x16x16xf32>
    %117 = vector.shape_cast %114 : vector<16x16x16xf32> to vector<1x16x1x16x16xf32>
    tpu.vector_store %arg4[%c0_124, %c0_125, %c1_126, %c0_127, %c0_128], %117 {strides = array<i32>} : memref<1x16x2x16x16xf32, #tpu.memory_space<vmem>>, vector<1x16x1x16x16xf32>,
    return
  }
  func.func @transform_0(%arg0: i32) -> (i32, i32, i32, i32) {
    %c0_i32 = arith.constant 0 : i32
    %c0_i32_0 = arith.constant 0 : i32
    %c0_i32_1 = arith.constant 0 : i32
    %c0_i32_2 = arith.constant 0 : i32
    return %arg0, %c0_i32, %c0_i32_0, %c0_i32_1 : i32, i32, i32, i32
  }
  func.func @transform_1(%arg0: i32) -> (i32, i32, i32) {
    %c0_i32 = arith.constant 0 : i32
    %c0_i32_0 = arith.constant 0 : i32
    %c0_i32_1 = arith.constant 0 : i32
    %c0_i32_2 = arith.constant 0 : i32
    return %c0_i32, %c0_i32_0, %c0_i32_1 : i32, i32, i32
  }
  func.func @transform_2(%arg0: i32) -> (i32, i32) {
    %c0_i32 = arith.constant 0 : i32
    %c0_i32_0 = arith.constant 0 : i32
    %c0_i32_1 = arith.constant 0 : i32
    return %c0_i32, %c0_i32_0 : i32, i32
  }
  func.func @transform_3(%arg0: i32) -> (i32, i32, i32, i32, i32) {
    %c0_i32 = arith.constant 0 : i32
    %c0_i32_0 = arith.constant 0 : i32
    %c0_i32_1 = arith.constant 0 : i32
    %c0_i32_2 = arith.constant 0 : i32
    %c0_i32_3 = arith.constant 0 : i32
    return %arg0, %c0_i32, %c0_i32_0, %c0_i32_1, %c0_i32_2 : i32, i32, i32, i32, i32
  }
}

</mosaic_0001>

<llo_original>
// kernel: tile.8
$region0: #{tile.8}
  #allocation0 [shape = 's32[1]{0}', space=sflag, size = 0x4, scoped, tag = 'scoped memory for tile.8']
  %s0 = inlined_call_operand.vmem [shape: f32[8], index: 0, kind: input, shape index: {}]
  %s1 = inlined_call_operand.vmem [shape: f32[2,8], index: 1, kind: output, shape index: {}]
  // Predicated region
  $region2: #{tile.8} parent=0 // pred_check
    _
  $region3: #{tile.8} parent=0 // pred_check_branch
    %3 = sbr.rel (0) target = $region5
  $region4: #{tile.8} parent=0 // pred_region
    _
  $region5: #{tile.8} parent=0 // pred_fallthru
    _
  %v4 = vld [vmem:[%s0] ss:$0 sm:$0xff]
  %5 = vst [vmem:[%s1] sm:$0x3] %v4

// kernel: tile.9
$region0: #{tile.9}
  %s0 = inlined_call_operand.vmem [shape: f32[2,8], index: 0, kind: input, shape index: {}]
  %s1 = inlined_call_operand.vmem [shape: f32[1,16], index: 1, kind: output, shape index: {}]
  $region1: #{tile.9} parent=0
    #allocation0 [shape = 'u8[4096]{0}', space=vmem, size = 0x1000, scoped, tag = 'scoped mem for output reshape']
    #allocation1 [shape = 'u8[4096]{0}', space=vmem, size = 0x1000, scoped, tag = 'scoped mem for input reshape']
    %s3 = ssub.s32 4, 1
    %v4 = vld [vmem:[%s0] sm:%s3]
    %5 = vst [vmem:[#allocation1] sm:%s3] %v4
    %v6 = vld [vmem:[#allocation1] sm:$0x1]
    %vm7 = vcmask 64512
    %8 = vst.msk [vmem:[#allocation0] sm:$0x1] %vm7, %v6
    %s9 = scalar_lea.vmem [#allocation1], 1
    %v10 = vld [vmem:[%s9] sm:$0x1]
    %11 = vrot.lane.b32.xlu0 %v10, 8
    %v12 = vpop.permute.xlu0 %11
    %vm13 = vcmask 130112
    %14 = vst.msk [vmem:[#allocation0] sm:$0x1] %vm13, %v12
    %s16 = ssub.s32 2, 1
    %v17 = vld [vmem:[#allocation0] sm:%s16]
    %s19 = ssub.s32 2, 1
    %20 = vst [vmem:[%s1] sm:%s19] %v17

// kernel: cup_forward_nhwc.1
$region0: #{cup_forward_nhwc.1}
  #allocation0 [shape = 'u32[]', space=smem, size = 0x4, offset = 0x4, fixed_abs, tag = 'smem constant byte address 0x4 - core index']
  #allocation1 [shape = 'u32[72,128]{1,0:T(1,128)}', space=vmem, size = 0x9000, scoped, tag = 'internal scratch']
  %s0 = inlined_call_operand.vmem [shape: f32[2,18,18,4], index: 0, kind: input, shape index: {}]
  %s1 = inlined_call_operand.vmem [shape: f32[16,4,16], index: 1, kind: input, shape index: {}]
  %s2 = inlined_call_operand.vmem [shape: f32[1,16], index: 2, kind: input, shape index: {}]
  %s3 = inlined_call_operand.vmem [shape: f32[2,16,2,16,16], index: 3, kind: output, shape index: {}]
  %s4 = sld [smem:[#allocation0]]
  $region45: #{cup_forward_nhwc.1} parent=0
    _
  %s6 = ssub.s32 1, %s4
  %s7 = scalar_select 0, %s6, %s4
  loop: start=0, step=1, limit=4
  $region2: #{cup_forward_nhwc.1} parent=0 // loop_pre_header
    _
  $region3: #{cup_forward_nhwc.1} parent=0 // loop_header
    %s9 = sphi 0, %s13
    %p10 = scmp.ge.s32.totalorder %s9, 4
    %s19 = sphi 0, %s21
    %s22 = sphi 0, %s19
    %s23 = sphi 0, %s22
    %s39 = sphi 0, %s23
    %s43 = sphi 0, %s43
    %s45 = sphi 0, %s43
    %s46 = sphi 0, %s45
    %s60 = sphi 0, %s46
    %s64 = sphi 0, %s64
    %s66 = sphi 0, %s64
    %s67 = sphi 0, %s66
    %s81 = sphi 0, %s67
    %s87 = sphi 0, %s89
    %s90 = sphi 0, %s87
    %s91 = sphi 0, %s90
    %s107 = sphi 0, %s91
  $region4: #{cup_forward_nhwc.1} parent=0 // loop_header_branch
    %12 = sbr.rel (%p10) target = $region8
  $region5: #{cup_forward_nhwc.1} parent=0 // loop_body
    %s14 = ssub.s32 %s9, 1
    %s15 = ssub.s32 %s9, 2
    %s16 = sadd.s32 %s9, 1
    %s17 = ssub.s32 %s9, %s16
    %p18 = scmp.eq.s32.totalorder %s17, 0
    %s20 = sadd.s32 %s19, 1
    %s21 = scalar_select %p18, %s19, %s20
    %p24 = pneg %p18
    %p25 = scmp.eq.s32.totalorder %s9, 1
    %p26 = por %p24, %p25
    %p27 = scmp.ne.s32.totalorder %s19, %s22
    %p28 = scmp.eq.s32.totalorder %s9, 0
    %p29 = por %p27, %p28
    %p30 = scmp.ne.s32.totalorder %s19, %s22
    %p31 = scmp.eq.s32.totalorder %s14, 1
    %p32 = por %p30, %p31
    %p33 = scmp.ne.s32.totalorder %s22, %s23
    %p34 = scmp.eq.s32.totalorder %s14, 0
    %p35 = por %p33, %p34
    %p36 = scmp.ne.s32.totalorder %s22, %s23
    %p37 = scmp.eq.s32.totalorder %s15, 1
    %p38 = por %p36, %p37
    %p40 = scmp.ne.s32.totalorder %s23, %s39
    %p41 = scmp.eq.s32.totalorder %s15, 0
    %p42 = por %p40, %p41
    %s44 = sadd.s32 %s43, 1
    %p47 = scmp.eq.s32.totalorder %s9, 1
    %p48 = scmp.ne.s32.totalorder %s43, %s45
    %p49 = scmp.eq.s32.totalorder %s9, 0
    %p50 = por %p48, %p49
    %p51 = scmp.ne.s32.totalorder %s43, %s45
    %p52 = scmp.eq.s32.totalorder %s14, 1
    %p53 = por %p51, %p52
    %p54 = scmp.ne.s32.totalorder %s45, %s46
    %p55 = scmp.eq.s32.totalorder %s14, 0
    %p56 = por %p54, %p55
    %p57 = scmp.ne.s32.totalorder %s45, %s46
    %p58 = scmp.eq.s32.totalorder %s15, 1
    %p59 = por %p57, %p58
    %p61 = scmp.ne.s32.totalorder %s46, %s60
    %p62 = scmp.eq.s32.totalorder %s15, 0
    %p63 = por %p61, %p62
    %s65 = sadd.s32 %s64, 1
    %p68 = scmp.eq.s32.totalorder %s9, 1
    %p69 = scmp.ne.s32.totalorder %s64, %s66
    %p70 = scmp.eq.s32.totalorder %s9, 0
    %p71 = por %p69, %p70
    %p72 = scmp.ne.s32.totalorder %s64, %s66
    %p73 = scmp.eq.s32.totalorder %s14, 1
    %p74 = por %p72, %p73
    %p75 = scmp.ne.s32.totalorder %s66, %s67
    %p76 = scmp.eq.s32.totalorder %s14, 0
    %p77 = por %p75, %p76
    %p78 = scmp.ne.s32.totalorder %s66, %s67
    %p79 = scmp.eq.s32.totalorder %s15, 1
    %p80 = por %p78, %p79
    %p82 = scmp.ne.s32.totalorder %s67, %s81
    %p83 = scmp.eq.s32.totalorder %s15, 0
    %p84 = por %p82, %p83
    %s85 = ssub.s32 %s9, %s16
    %p86 = scmp.eq.s32.totalorder %s85, 0
    %s88 = sadd.s32 %s87, 1
    %s89 = scalar_select %p86, %s87, %s88
    %p92 = pneg %p86
    %p93 = scmp.eq.s32.totalorder %s9, 1
    %p94 = por %p92, %p93
    %p95 = scmp.ne.s32.totalorder %s87, %s90
    %p96 = scmp.eq.s32.totalorder %s9, 0
    %p97 = por %p95, %p96
    %p98 = scmp.ne.s32.totalorder %s87, %s90
    %p99 = scmp.eq.s32.totalorder %s14, 1
    %p100 = por %p98, %p99
    %p101 = scmp.ne.s32.totalorder %s90, %s91
    %p102 = scmp.eq.s32.totalorder %s14, 0
    %p103 = por %p101, %p102
    %p104 = scmp.ne.s32.totalorder %s90, %s91
    %p105 = scmp.eq.s32.totalorder %s15, 1
    %p106 = por %p104, %p105
    %p108 = scmp.ne.s32.totalorder %s91, %s107
    %p109 = scmp.eq.s32.totalorder %s15, 0
    %p110 = por %p108, %p109
    %p111 = scmp.le.s32.totalorder 1, %s9
    %p112 = scmp.lt.s32.totalorder %s9, 3
    %p113 = pnand %p111, %p112
    %p114 = pneg %p113
    // Predicated region
    $region9: #{cup_forward_nhwc.1} parent=5 // pred_check
      _
    $region10: #{cup_forward_nhwc.1} parent=5 // pred_check_branch
      %116 = sbr.rel (%p113) target = $region12
    $region11: #{cup_forward_nhwc.1} parent=5 // pred_region
      %s117 = ssub.s32 %s9, 1
      // Predicated region
      $region13: #{cup_forward_nhwc.1} parent=11 // pred_check
        %p118 = pneg %p56
      $region14: #{cup_forward_nhwc.1} parent=11 // pred_check_branch
        %120 = sbr.rel (%p118) target = $region16
      $region15: #{cup_forward_nhwc.1} parent=11 // pred_region
        _
      $region16: #{cup_forward_nhwc.1} parent=11 // pred_fallthru
        _
      // Predicated region
      $region17: #{cup_forward_nhwc.1} parent=11 // pred_check
        %p121 = pneg %p77
      $region18: #{cup_forward_nhwc.1} parent=11 // pred_check_branch
        %123 = sbr.rel (%p121) target = $region20
      $region19: #{cup_forward_nhwc.1} parent=11 // pred_region
        _
      $region20: #{cup_forward_nhwc.1} parent=11 // pred_fallthru
        _
    $region12: #{cup_forward_nhwc.1} parent=5 // pred_fallthru
      _
    %p124 = scmp.lt.s32.totalorder %s9, 2
    // Predicated region
    $region21: #{cup_forward_nhwc.1} parent=5 // pred_check
      %p125 = pneg %p124
    $region22: #{cup_forward_nhwc.1} parent=5 // pred_check_branch
      %127 = sbr.rel (%p125) target = $region24
    $region23: #{cup_forward_nhwc.1} parent=5 // pred_region
      // Predicated region
      $region25: #{cup_forward_nhwc.1} parent=23 // pred_check
        %p128 = pneg %p29
      $region26: #{cup_forward_nhwc.1} parent=23 // pred_check_branch
        %130 = sbr.rel (%p128) target = $region28
      $region27: #{cup_forward_nhwc.1} parent=23 // pred_region
        %p131 = scmp.lt.s32.totalorder %s9, 1
        %s132 = scalar_select %p131, %s9, 1
        %s133 = smul.addr %s132, 54
        %s134 = smul.addr %s133, 8
        %s135 = scalar_lea.vmem %s0, %s134
      $region28: #{cup_forward_nhwc.1} parent=23 // pred_fallthru
        _
    $region24: #{cup_forward_nhwc.1} parent=5 // pred_fallthru
      _
    %p136 = scmp.le.s32.totalorder 1, %s9
    %p137 = scmp.lt.s32.totalorder %s9, 3
    %p138 = pnand %p136, %p137
    %p139 = pneg %p138
    // Predicated region
    $region29: #{cup_forward_nhwc.1} parent=5 // pred_check
      _
    $region30: #{cup_forward_nhwc.1} parent=5 // pred_check_branch
      %141 = sbr.rel (%p138) target = $region32
    $region31: #{cup_forward_nhwc.1} parent=5 // pred_region
      %s142 = ssub.s32 %s9, 1
      %p143 = scmp.lt.s32.totalorder %s14, 1
      %s144 = scalar_select %p143, %s14, 1
      %s145 = smul.addr %s144, 54
      %s146 = smul.addr %s145, 8
      %s147 = scalar_lea.vmem %s0, %s146
      %p148 = pneg %p35
      %p149 = pneg %p32
      %p150 = pneg %p56
      %p151 = pneg %p53
      %p152 = pneg %p77
      %p153 = pneg %p74
      %p154 = pneg %p103
      %p155 = pneg %p100
      %p156 = scmp.lt.s32.totalorder %s14, 1
      %s157 = scalar_select %p156, %s14, 1
      %s158 = smul.addr %s157, 64
      %s159 = smul.addr %s158, 8
      %s160 = scalar_lea.vmem %s3, %s159
      %p161 = scmp.lt.s32.totalorder %s14, 1
      %s162 = scalar_select %p161, %s14, 1
      %s163 = smul.addr %s162, 54
      %s164 = smul.addr %s163, 8
      %s165 = scalar_lea.vmem %s0, %s164
      %p166 = scmp.lt.s32.totalorder %s14, 1
      %s167 = scalar_select %p166, %s14, 1
      %s168 = smul.addr %s167, 64
      %s169 = smul.addr %s168, 8
      %s170 = scalar_lea.vmem %s3, %s169
      %v171 = vld [vmem:[%s165] sm:$0xff]
      %v172 = vld [vmem:[%s165 + $0x8] sm:$0xff]
      %v173 = vld [vmem:[%s165 + $0x18] sm:$0xff]
      %v174 = vld [vmem:[%s165 + $0x20] sm:$0xff]
      %v175 = vld [vmem:[%s165 + $0x30] sm:$0xff]
      %v176 = vld [vmem:[%s165 + $0x38] sm:$0xff]
      %v177 = vld [vmem:[%s165 + $0x48] sm:$0xff]
      %v178 = vld [vmem:[%s165 + $0x50] sm:$0xff]
      %v179 = vld [vmem:[%s165 + $0x60] sm:$0xff]
      %v180 = vld [vmem:[%s165 + $0x68] sm:$0xff]
      %v181 = vld [vmem:[%s165 + $0x78] sm:$0xff]
      %v182 = vld [vmem:[%s165 + $0x80] sm:$0xff]
      %v183 = vld [vmem:[%s165 + $0x90] sm:$0xff]
      %v184 = vld [vmem:[%s165 + $0x98] sm:$0xff]
      %v185 = vld [vmem:[%s165 + $0xa8] sm:$0xff]
      %v186 = vld [vmem:[%s165 + $0xb0] sm:$0xff]
      %v187 = vld [vmem:[%s165 + $0xc0] sm:$0xff]
      %v188 = vld [vmem:[%s165 + $0xc8] sm:$0xff]
      %v189 = vld [vmem:[%s165 + $0xd8] sm:$0xff]
      %v190 = vld [vmem:[%s165 + $0xe0] sm:$0xff]
      %v191 = vld [vmem:[%s165 + $0xf0] sm:$0xff]
      %v192 = vld [vmem:[%s165 + $0xf8] sm:$0xff]
      %v193 = vld [vmem:[%s165 + $0x108] sm:$0xff]
      %v194 = vld [vmem:[%s165 + $0x110] sm:$0xff]
      %v195 = vld [vmem:[%s165 + $0x120] sm:$0xff]
      %v196 = vld [vmem:[%s165 + $0x128] sm:$0xff]
      %v197 = vld [vmem:[%s165 + $0x138] sm:$0xff]
      %v198 = vld [vmem:[%s165 + $0x140] sm:$0xff]
      %v199 = vld [vmem:[%s165 + $0x150] sm:$0xff]
      %v200 = vld [vmem:[%s165 + $0x158] sm:$0xff]
      %v201 = vld [vmem:[%s165 + $0x168] sm:$0xff]
      %v202 = vld [vmem:[%s165 + $0x170] sm:$0xff]
      %v203 = vld [vmem:[%s1] sm:$0xf]
      %v204 = vld [vmem:[%s165 + $0x1] sm:$0xff]
      %v205 = vld [vmem:[%s165 + $0x9] sm:$0xff]
      %v206 = vld [vmem:[%s165 + $0x19] sm:$0xff]
      %v207 = vld [vmem:[%s165 + $0x21] sm:$0xff]
      %v208 = vld [vmem:[%s165 + $0x31] sm:$0xff]
      %v209 = vld [vmem:[%s165 + $0x39] sm:$0xff]
      %v210 = vld [vmem:[%s165 + $0x49] sm:$0xff]
      %v211 = vld [vmem:[%s165 + $0x51] sm:$0xff]
      %v212 = vld [vmem:[%s165 + $0x61] sm:$0xff]
      %v213 = vld [vmem:[%s165 + $0x69] sm:$0xff]
      %v214 = vld [vmem:[%s165 + $0x79] sm:$0xff]
      %v215 = vld [vmem:[%s165 + $0x81] sm:$0xff]
      %v216 = vld [vmem:[%s165 + $0x91] sm:$0xff]
      %v217 = vld [vmem:[%s165 + $0x99] sm:$0xff]
      %v218 = vld [vmem:[%s165 + $0xa9] sm:$0xff]
      %v219 = vld [vmem:[%s165 + $0xb1] sm:$0xff]
      %v220 = vld [vmem:[%s165 + $0xc1] sm:$0xff]
      %v221 = vld [vmem:[%s165 + $0xc9] sm:$0xff]
      %v222 = vld [vmem:[%s165 + $0xd9] sm:$0xff]
      %v223 = vld [vmem:[%s165 + $0xe1] sm:$0xff]
      %v224 = vld [vmem:[%s165 + $0xf1] sm:$0xff]
      %v225 = vld [vmem:[%s165 + $0xf9] sm:$0xff]
      %v226 = vld [vmem:[%s165 + $0x109] sm:$0xff]
      %v227 = vld [vmem:[%s165 + $0x111] sm:$0xff]
      %v228 = vld [vmem:[%s165 + $0x121] sm:$0xff]
      %v229 = vld [vmem:[%s165 + $0x129] sm:$0xff]
      %v230 = vld [vmem:[%s165 + $0x139] sm:$0xff]
      %v231 = vld [vmem:[%s165 + $0x141] sm:$0xff]
      %v232 = vld [vmem:[%s165 + $0x151] sm:$0xff]
      %v233 = vld [vmem:[%s165 + $0x159] sm:$0xff]
      %v234 = vld [vmem:[%s165 + $0x169] sm:$0xff]
      %v235 = vld [vmem:[%s165 + $0x171] sm:$0xff]
      %s236 = scalar_lea.vmem %s1, 4
      %v237 = vld [vmem:[%s236] sm:$0xf]
      %vm238 = vcmask 31744
      %v240 = vsel %vm238, %v204, 0
      %v243 = vsel %vm238, %v205, 0
      %v246 = vsel %vm238, %v206, 0
      %v249 = vsel %vm238, %v207, 0
      %v252 = vsel %vm238, %v208, 0
      %v255 = vsel %vm238, %v209, 0
      %v258 = vsel %vm238, %v210, 0
      %v261 = vsel %vm238, %v211, 0
      %v264 = vsel %vm238, %v212, 0
      %v267 = vsel %vm238, %v213, 0
      %v270 = vsel %vm238, %v214, 0
      %v273 = vsel %vm238, %v215, 0
      %v276 = vsel %vm238, %v216, 0
      %v279 = vsel %vm238, %v217, 0
      %v282 = vsel %vm238, %v218, 0
      %v285 = vsel %vm238, %v219, 0
      %v288 = vsel %vm238, %v220, 0
      %v291 = vsel %vm238, %v221, 0
      %v294 = vsel %vm238, %v222, 0
      %v297 = vsel %vm238, %v223, 0
      %v300 = vsel %vm238, %v224, 0
      %v303 = vsel %vm238, %v225, 0
      %v306 = vsel %vm238, %v226, 0
      %v309 = vsel %vm238, %v227, 0
      %v312 = vsel %vm238, %v228, 0
      %v315 = vsel %vm238, %v229, 0
      %v318 = vsel %vm238, %v230, 0
      %v321 = vsel %vm238, %v231, 0
      %v324 = vsel %vm238, %v232, 0
      %v327 = vsel %vm238, %v233, 0
      %v330 = vsel %vm238, %v234, 0
      %v333 = vsel %vm238, %v235, 0
      %vm335 = vcmask 1043456
      %v337 = vsel %vm335, %v237, 0
      %339 = vmatpush.msra.mxu0 0.0
      %340 = vmatpush.msra.mxu0 0.0
      %341 = vmatpush.msra.mxu0 0.0
      %342 = vmatpush.msra.mxu0 0.0
      %343 = vmatpush.msra.mxu0 0.0
      %344 = vmatpush.msra.mxu0 0.0
      %345 = vmatpush.msra.mxu0 0.0
      %346 = vmatpush.msra.mxu0 0.0
      %347 = vmatpush.msra.mxu0 0.0
      %348 = vmatpush.msra.mxu0 0.0
      %349 = vmatpush.msra.mxu0 0.0
      %350 = vmatpush.msra.mxu0 0.0
      %351 = vmatpush.msra.mxu0 0.0
      %352 = vmatpush.msra.mxu0 0.0
      %353 = vmatpush.msra.mxu0 0.0
      %354 = vmatpush.msra.mxu0 %v337
      %355 = vmatmul.f32.gmra.mxu0 %v240
      %v356 = vpop.f32.mrf.mxu0
      %v357 = vadd.f32 0.0, %v356
      %358 = vmatmul.f32.gmra.mxu0 %v243
      %v359 = vpop.f32.mrf.mxu0
      %v360 = vadd.f32 0.0, %v359
      %361 = vmatmul.f32.gmra.mxu0 %v246
      %v362 = vpop.f32.mrf.mxu0
      %v363 = vadd.f32 0.0, %v362
      %364 = vmatmul.f32.gmra.mxu0 %v249
      %v365 = vpop.f32.mrf.mxu0
      %v366 = vadd.f32 0.0, %v365
      %367 = vmatmul.f32.gmra.mxu0 %v252
      %v368 = vpop.f32.mrf.mxu0
      %v369 = vadd.f32 0.0, %v368
      %370 = vmatmul.f32.gmra.mxu0 %v255
      %v371 = vpop.f32.mrf.mxu0
      %v372 = vadd.f32 0.0, %v371
      %373 = vmatmul.f32.gmra.mxu0 %v258
      %v374 = vpop.f32.mrf.mxu0
      %v375 = vadd.f32 0.0, %v374
      %376 = vmatmul.f32.gmra.mxu0 %v261
      %v377 = vpop.f32.mrf.mxu0
      %v378 = vadd.f32 0.0, %v377
      %379 = vmatmul.f32.gmra.mxu0 %v264
      %v380 = vpop.f32.mrf.mxu0
      %v381 = vadd.f32 0.0, %v380
      %382 = vmatmul.f32.gmra.mxu0 %v267
      %v383 = vpop.f32.mrf.mxu0
      %v384 = vadd.f32 0.0, %v383
      %385 = vmatmul.f32.gmra.mxu0 %v270
      %v386 = vpop.f32.mrf.mxu0
      %v387 = vadd.f32 0.0, %v386
      %388 = vmatmul.f32.gmra.mxu0 %v273
      %v389 = vpop.f32.mrf.mxu0
      %v390 = vadd.f32 0.0, %v389
      %391 = vmatmul.f32.gmra.mxu0 %v276
      %v392 = vpop.f32.mrf.mxu0
      %v393 = vadd.f32 0.0, %v392
      %394 = vmatmul.f32.gmra.mxu0 %v279
      %v395 = vpop.f32.mrf.mxu0
      %v396 = vadd.f32 0.0, %v395
      %397 = vmatmul.f32.gmra.mxu0 %v282
      %v398 = vpop.f32.mrf.mxu0
      %v399 = vadd.f32 0.0, %v398
      %400 = vmatmul.f32.gmra.mxu0 %v285
      %v401 = vpop.f32.mrf.mxu0
      %v402 = vadd.f32 0.0, %v401
      %403 = vmatmul.f32.gmra.mxu0 %v288
      %v404 = vpop.f32.mrf.mxu0
      %v405 = vadd.f32 0.0, %v404
      %406 = vmatmul.f32.gmra.mxu0 %v291
      %v407 = vpop.f32.mrf.mxu0
      %v408 = vadd.f32 0.0, %v407
      %409 = vmatmul.f32.gmra.mxu0 %v294
      %v410 = vpop.f32.mrf.mxu0
      %v411 = vadd.f32 0.0, %v410
      %412 = vmatmul.f32.gmra.mxu0 %v297
      %v413 = vpop.f32.mrf.mxu0
      %v414 = vadd.f32 0.0, %v413
      %415 = vmatmul.f32.gmra.mxu0 %v300
      %v416 = vpop.f32.mrf.mxu0
      %v417 = vadd.f32 0.0, %v416
      %418 = vmatmul.f32.gmra.mxu0 %v303
      %v419 = vpop.f32.mrf.mxu0
      %v420 = vadd.f32 0.0, %v419
      %421 = vmatmul.f32.gmra.mxu0 %v306
      %v422 = vpop.f32.mrf.mxu0
      %v423 = vadd.f32 0.0, %v422
      %424 = vmatmul.f32.gmra.mxu0 %v309
      %v425 = vpop.f32.mrf.mxu0
      %v426 = vadd.f32 0.0, %v425
      %427 = vmatmul.f32.gmra.mxu0 %v312
      %v428 = vpop.f32.mrf.mxu0
      %v429 = vadd.f32 0.0, %v428
      %430 = vmatmul.f32.gmra.mxu0 %v315
      %v431 = vpop.f32.mrf.mxu0
      %v432 = vadd.f32 0.0, %v431
      %433 = vmatmul.f32.gmra.mxu0 %v318
      %v434 = vpop.f32.mrf.mxu0
      %v435 = vadd.f32 0.0, %v434
      %436 = vmatmul.f32.gmra.mxu0 %v321
      %v437 = vpop.f32.mrf.mxu0
      %v438 = vadd.f32 0.0, %v437
      %439 = vmatmul.f32.gmra.mxu0 %v324
      %v440 = vpop.f32.mrf.mxu0
      %v441 = vadd.f32 0.0, %v440
      %442 = vmatmul.f32.gmra.mxu0 %v327
      %v443 = vpop.f32.mrf.mxu0
      %v444 = vadd.f32 0.0, %v443
      %445 = vmatmul.f32.gmra.mxu0 %v330
      %v446 = vpop.f32.mrf.mxu0
      %v447 = vadd.f32 0.0, %v446
      %448 = vmatmul.f32.gmra.mxu0 %v333
      %v449 = vpop.f32.mrf.mxu0
      %v450 = vadd.f32 0.0, %v449
      %451 = vdwg.mxu0
      %v453 = vsel %vm238, %v171, 0
      %v456 = vsel %vm238, %v172, 0
      %v459 = vsel %vm238, %v173, 0
      %v462 = vsel %vm238, %v174, 0
      %v465 = vsel %vm238, %v175, 0
      %v468 = vsel %vm238, %v176, 0
      %v471 = vsel %vm238, %v177, 0
      %v474 = vsel %vm238, %v178, 0
      %v477 = vsel %vm238, %v179, 0
      %v480 = vsel %vm238, %v180, 0
      %v483 = vsel %vm238, %v181, 0
      %v486 = vsel %vm238, %v182, 0
      %v489 = vsel %vm238, %v183, 0
      %v492 = vsel %vm238, %v184, 0
      %v495 = vsel %vm238, %v185, 0
      %v498 = vsel %vm238, %v186, 0
      %v501 = vsel %vm238, %v187, 0
      %v504 = vsel %vm238, %v188, 0
      %v507 = vsel %vm238, %v189, 0
      %v510 = vsel %vm238, %v190, 0
      %v513 = vsel %vm238, %v191, 0
      %v516 = vsel %vm238, %v192, 0
      %v519 = vsel %vm238, %v193, 0
      %v522 = vsel %vm238, %v194, 0
      %v525 = vsel %vm238, %v195, 0
      %v528 = vsel %vm238, %v196, 0
      %v531 = vsel %vm238, %v197, 0
      %v534 = vsel %vm238, %v198, 0
      %v537 = vsel %vm238, %v199, 0
      %v540 = vsel %vm238, %v200, 0
      %v543 = vsel %vm238, %v201, 0
      %v546 = vsel %vm238, %v202, 0
      %v549 = vsel %vm335, %v203, 0
      %551 = vmatpush.msra.mxu0 0.0
      %552 = vmatpush.msra.mxu0 0.0
      %553 = vmatpush.msra.mxu0 0.0
      %554 = vmatpush.msra.mxu0 0.0
      %555 = vmatpush.msra.mxu0 0.0
      %556 = vmatpush.msra.mxu0 0.0
      %557 = vmatpush.msra.mxu0 0.0
      %558 = vmatpush.msra.mxu0 0.0
      %559 = vmatpush.msra.mxu0 0.0
      %560 = vmatpush.msra.mxu0 0.0
      %561 = vmatpush.msra.mxu0 0.0
      %562 = vmatpush.msra.mxu0 0.0
      %563 = vmatpush.msra.mxu0 0.0
      %564 = vmatpush.msra.mxu0 0.0
      %565 = vmatpush.msra.mxu0 0.0
      %566 = vmatpush.msra.mxu0 %v549
      %567 = vmatmul.f32.gmra.mxu0 %v453
      %v568 = vpop.f32.mrf.mxu0
      %v569 = vadd.f32 %v357, %v568
      %570 = vmatmul.f32.gmra.mxu0 %v456
      %v571 = vpop.f32.mrf.mxu0
      %v572 = vadd.f32 %v360, %v571
      %573 = vmatmul.f32.gmra.mxu0 %v459
      %v574 = vpop.f32.mrf.mxu0
      %v575 = vadd.f32 %v363, %v574
      %576 = vmatmul.f32.gmra.mxu0 %v462
      %v577 = vpop.f32.mrf.mxu0
      %v578 = vadd.f32 %v366, %v577
      %579 = vmatmul.f32.gmra.mxu0 %v465
      %v580 = vpop.f32.mrf.mxu0
      %v581 = vadd.f32 %v369, %v580
      %582 = vmatmul.f32.gmra.mxu0 %v468
      %v583 = vpop.f32.mrf.mxu0
      %v584 = vadd.f32 %v372, %v583
      %585 = vmatmul.f32.gmra.mxu0 %v471
      %v586 = vpop.f32.mrf.mxu0
      %v587 = vadd.f32 %v375, %v586
      %588 = vmatmul.f32.gmra.mxu0 %v474
      %v589 = vpop.f32.mrf.mxu0
      %v590 = vadd.f32 %v378, %v589
      %591 = vmatmul.f32.gmra.mxu0 %v477
      %v592 = vpop.f32.mrf.mxu0
      %v593 = vadd.f32 %v381, %v592
      %594 = vmatmul.f32.gmra.mxu0 %v480
      %v595 = vpop.f32.mrf.mxu0
      %v596 = vadd.f32 %v384, %v595
      %597 = vmatmul.f32.gmra.mxu0 %v483
      %v598 = vpop.f32.mrf.mxu0
      %v599 = vadd.f32 %v387, %v598
      %600 = vmatmul.f32.gmra.mxu0 %v486
      %v601 = vpop.f32.mrf.mxu0
      %v602 = vadd.f32 %v390, %v601
      %603 = vmatmul.f32.gmra.mxu0 %v489
      %v604 = vpop.f32.mrf.mxu0
      %v605 = vadd.f32 %v393, %v604
      %606 = vmatmul.f32.gmra.mxu0 %v492
      %v607 = vpop.f32.mrf.mxu0
      %v608 = vadd.f32 %v396, %v607
      %609 = vmatmul.f32.gmra.mxu0 %v495
      %v610 = vpop.f32.mrf.mxu0
      %v611 = vadd.f32 %v399, %v610
      %612 = vmatmul.f32.gmra.mxu0 %v498
      %v613 = vpop.f32.mrf.mxu0
      %v614 = vadd.f32 %v402, %v613
      %615 = vmatmul.f32.gmra.mxu0 %v501
      %v616 = vpop.f32.mrf.mxu0
      %v617 = vadd.f32 %v405, %v616
      %618 = vmatmul.f32.gmra.mxu0 %v504
      %v619 = vpop.f32.mrf.mxu0
      %v620 = vadd.f32 %v408, %v619
      %621 = vmatmul.f32.gmra.mxu0 %v507
      %v622 = vpop.f32.mrf.mxu0
      %v623 = vadd.f32 %v411, %v622
      %624 = vmatmul.f32.gmra.mxu0 %v510
      %v625 = vpop.f32.mrf.mxu0
      %v626 = vadd.f32 %v414, %v625
      %627 = vmatmul.f32.gmra.mxu0 %v513
      %v628 = vpop.f32.mrf.mxu0
      %v629 = vadd.f32 %v417, %v628
      %630 = vmatmul.f32.gmra.mxu0 %v516
      %v631 = vpop.f32.mrf.mxu0
      %v632 = vadd.f32 %v420, %v631
      %633 = vmatmul.f32.gmra.mxu0 %v519
      %v634 = vpop.f32.mrf.mxu0
      %v635 = vadd.f32 %v423, %v634
      %636 = vmatmul.f32.gmra.mxu0 %v522
      %v637 = vpop.f32.mrf.mxu0
      %v638 = vadd.f32 %v426, %v637
      %639 = vmatmul.f32.gmra.mxu0 %v525
      %v640 = vpop.f32.mrf.mxu0
      %v641 = vadd.f32 %v429, %v640
      %642 = vmatmul.f32.gmra.mxu0 %v528
      %v643 = vpop.f32.mrf.mxu0
      %v644 = vadd.f32 %v432, %v643
      %645 = vmatmul.f32.gmra.mxu0 %v531
      %v646 = vpop.f32.mrf.mxu0
      %v647 = vadd.f32 %v435, %v646
      %648 = vmatmul.f32.gmra.mxu0 %v534
      %v649 = vpop.f32.mrf.mxu0
      %v650 = vadd.f32 %v438, %v649
      %651 = vmatmul.f32.gmra.mxu0 %v537
      %v652 = vpop.f32.mrf.mxu0
      %v653 = vadd.f32 %v441, %v652
      %654 = vmatmul.f32.gmra.mxu0 %v540
      %v655 = vpop.f32.mrf.mxu0
      %v656 = vadd.f32 %v444, %v655
      %657 = vmatmul.f32.gmra.mxu0 %v543
      %v658 = vpop.f32.mrf.mxu0
      %v659 = vadd.f32 %v447, %v658
      %660 = vmatmul.f32.gmra.mxu0 %v546
      %v661 = vpop.f32.mrf.mxu0
      %v662 = vadd.f32 %v450, %v661
      %663 = vdwg.mxu0
      %s664 = scalar_lea.vmem %s165, 24
      %v665 = vld [vmem:[%s664] sm:$0xff]
      %v666 = vld [vmem:[%s664 + $0x8] sm:$0xff]
      %v667 = vld [vmem:[%s664 + $0x18] sm:$0xff]
      %v668 = vld [vmem:[%s664 + $0x20] sm:$0xff]
      %v669 = vld [vmem:[%s664 + $0x30] sm:$0xff]
      %v670 = vld [vmem:[%s664 + $0x38] sm:$0xff]
      %v671 = vld [vmem:[%s664 + $0x48] sm:$0xff]
      %v672 = vld [vmem:[%s664 + $0x50] sm:$0xff]
      %v673 = vld [vmem:[%s664 + $0x60] sm:$0xff]
      %v674 = vld [vmem:[%s664 + $0x68] sm:$0xff]
      %v675 = vld [vmem:[%s664 + $0x78] sm:$0xff]
      %v676 = vld [vmem:[%s664 + $0x80] sm:$0xff]
      %v677 = vld [vmem:[%s664 + $0x90] sm:$0xff]
      %v678 = vld [vmem:[%s664 + $0x98] sm:$0xff]
      %v679 = vld [vmem:[%s664 + $0xa8] sm:$0xff]
      %v680 = vld [vmem:[%s664 + $0xb0] sm:$0xff]
      %v681 = vld [vmem:[%s664 + $0xc0] sm:$0xff]
      %v682 = vld [vmem:[%s664 + $0xc8] sm:$0xff]
      %v683 = vld [vmem:[%s664 + $0xd8] sm:$0xff]
      %v684 = vld [vmem:[%s664 + $0xe0] sm:$0xff]
      %v685 = vld [vmem:[%s664 + $0xf0] sm:$0xff]
      %v686 = vld [vmem:[%s664 + $0xf8] sm:$0xff]
      %v687 = vld [vmem:[%s664 + $0x108] sm:$0xff]
      %v688 = vld [vmem:[%s664 + $0x110] sm:$0xff]
      %v689 = vld [vmem:[%s664 + $0x120] sm:$0xff]
      %v690 = vld [vmem:[%s664 + $0x128] sm:$0xff]
      %v691 = vld [vmem:[%s664 + $0x138] sm:$0xff]
      %v692 = vld [vmem:[%s664 + $0x140] sm:$0xff]
      %v693 = vld [vmem:[%s664 + $0x150] sm:$0xff]
      %v694 = vld [vmem:[%s664 + $0x158] sm:$0xff]
      %v695 = vld [vmem:[%s664 + $0x168] sm:$0xff]
      %v696 = vld [vmem:[%s664 + $0x170] sm:$0xff]
      %s697 = scalar_lea.vmem %s1, 8
      %v698 = vld [vmem:[%s697] sm:$0xf]
      %v700 = vsel %vm238, %v665, 0
      %v703 = vsel %vm238, %v666, 0
      %v706 = vsel %vm238, %v667, 0
      %v709 = vsel %vm238, %v668, 0
      %v712 = vsel %vm238, %v669, 0
      %v715 = vsel %vm238, %v670, 0
      %v718 = vsel %vm238, %v671, 0
      %v721 = vsel %vm238, %v672, 0
      %v724 = vsel %vm238, %v673, 0
      %v727 = vsel %vm238, %v674, 0
      %v730 = vsel %vm238, %v675, 0
      %v733 = vsel %vm238, %v676, 0
      %v736 = vsel %vm238, %v677, 0
      %v739 = vsel %vm238, %v678, 0
      %v742 = vsel %vm238, %v679, 0
      %v745 = vsel %vm238, %v680, 0
      %v748 = vsel %vm238, %v681, 0
      %v751 = vsel %vm238, %v682, 0
      %v754 = vsel %vm238, %v683, 0
      %v757 = vsel %vm238, %v684, 0
      %v760 = vsel %vm238, %v685, 0
      %v763 = vsel %vm238, %v686, 0
      %v766 = vsel %vm238, %v687, 0
      %v769 = vsel %vm238, %v688, 0
      %v772 = vsel %vm238, %v689, 0
      %v775 = vsel %vm238, %v690, 0
      %v778 = vsel %vm238, %v691, 0
      %v781 = vsel %vm238, %v692, 0
      %v784 = vsel %vm238, %v693, 0
      %v787 = vsel %vm238, %v694, 0
      %v790 = vsel %vm238, %v695, 0
      %v793 = vsel %vm238, %v696, 0
      %v796 = vsel %vm335, %v698, 0
      %798 = vmatpush.msra.mxu0 0.0
      %799 = vmatpush.msra.mxu0 0.0
      %800 = vmatpush.msra.mxu0 0.0
      %801 = vmatpush.msra.mxu0 0.0
      %802 = vmatpush.msra.mxu0 0.0
      %803 = vmatpush.msra.mxu0 0.0
      %804 = vmatpush.msra.mxu0 0.0
      %805 = vmatpush.msra.mxu0 0.0
      %806 = vmatpush.msra.mxu0 0.0
      %807 = vmatpush.msra.mxu0 0.0
      %808 = vmatpush.msra.mxu0 0.0
      %809 = vmatpush.msra.mxu0 0.0
      %810 = vmatpush.msra.mxu0 0.0
      %811 = vmatpush.msra.mxu0 0.0
      %812 = vmatpush.msra.mxu0 0.0
      %813 = vmatpush.msra.mxu0 %v796
      %814 = vmatmul.f32.gmra.mxu0 %v700
      %v815 = vpop.f32.mrf.mxu0
      %v816 = vadd.f32 0.0, %v815
      %817 = vmatmul.f32.gmra.mxu0 %v703
      %v818 = vpop.f32.mrf.mxu0
      %v819 = vadd.f32 0.0, %v818
      %820 = vmatmul.f32.gmra.mxu0 %v706
      %v821 = vpop.f32.mrf.mxu0
      %v822 = vadd.f32 0.0, %v821
      %823 = vmatmul.f32.gmra.mxu0 %v709
      %v824 = vpop.f32.mrf.mxu0
      %v825 = vadd.f32 0.0, %v824
      %826 = vmatmul.f32.gmra.mxu0 %v712
      %v827 = vpop.f32.mrf.mxu0
      %v828 = vadd.f32 0.0, %v827
      %829 = vmatmul.f32.gmra.mxu0 %v715
      %v830 = vpop.f32.mrf.mxu0
      %v831 = vadd.f32 0.0, %v830
      %832 = vmatmul.f32.gmra.mxu0 %v718
      %v833 = vpop.f32.mrf.mxu0
      %v834 = vadd.f32 0.0, %v833
      %835 = vmatmul.f32.gmra.mxu0 %v721
      %v836 = vpop.f32.mrf.mxu0
      %v837 = vadd.f32 0.0, %v836
      %838 = vmatmul.f32.gmra.mxu0 %v724
      %v839 = vpop.f32.mrf.mxu0
      %v840 = vadd.f32 0.0, %v839
      %841 = vmatmul.f32.gmra.mxu0 %v727
      %v842 = vpop.f32.mrf.mxu0
      %v843 = vadd.f32 0.0, %v842
      %844 = vmatmul.f32.gmra.mxu0 %v730
      %v845 = vpop.f32.mrf.mxu0
      %v846 = vadd.f32 0.0, %v845
      %847 = vmatmul.f32.gmra.mxu0 %v733
      %v848 = vpop.f32.mrf.mxu0
      %v849 = vadd.f32 0.0, %v848
      %850 = vmatmul.f32.gmra.mxu0 %v736
      %v851 = vpop.f32.mrf.mxu0
      %v852 = vadd.f32 0.0, %v851
      %853 = vmatmul.f32.gmra.mxu0 %v739
      %v854 = vpop.f32.mrf.mxu0
      %v855 = vadd.f32 0.0, %v854
      %856 = vmatmul.f32.gmra.mxu0 %v742
      %v857 = vpop.f32.mrf.mxu0
      %v858 = vadd.f32 0.0, %v857
      %859 = vmatmul.f32.gmra.mxu0 %v745
      %v860 = vpop.f32.mrf.mxu0
      %v861 = vadd.f32 0.0, %v860
      %862 = vmatmul.f32.gmra.mxu0 %v748
      %v863 = vpop.f32.mrf.mxu0
      %v864 = vadd.f32 0.0, %v863
      %865 = vmatmul.f32.gmra.mxu0 %v751
      %v866 = vpop.f32.mrf.mxu0
      %v867 = vadd.f32 0.0, %v866
      %868 = vmatmul.f32.gmra.mxu0 %v754
      %v869 = vpop.f32.mrf.mxu0
      %v870 = vadd.f32 0.0, %v869
      %871 = vmatmul.f32.gmra.mxu0 %v757
      %v872 = vpop.f32.mrf.mxu0
      %v873 = vadd.f32 0.0, %v872
      %874 = vmatmul.f32.gmra.mxu0 %v760
      %v875 = vpop.f32.mrf.mxu0
      %v876 = vadd.f32 0.0, %v875
      %877 = vmatmul.f32.gmra.mxu0 %v763
      %v878 = vpop.f32.mrf.mxu0
      %v879 = vadd.f32 0.0, %v878
      %880 = vmatmul.f32.gmra.mxu0 %v766
      %v881 = vpop.f32.mrf.mxu0
      %v882 = vadd.f32 0.0, %v881
      %883 = vmatmul.f32.gmra.mxu0 %v769
      %v884 = vpop.f32.mrf.mxu0
      %v885 = vadd.f32 0.0, %v884
      %886 = vmatmul.f32.gmra.mxu0 %v772
      %v887 = vpop.f32.mrf.mxu0
      %v888 = vadd.f32 0.0, %v887
      %889 = vmatmul.f32.gmra.mxu0 %v775
      %v890 = vpop.f32.mrf.mxu0
      %v891 = vadd.f32 0.0, %v890
      %892 = vmatmul.f32.gmra.mxu0 %v778
      %v893 = vpop.f32.mrf.mxu0
      %v894 = vadd.f32 0.0, %v893
      %895 = vmatmul.f32.gmra.mxu0 %v781
      %v896 = vpop.f32.mrf.mxu0
      %v897 = vadd.f32 0.0, %v896
      %898 = vmatmul.f32.gmra.mxu0 %v784
      %v899 = vpop.f32.mrf.mxu0
      %v900 = vadd.f32 0.0, %v899
      %901 = vmatmul.f32.gmra.mxu0 %v787
      %v902 = vpop.f32.mrf.mxu0
      %v903 = vadd.f32 0.0, %v902
      %904 = vmatmul.f32.gmra.mxu0 %v790
      %v905 = vpop.f32.mrf.mxu0
      %v906 = vadd.f32 0.0, %v905
      %907 = vmatmul.f32.gmra.mxu0 %v793
      %v908 = vpop.f32.mrf.mxu0
      %v909 = vadd.f32 0.0, %v908
      %910 = vdwg.mxu0
      %v911 = vadd.f32 %v569, %v816
      %v912 = vadd.f32 %v572, %v819
      %v913 = vadd.f32 %v575, %v822
      %v914 = vadd.f32 %v578, %v825
      %v915 = vadd.f32 %v581, %v828
      %v916 = vadd.f32 %v584, %v831
      %v917 = vadd.f32 %v587, %v834
      %v918 = vadd.f32 %v590, %v837
      %v919 = vadd.f32 %v593, %v840
      %v920 = vadd.f32 %v596, %v843
      %v921 = vadd.f32 %v599, %v846
      %v922 = vadd.f32 %v602, %v849
      %v923 = vadd.f32 %v605, %v852
      %v924 = vadd.f32 %v608, %v855
      %v925 = vadd.f32 %v611, %v858
      %v926 = vadd.f32 %v614, %v861
      %v927 = vadd.f32 %v617, %v864
      %v928 = vadd.f32 %v620, %v867
      %v929 = vadd.f32 %v623, %v870
      %v930 = vadd.f32 %v626, %v873
      %v931 = vadd.f32 %v629, %v876
      %v932 = vadd.f32 %v632, %v879
      %v933 = vadd.f32 %v635, %v882
      %v934 = vadd.f32 %v638, %v885
      %v935 = vadd.f32 %v641, %v888
      %v936 = vadd.f32 %v644, %v891
      %v937 = vadd.f32 %v647, %v894
      %v938 = vadd.f32 %v650, %v897
      %v939 = vadd.f32 %v653, %v900
      %v940 = vadd.f32 %v656, %v903
      %v941 = vadd.f32 %v659, %v906
      %v942 = vadd.f32 %v662, %v909
      %v943 = vld [vmem:[%s664 + $0x1] sm:$0xff]
      %v944 = vld [vmem:[%s664 + $0x9] sm:$0xff]
      %v945 = vld [vmem:[%s664 + $0x19] sm:$0xff]
      %v946 = vld [vmem:[%s664 + $0x21] sm:$0xff]
      %v947 = vld [vmem:[%s664 + $0x31] sm:$0xff]
      %v948 = vld [vmem:[%s664 + $0x39] sm:$0xff]
      %v949 = vld [vmem:[%s664 + $0x49] sm:$0xff]
      %v950 = vld [vmem:[%s664 + $0x51] sm:$0xff]
      %v951 = vld [vmem:[%s664 + $0x61] sm:$0xff]
      %v952 = vld [vmem:[%s664 + $0x69] sm:$0xff]
      %v953 = vld [vmem:[%s664 + $0x79] sm:$0xff]
      %v954 = vld [vmem:[%s664 + $0x81] sm:$0xff]
      %v955 = vld [vmem:[%s664 + $0x91] sm:$0xff]
      %v956 = vld [vmem:[%s664 + $0x99] sm:$0xff]
      %v957 = vld [vmem:[%s664 + $0xa9] sm:$0xff]
      %v958 = vld [vmem:[%s664 + $0xb1] sm:$0xff]
      %v959 = vld [vmem:[%s664 + $0xc1] sm:$0xff]
      %v960 = vld [vmem:[%s664 + $0xc9] sm:$0xff]
      %v961 = vld [vmem:[%s664 + $0xd9] sm:$0xff]
      %v962 = vld [vmem:[%s664 + $0xe1] sm:$0xff]
      %v963 = vld [vmem:[%s664 + $0xf1] sm:$0xff]
      %v964 = vld [vmem:[%s664 + $0xf9] sm:$0xff]
      %v965 = vld [vmem:[%s664 + $0x109] sm:$0xff]
      %v966 = vld [vmem:[%s664 + $0x111] sm:$0xff]
      %v967 = vld [vmem:[%s664 + $0x121] sm:$0xff]
      %v968 = vld [vmem:[%s664 + $0x129] sm:$0xff]
      %v969 = vld [vmem:[%s664 + $0x139] sm:$0xff]
      %v970 = vld [vmem:[%s664 + $0x141] sm:$0xff]
      %v971 = vld [vmem:[%s664 + $0x151] sm:$0xff]
      %v972 = vld [vmem:[%s664 + $0x159] sm:$0xff]
      %v973 = vld [vmem:[%s664 + $0x169] sm:$0xff]
      %v974 = vld [vmem:[%s664 + $0x171] sm:$0xff]
      %s975 = scalar_lea.vmem %s1, 12
      %v976 = vld [vmem:[%s975] sm:$0xf]
      %v978 = vsel %vm238, %v943, 0
      %v981 = vsel %vm238, %v944, 0
      %v984 = vsel %vm238, %v945, 0
      %v987 = vsel %vm238, %v946, 0
      %v990 = vsel %vm238, %v947, 0
      %v993 = vsel %vm238, %v948, 0
      %v996 = vsel %vm238, %v949, 0
      %v999 = vsel %vm238, %v950, 0
      %v1002 = vsel %vm238, %v951, 0
      %v1005 = vsel %vm238, %v952, 0
      %v1008 = vsel %vm238, %v953, 0
      %v1011 = vsel %vm238, %v954, 0
      %v1014 = vsel %vm238, %v955, 0
      %v1017 = vsel %vm238, %v956, 0
      %v1020 = vsel %vm238, %v957, 0
      %v1023 = vsel %vm238, %v958, 0
      %v1026 = vsel %vm238, %v959, 0
      %v1029 = vsel %vm238, %v960, 0
      %v1032 = vsel %vm238, %v961, 0
      %v1035 = vsel %vm238, %v962, 0
      %v1038 = vsel %vm238, %v963, 0
      %v1041 = vsel %vm238, %v964, 0
      %v1044 = vsel %vm238, %v965, 0
      %v1047 = vsel %vm238, %v966, 0
      %v1050 = vsel %vm238, %v967, 0
      %v1053 = vsel %vm238, %v968, 0
      %v1056 = vsel %vm238, %v969, 0
      %v1059 = vsel %vm238, %v970, 0
      %v1062 = vsel %vm238, %v971, 0
      %v1065 = vsel %vm238, %v972, 0
      %v1068 = vsel %vm238, %v973, 0
      %v1071 = vsel %vm238, %v974, 0
      %v1074 = vsel %vm335, %v976, 0
      %1076 = vmatpush.msra.mxu0 0.0
      %1077 = vmatpush.msra.mxu0 0.0
      %1078 = vmatpush.msra.mxu0 0.0
      %1079 = vmatpush.msra.mxu0 0.0
      %1080 = vmatpush.msra.mxu0 0.0
      %1081 = vmatpush.msra.mxu0 0.0
      %1082 = vmatpush.msra.mxu0 0.0
      %1083 = vmatpush.msra.mxu0 0.0
      %1084 = vmatpush.msra.mxu0 0.0
      %1085 = vmatpush.msra.mxu0 0.0
      %1086 = vmatpush.msra.mxu0 0.0
      %1087 = vmatpush.msra.mxu0 0.0
      %1088 = vmatpush.msra.mxu0 0.0
      %1089 = vmatpush.msra.mxu0 0.0
      %1090 = vmatpush.msra.mxu0 0.0
      %1091 = vmatpush.msra.mxu0 %v1074
      %1092 = vmatmul.f32.gmra.mxu0 %v978
      %v1093 = vpop.f32.mrf.mxu0
      %v1094 = vadd.f32 0.0, %v1093
      %1095 = vmatmul.f32.gmra.mxu0 %v981
      %v1096 = vpop.f32.mrf.mxu0
      %v1097 = vadd.f32 0.0, %v1096
      %1098 = vmatmul.f32.gmra.mxu0 %v984
      %v1099 = vpop.f32.mrf.mxu0
      %v1100 = vadd.f32 0.0, %v1099
      %1101 = vmatmul.f32.gmra.mxu0 %v987
      %v1102 = vpop.f32.mrf.mxu0
      %v1103 = vadd.f32 0.0, %v1102
      %1104 = vmatmul.f32.gmra.mxu0 %v990
      %v1105 = vpop.f32.mrf.mxu0
      %v1106 = vadd.f32 0.0, %v1105
      %1107 = vmatmul.f32.gmra.mxu0 %v993
      %v1108 = vpop.f32.mrf.mxu0
      %v1109 = vadd.f32 0.0, %v1108
      %1110 = vmatmul.f32.gmra.mxu0 %v996
      %v1111 = vpop.f32.mrf.mxu0
      %v1112 = vadd.f32 0.0, %v1111
      %1113 = vmatmul.f32.gmra.mxu0 %v999
      %v1114 = vpop.f32.mrf.mxu0
      %v1115 = vadd.f32 0.0, %v1114
      %1116 = vmatmul.f32.gmra.mxu0 %v1002
      %v1117 = vpop.f32.mrf.mxu0
      %v1118 = vadd.f32 0.0, %v1117
      %1119 = vmatmul.f32.gmra.mxu0 %v1005
      %v1120 = vpop.f32.mrf.mxu0
      %v1121 = vadd.f32 0.0, %v1120
      %1122 = vmatmul.f32.gmra.mxu0 %v1008
      %v1123 = vpop.f32.mrf.mxu0
      %v1124 = vadd.f32 0.0, %v1123
      %1125 = vmatmul.f32.gmra.mxu0 %v1011
      %v1126 = vpop.f32.mrf.mxu0
      %v1127 = vadd.f32 0.0, %v1126
      %1128 = vmatmul.f32.gmra.mxu0 %v1014
      %v1129 = vpop.f32.mrf.mxu0
      %v1130 = vadd.f32 0.0, %v1129
      %1131 = vmatmul.f32.gmra.mxu0 %v1017
      %v1132 = vpop.f32.mrf.mxu0
      %v1133 = vadd.f32 0.0, %v1132
      %1134 = vmatmul.f32.gmra.mxu0 %v1020
      %v1135 = vpop.f32.mrf.mxu0
      %v1136 = vadd.f32 0.0, %v1135
      %1137 = vmatmul.f32.gmra.mxu0 %v1023
      %v1138 = vpop.f32.mrf.mxu0
      %v1139 = vadd.f32 0.0, %v1138
      %1140 = vmatmul.f32.gmra.mxu0 %v1026
      %v1141 = vpop.f32.mrf.mxu0
      %v1142 = vadd.f32 0.0, %v1141
      %1143 = vmatmul.f32.gmra.mxu0 %v1029
      %v1144 = vpop.f32.mrf.mxu0
      %v1145 = vadd.f32 0.0, %v1144
      %1146 = vmatmul.f32.gmra.mxu0 %v1032
      %v1147 = vpop.f32.mrf.mxu0
      %v1148 = vadd.f32 0.0, %v1147
      %1149 = vmatmul.f32.gmra.mxu0 %v1035
      %v1150 = vpop.f32.mrf.mxu0
      %v1151 = vadd.f32 0.0, %v1150
      %1152 = vmatmul.f32.gmra.mxu0 %v1038
      %v1153 = vpop.f32.mrf.mxu0
      %v1154 = vadd.f32 0.0, %v1153
      %1155 = vmatmul.f32.gmra.mxu0 %v1041
      %v1156 = vpop.f32.mrf.mxu0
      %v1157 = vadd.f32 0.0, %v1156
      %1158 = vmatmul.f32.gmra.mxu0 %v1044
      %v1159 = vpop.f32.mrf.mxu0
      %v1160 = vadd.f32 0.0, %v1159
      %1161 = vmatmul.f32.gmra.mxu0 %v1047
      %v1162 = vpop.f32.mrf.mxu0
      %v1163 = vadd.f32 0.0, %v1162
      %1164 = vmatmul.f32.gmra.mxu0 %v1050
      %v1165 = vpop.f32.mrf.mxu0
      %v1166 = vadd.f32 0.0, %v1165
      %1167 = vmatmul.f32.gmra.mxu0 %v1053
      %v1168 = vpop.f32.mrf.mxu0
      %v1169 = vadd.f32 0.0, %v1168
      %1170 = vmatmul.f32.gmra.mxu0 %v1056
      %v1171 = vpop.f32.mrf.mxu0
      %v1172 = vadd.f32 0.0, %v1171
      %1173 = vmatmul.f32.gmra.mxu0 %v1059
      %v1174 = vpop.f32.mrf.mxu0
      %v1175 = vadd.f32 0.0, %v1174
      %1176 = vmatmul.f32.gmra.mxu0 %v1062
      %v1177 = vpop.f32.mrf.mxu0
      %v1178 = vadd.f32 0.0, %v1177
      %1179 = vmatmul.f32.gmra.mxu0 %v1065
      %v1180 = vpop.f32.mrf.mxu0
      %v1181 = vadd.f32 0.0, %v1180
      %1182 = vmatmul.f32.gmra.mxu0 %v1068
      %v1183 = vpop.f32.mrf.mxu0
      %v1184 = vadd.f32 0.0, %v1183
      %1185 = vmatmul.f32.gmra.mxu0 %v1071
      %v1186 = vpop.f32.mrf.mxu0
      %v1187 = vadd.f32 0.0, %v1186
      %1188 = vdwg.mxu0
      %v1189 = vadd.f32 %v911, %v1094
      %v1190 = vadd.f32 %v912, %v1097
      %v1191 = vadd.f32 %v913, %v1100
      %v1192 = vadd.f32 %v914, %v1103
      %v1193 = vadd.f32 %v915, %v1106
      %v1194 = vadd.f32 %v916, %v1109
      %v1195 = vadd.f32 %v917, %v1112
      %v1196 = vadd.f32 %v918, %v1115
      %v1197 = vadd.f32 %v919, %v1118
      %v1198 = vadd.f32 %v920, %v1121
      %v1199 = vadd.f32 %v921, %v1124
      %v1200 = vadd.f32 %v922, %v1127
      %v1201 = vadd.f32 %v923, %v1130
      %v1202 = vadd.f32 %v924, %v1133
      %v1203 = vadd.f32 %v925, %v1136
      %v1204 = vadd.f32 %v926, %v1139
      %v1205 = vadd.f32 %v927, %v1142
      %v1206 = vadd.f32 %v928, %v1145
      %v1207 = vadd.f32 %v929, %v1148
      %v1208 = vadd.f32 %v930, %v1151
      %v1209 = vadd.f32 %v931, %v1154
      %v1210 = vadd.f32 %v932, %v1157
      %v1211 = vadd.f32 %v933, %v1160
      %v1212 = vadd.f32 %v934, %v1163
      %v1213 = vadd.f32 %v935, %v1166
      %v1214 = vadd.f32 %v936, %v1169
      %v1215 = vadd.f32 %v937, %v1172
      %v1216 = vadd.f32 %v938, %v1175
      %v1217 = vadd.f32 %v939, %v1178
      %v1218 = vadd.f32 %v940, %v1181
      %v1219 = vadd.f32 %v941, %v1184
      %v1220 = vadd.f32 %v942, %v1187
      %s1221 = scalar_lea.vmem %s1, 16
      %v1222 = vld [vmem:[%s1221] sm:$0xf]
      %v1224 = vsel %vm335, %v1222, 0
      %1226 = vmatpush.msra.mxu0 0.0
      %1227 = vmatpush.msra.mxu0 0.0
      %1228 = vmatpush.msra.mxu0 0.0
      %1229 = vmatpush.msra.mxu0 0.0
      %1230 = vmatpush.msra.mxu0 0.0
      %1231 = vmatpush.msra.mxu0 0.0
      %1232 = vmatpush.msra.mxu0 0.0
      %1233 = vmatpush.msra.mxu0 0.0
      %1234 = vmatpush.msra.mxu0 0.0
      %1235 = vmatpush.msra.mxu0 0.0
      %1236 = vmatpush.msra.mxu0 0.0
      %1237 = vmatpush.msra.mxu0 0.0
      %1238 = vmatpush.msra.mxu0 0.0
      %1239 = vmatpush.msra.mxu0 0.0
      %1240 = vmatpush.msra.mxu0 0.0
      %1241 = vmatpush.msra.mxu0 %v1224
      %1242 = vmatmul.f32.gmra.mxu0 %v240
      %v1243 = vpop.f32.mrf.mxu0
      %v1244 = vadd.f32 0.0, %v1243
      %1245 = vmatmul.f32.gmra.mxu0 %v243
      %v1246 = vpop.f32.mrf.mxu0
      %v1247 = vadd.f32 0.0, %v1246
      %1248 = vmatmul.f32.gmra.mxu0 %v246
      %v1249 = vpop.f32.mrf.mxu0
      %v1250 = vadd.f32 0.0, %v1249
      %1251 = vmatmul.f32.gmra.mxu0 %v249
      %v1252 = vpop.f32.mrf.mxu0
      %v1253 = vadd.f32 0.0, %v1252
      %1254 = vmatmul.f32.gmra.mxu0 %v252
      %v1255 = vpop.f32.mrf.mxu0
      %v1256 = vadd.f32 0.0, %v1255
      %1257 = vmatmul.f32.gmra.mxu0 %v255
      %v1258 = vpop.f32.mrf.mxu0
      %v1259 = vadd.f32 0.0, %v1258
      %1260 = vmatmul.f32.gmra.mxu0 %v258
      %v1261 = vpop.f32.mrf.mxu0
      %v1262 = vadd.f32 0.0, %v1261
      %1263 = vmatmul.f32.gmra.mxu0 %v261
      %v1264 = vpop.f32.mrf.mxu0
      %v1265 = vadd.f32 0.0, %v1264
      %1266 = vmatmul.f32.gmra.mxu0 %v264
      %v1267 = vpop.f32.mrf.mxu0
      %v1268 = vadd.f32 0.0, %v1267
      %1269 = vmatmul.f32.gmra.mxu0 %v267
      %v1270 = vpop.f32.mrf.mxu0
      %v1271 = vadd.f32 0.0, %v1270
      %1272 = vmatmul.f32.gmra.mxu0 %v270
      %v1273 = vpop.f32.mrf.mxu0
      %v1274 = vadd.f32 0.0, %v1273
      %1275 = vmatmul.f32.gmra.mxu0 %v273
      %v1276 = vpop.f32.mrf.mxu0
      %v1277 = vadd.f32 0.0, %v1276
      %1278 = vmatmul.f32.gmra.mxu0 %v276
      %v1279 = vpop.f32.mrf.mxu0
      %v1280 = vadd.f32 0.0, %v1279
      %1281 = vmatmul.f32.gmra.mxu0 %v279
      %v1282 = vpop.f32.mrf.mxu0
      %v1283 = vadd.f32 0.0, %v1282
      %1284 = vmatmul.f32.gmra.mxu0 %v282
      %v1285 = vpop.f32.mrf.mxu0
      %v1286 = vadd.f32 0.0, %v1285
      %1287 = vmatmul.f32.gmra.mxu0 %v285
      %v1288 = vpop.f32.mrf.mxu0
      %v1289 = vadd.f32 0.0, %v1288
      %1290 = vmatmul.f32.gmra.mxu0 %v288
      %v1291 = vpop.f32.mrf.mxu0
      %v1292 = vadd.f32 0.0, %v1291
      %1293 = vmatmul.f32.gmra.mxu0 %v291
      %v1294 = vpop.f32.mrf.mxu0
      %v1295 = vadd.f32 0.0, %v1294
      %1296 = vmatmul.f32.gmra.mxu0 %v294
      %v1297 = vpop.f32.mrf.mxu0
      %v1298 = vadd.f32 0.0, %v1297
      %1299 = vmatmul.f32.gmra.mxu0 %v297
      %v1300 = vpop.f32.mrf.mxu0
      %v1301 = vadd.f32 0.0, %v1300
      %1302 = vmatmul.f32.gmra.mxu0 %v300
      %v1303 = vpop.f32.mrf.mxu0
      %v1304 = vadd.f32 0.0, %v1303
      %1305 = vmatmul.f32.gmra.mxu0 %v303
      %v1306 = vpop.f32.mrf.mxu0
      %v1307 = vadd.f32 0.0, %v1306
      %1308 = vmatmul.f32.gmra.mxu0 %v306
      %v1309 = vpop.f32.mrf.mxu0
      %v1310 = vadd.f32 0.0, %v1309
      %1311 = vmatmul.f32.gmra.mxu0 %v309
      %v1312 = vpop.f32.mrf.mxu0
      %v1313 = vadd.f32 0.0, %v1312
      %1314 = vmatmul.f32.gmra.mxu0 %v312
      %v1315 = vpop.f32.mrf.mxu0
      %v1316 = vadd.f32 0.0, %v1315
      %1317 = vmatmul.f32.gmra.mxu0 %v315
      %v1318 = vpop.f32.mrf.mxu0
      %v1319 = vadd.f32 0.0, %v1318
      %1320 = vmatmul.f32.gmra.mxu0 %v318
      %v1321 = vpop.f32.mrf.mxu0
      %v1322 = vadd.f32 0.0, %v1321
      %1323 = vmatmul.f32.gmra.mxu0 %v321
      %v1324 = vpop.f32.mrf.mxu0
      %v1325 = vadd.f32 0.0, %v1324
      %1326 = vmatmul.f32.gmra.mxu0 %v324
      %v1327 = vpop.f32.mrf.mxu0
      %v1328 = vadd.f32 0.0, %v1327
      %1329 = vmatmul.f32.gmra.mxu0 %v327
      %v1330 = vpop.f32.mrf.mxu0
      %v1331 = vadd.f32 0.0, %v1330
      %1332 = vmatmul.f32.gmra.mxu0 %v330
      %v1333 = vpop.f32.mrf.mxu0
      %v1334 = vadd.f32 0.0, %v1333
      %1335 = vmatmul.f32.gmra.mxu0 %v333
      %v1336 = vpop.f32.mrf.mxu0
      %v1337 = vadd.f32 0.0, %v1336
      %1338 = vdwg.mxu0
      %v1339 = vadd.f32 %v1189, %v1244
      %v1340 = vadd.f32 %v1190, %v1247
      %v1341 = vadd.f32 %v1191, %v1250
      %v1342 = vadd.f32 %v1192, %v1253
      %v1343 = vadd.f32 %v1193, %v1256
      %v1344 = vadd.f32 %v1194, %v1259
      %v1345 = vadd.f32 %v1195, %v1262
      %v1346 = vadd.f32 %v1196, %v1265
      %v1347 = vadd.f32 %v1197, %v1268
      %v1348 = vadd.f32 %v1198, %v1271
      %v1349 = vadd.f32 %v1199, %v1274
      %v1350 = vadd.f32 %v1200, %v1277
      %v1351 = vadd.f32 %v1201, %v1280
      %v1352 = vadd.f32 %v1202, %v1283
      %v1353 = vadd.f32 %v1203, %v1286
      %v1354 = vadd.f32 %v1204, %v1289
      %v1355 = vadd.f32 %v1205, %v1292
      %v1356 = vadd.f32 %v1206, %v1295
      %v1357 = vadd.f32 %v1207, %v1298
      %v1358 = vadd.f32 %v1208, %v1301
      %v1359 = vadd.f32 %v1209, %v1304
      %v1360 = vadd.f32 %v1210, %v1307
      %v1361 = vadd.f32 %v1211, %v1310
      %v1362 = vadd.f32 %v1212, %v1313
      %v1363 = vadd.f32 %v1213, %v1316
      %v1364 = vadd.f32 %v1214, %v1319
      %v1365 = vadd.f32 %v1215, %v1322
      %v1366 = vadd.f32 %v1216, %v1325
      %v1367 = vadd.f32 %v1217, %v1328
      %v1368 = vadd.f32 %v1218, %v1331
      %v1369 = vadd.f32 %v1219, %v1334
      %v1370 = vadd.f32 %v1220, %v1337
      %v1371 = vld [vmem:[%s165 + $0x2] sm:$0xff]
      %v1372 = vld [vmem:[%s165 + $0xa] sm:$0xff]
      %v1373 = vld [vmem:[%s165 + $0x1a] sm:$0xff]
      %v1374 = vld [vmem:[%s165 + $0x22] sm:$0xff]
      %v1375 = vld [vmem:[%s165 + $0x32] sm:$0xff]
      %v1376 = vld [vmem:[%s165 + $0x3a] sm:$0xff]
      %v1377 = vld [vmem:[%s165 + $0x4a] sm:$0xff]
      %v1378 = vld [vmem:[%s165 + $0x52] sm:$0xff]
      %v1379 = vld [vmem:[%s165 + $0x62] sm:$0xff]
      %v1380 = vld [vmem:[%s165 + $0x6a] sm:$0xff]
      %v1381 = vld [vmem:[%s165 + $0x7a] sm:$0xff]
      %v1382 = vld [vmem:[%s165 + $0x82] sm:$0xff]
      %v1383 = vld [vmem:[%s165 + $0x92] sm:$0xff]
      %v1384 = vld [vmem:[%s165 + $0x9a] sm:$0xff]
      %v1385 = vld [vmem:[%s165 + $0xaa] sm:$0xff]
      %v1386 = vld [vmem:[%s165 + $0xb2] sm:$0xff]
      %v1387 = vld [vmem:[%s165 + $0xc2] sm:$0xff]
      %v1388 = vld [vmem:[%s165 + $0xca] sm:$0xff]
      %v1389 = vld [vmem:[%s165 + $0xda] sm:$0xff]
      %v1390 = vld [vmem:[%s165 + $0xe2] sm:$0xff]
      %v1391 = vld [vmem:[%s165 + $0xf2] sm:$0xff]
      %v1392 = vld [vmem:[%s165 + $0xfa] sm:$0xff]
      %v1393 = vld [vmem:[%s165 + $0x10a] sm:$0xff]
      %v1394 = vld [vmem:[%s165 + $0x112] sm:$0xff]
      %v1395 = vld [vmem:[%s165 + $0x122] sm:$0xff]
      %v1396 = vld [vmem:[%s165 + $0x12a] sm:$0xff]
      %v1397 = vld [vmem:[%s165 + $0x13a] sm:$0xff]
      %v1398 = vld [vmem:[%s165 + $0x142] sm:$0xff]
      %v1399 = vld [vmem:[%s165 + $0x152] sm:$0xff]
      %v1400 = vld [vmem:[%s165 + $0x15a] sm:$0xff]
      %v1401 = vld [vmem:[%s165 + $0x16a] sm:$0xff]
      %v1402 = vld [vmem:[%s165 + $0x172] sm:$0xff]
      %s1403 = scalar_lea.vmem %s1, 20
      %v1404 = vld [vmem:[%s1403] sm:$0xf]
      %v1406 = vsel %vm238, %v1371, 0
      %v1409 = vsel %vm238, %v1372, 0
      %v1412 = vsel %vm238, %v1373, 0
      %v1415 = vsel %vm238, %v1374, 0
      %v1418 = vsel %vm238, %v1375, 0
      %v1421 = vsel %vm238, %v1376, 0
      %v1424 = vsel %vm238, %v1377, 0
      %v1427 = vsel %vm238, %v1378, 0
      %v1430 = vsel %vm238, %v1379, 0
      %v1433 = vsel %vm238, %v1380, 0
      %v1436 = vsel %vm238, %v1381, 0
      %v1439 = vsel %vm238, %v1382, 0
      %v1442 = vsel %vm238, %v1383, 0
      %v1445 = vsel %vm238, %v1384, 0
      %v1448 = vsel %vm238, %v1385, 0
      %v1451 = vsel %vm238, %v1386, 0
      %v1454 = vsel %vm238, %v1387, 0
      %v1457 = vsel %vm238, %v1388, 0
      %v1460 = vsel %vm238, %v1389, 0
      %v1463 = vsel %vm238, %v1390, 0
      %v1466 = vsel %vm238, %v1391, 0
      %v1469 = vsel %vm238, %v1392, 0
      %v1472 = vsel %vm238, %v1393, 0
      %v1475 = vsel %vm238, %v1394, 0
      %v1478 = vsel %vm238, %v1395, 0
      %v1481 = vsel %vm238, %v1396, 0
      %v1484 = vsel %vm238, %v1397, 0
      %v1487 = vsel %vm238, %v1398, 0
      %v1490 = vsel %vm238, %v1399, 0
      %v1493 = vsel %vm238, %v1400, 0
      %v1496 = vsel %vm238, %v1401, 0
      %v1499 = vsel %vm238, %v1402, 0
      %v1502 = vsel %vm335, %v1404, 0
      %1504 = vmatpush.msra.mxu0 0.0
      %1505 = vmatpush.msra.mxu0 0.0
      %1506 = vmatpush.msra.mxu0 0.0
      %1507 = vmatpush.msra.mxu0 0.0
      %1508 = vmatpush.msra.mxu0 0.0
      %1509 = vmatpush.msra.mxu0 0.0
      %1510 = vmatpush.msra.mxu0 0.0
      %1511 = vmatpush.msra.mxu0 0.0
      %1512 = vmatpush.msra.mxu0 0.0
      %1513 = vmatpush.msra.mxu0 0.0
      %1514 = vmatpush.msra.mxu0 0.0
      %1515 = vmatpush.msra.mxu0 0.0
      %1516 = vmatpush.msra.mxu0 0.0
      %1517 = vmatpush.msra.mxu0 0.0
      %1518 = vmatpush.msra.mxu0 0.0
      %1519 = vmatpush.msra.mxu0 %v1502
      %1520 = vmatmul.f32.gmra.mxu0 %v1406
      %v1521 = vpop.f32.mrf.mxu0
      %v1522 = vadd.f32 0.0, %v1521
      %1523 = vmatmul.f32.gmra.mxu0 %v1409
      %v1524 = vpop.f32.mrf.mxu0
      %v1525 = vadd.f32 0.0, %v1524
      %1526 = vmatmul.f32.gmra.mxu0 %v1412
      %v1527 = vpop.f32.mrf.mxu0
      %v1528 = vadd.f32 0.0, %v1527
      %1529 = vmatmul.f32.gmra.mxu0 %v1415
      %v1530 = vpop.f32.mrf.mxu0
      %v1531 = vadd.f32 0.0, %v1530
      %1532 = vmatmul.f32.gmra.mxu0 %v1418
      %v1533 = vpop.f32.mrf.mxu0
      %v1534 = vadd.f32 0.0, %v1533
      %1535 = vmatmul.f32.gmra.mxu0 %v1421
      %v1536 = vpop.f32.mrf.mxu0
      %v1537 = vadd.f32 0.0, %v1536
      %1538 = vmatmul.f32.gmra.mxu0 %v1424
      %v1539 = vpop.f32.mrf.mxu0
      %v1540 = vadd.f32 0.0, %v1539
      %1541 = vmatmul.f32.gmra.mxu0 %v1427
      %v1542 = vpop.f32.mrf.mxu0
      %v1543 = vadd.f32 0.0, %v1542
      %1544 = vmatmul.f32.gmra.mxu0 %v1430
      %v1545 = vpop.f32.mrf.mxu0
      %v1546 = vadd.f32 0.0, %v1545
      %1547 = vmatmul.f32.gmra.mxu0 %v1433
      %v1548 = vpop.f32.mrf.mxu0
      %v1549 = vadd.f32 0.0, %v1548
      %1550 = vmatmul.f32.gmra.mxu0 %v1436
      %v1551 = vpop.f32.mrf.mxu0
      %v1552 = vadd.f32 0.0, %v1551
      %1553 = vmatmul.f32.gmra.mxu0 %v1439
      %v1554 = vpop.f32.mrf.mxu0
      %v1555 = vadd.f32 0.0, %v1554
      %1556 = vmatmul.f32.gmra.mxu0 %v1442
      %v1557 = vpop.f32.mrf.mxu0
      %v1558 = vadd.f32 0.0, %v1557
      %1559 = vmatmul.f32.gmra.mxu0 %v1445
      %v1560 = vpop.f32.mrf.mxu0
      %v1561 = vadd.f32 0.0, %v1560
      %1562 = vmatmul.f32.gmra.mxu0 %v1448
      %v1563 = vpop.f32.mrf.mxu0
      %v1564 = vadd.f32 0.0, %v1563
      %1565 = vmatmul.f32.gmra.mxu0 %v1451
      %v1566 = vpop.f32.mrf.mxu0
      %v1567 = vadd.f32 0.0, %v1566
      %1568 = vmatmul.f32.gmra.mxu0 %v1454
      %v1569 = vpop.f32.mrf.mxu0
      %v1570 = vadd.f32 0.0, %v1569
      %1571 = vmatmul.f32.gmra.mxu0 %v1457
      %v1572 = vpop.f32.mrf.mxu0
      %v1573 = vadd.f32 0.0, %v1572
      %1574 = vmatmul.f32.gmra.mxu0 %v1460
      %v1575 = vpop.f32.mrf.mxu0
      %v1576 = vadd.f32 0.0, %v1575
      %1577 = vmatmul.f32.gmra.mxu0 %v1463
      %v1578 = vpop.f32.mrf.mxu0
      %v1579 = vadd.f32 0.0, %v1578
      %1580 = vmatmul.f32.gmra.mxu0 %v1466
      %v1581 = vpop.f32.mrf.mxu0
      %v1582 = vadd.f32 0.0, %v1581
      %1583 = vmatmul.f32.gmra.mxu0 %v1469
      %v1584 = vpop.f32.mrf.mxu0
      %v1585 = vadd.f32 0.0, %v1584
      %1586 = vmatmul.f32.gmra.mxu0 %v1472
      %v1587 = vpop.f32.mrf.mxu0
      %v1588 = vadd.f32 0.0, %v1587
      %1589 = vmatmul.f32.gmra.mxu0 %v1475
      %v1590 = vpop.f32.mrf.mxu0
      %v1591 = vadd.f32 0.0, %v1590
      %1592 = vmatmul.f32.gmra.mxu0 %v1478
      %v1593 = vpop.f32.mrf.mxu0
      %v1594 = vadd.f32 0.0, %v1593
      %1595 = vmatmul.f32.gmra.mxu0 %v1481
      %v1596 = vpop.f32.mrf.mxu0
      %v1597 = vadd.f32 0.0, %v1596
      %1598 = vmatmul.f32.gmra.mxu0 %v1484
      %v1599 = vpop.f32.mrf.mxu0
      %v1600 = vadd.f32 0.0, %v1599
      %1601 = vmatmul.f32.gmra.mxu0 %v1487
      %v1602 = vpop.f32.mrf.mxu0
      %v1603 = vadd.f32 0.0, %v1602
      %1604 = vmatmul.f32.gmra.mxu0 %v1490
      %v1605 = vpop.f32.mrf.mxu0
      %v1606 = vadd.f32 0.0, %v1605
      %1607 = vmatmul.f32.gmra.mxu0 %v1493
      %v1608 = vpop.f32.mrf.mxu0
      %v1609 = vadd.f32 0.0, %v1608
      %1610 = vmatmul.f32.gmra.mxu0 %v1496
      %v1611 = vpop.f32.mrf.mxu0
      %v1612 = vadd.f32 0.0, %v1611
      %1613 = vmatmul.f32.gmra.mxu0 %v1499
      %v1614 = vpop.f32.mrf.mxu0
      %v1615 = vadd.f32 0.0, %v1614
      %1616 = vdwg.mxu0
      %v1617 = vadd.f32 %v1339, %v1522
      %v1618 = vadd.f32 %v1340, %v1525
      %v1619 = vadd.f32 %v1341, %v1528
      %v1620 = vadd.f32 %v1342, %v1531
      %v1621 = vadd.f32 %v1343, %v1534
      %v1622 = vadd.f32 %v1344, %v1537
      %v1623 = vadd.f32 %v1345, %v1540
      %v1624 = vadd.f32 %v1346, %v1543
      %v1625 = vadd.f32 %v1347, %v1546
      %v1626 = vadd.f32 %v1348, %v1549
      %v1627 = vadd.f32 %v1349, %v1552
      %v1628 = vadd.f32 %v1350, %v1555
      %v1629 = vadd.f32 %v1351, %v1558
      %v1630 = vadd.f32 %v1352, %v1561
      %v1631 = vadd.f32 %v1353, %v1564
      %v1632 = vadd.f32 %v1354, %v1567
      %v1633 = vadd.f32 %v1355, %v1570
      %v1634 = vadd.f32 %v1356, %v1573
      %v1635 = vadd.f32 %v1357, %v1576
      %v1636 = vadd.f32 %v1358, %v1579
      %v1637 = vadd.f32 %v1359, %v1582
      %v1638 = vadd.f32 %v1360, %v1585
      %v1639 = vadd.f32 %v1361, %v1588
      %v1640 = vadd.f32 %v1362, %v1591
      %v1641 = vadd.f32 %v1363, %v1594
      %v1642 = vadd.f32 %v1364, %v1597
      %v1643 = vadd.f32 %v1365, %v1600
      %v1644 = vadd.f32 %v1366, %v1603
      %v1645 = vadd.f32 %v1367, %v1606
      %v1646 = vadd.f32 %v1368, %v1609
      %v1647 = vadd.f32 %v1369, %v1612
      %v1648 = vadd.f32 %v1370, %v1615
      %s1649 = scalar_lea.vmem %s1, 24
      %v1650 = vld [vmem:[%s1649] sm:$0xf]
      %v1652 = vsel %vm335, %v1650, 0
      %1654 = vmatpush.msra.mxu0 0.0
      %1655 = vmatpush.msra.mxu0 0.0
      %1656 = vmatpush.msra.mxu0 0.0
      %1657 = vmatpush.msra.mxu0 0.0
      %1658 = vmatpush.msra.mxu0 0.0
      %1659 = vmatpush.msra.mxu0 0.0
      %1660 = vmatpush.msra.mxu0 0.0
      %1661 = vmatpush.msra.mxu0 0.0
      %1662 = vmatpush.msra.mxu0 0.0
      %1663 = vmatpush.msra.mxu0 0.0
      %1664 = vmatpush.msra.mxu0 0.0
      %1665 = vmatpush.msra.mxu0 0.0
      %1666 = vmatpush.msra.mxu0 0.0
      %1667 = vmatpush.msra.mxu0 0.0
      %1668 = vmatpush.msra.mxu0 0.0
      %1669 = vmatpush.msra.mxu0 %v1652
      %1670 = vmatmul.f32.gmra.mxu0 %v978
      %v1671 = vpop.f32.mrf.mxu0
      %v1672 = vadd.f32 0.0, %v1671
      %1673 = vmatmul.f32.gmra.mxu0 %v981
      %v1674 = vpop.f32.mrf.mxu0
      %v1675 = vadd.f32 0.0, %v1674
      %1676 = vmatmul.f32.gmra.mxu0 %v984
      %v1677 = vpop.f32.mrf.mxu0
      %v1678 = vadd.f32 0.0, %v1677
      %1679 = vmatmul.f32.gmra.mxu0 %v987
      %v1680 = vpop.f32.mrf.mxu0
      %v1681 = vadd.f32 0.0, %v1680
      %1682 = vmatmul.f32.gmra.mxu0 %v990
      %v1683 = vpop.f32.mrf.mxu0
      %v1684 = vadd.f32 0.0, %v1683
      %1685 = vmatmul.f32.gmra.mxu0 %v993
      %v1686 = vpop.f32.mrf.mxu0
      %v1687 = vadd.f32 0.0, %v1686
      %1688 = vmatmul.f32.gmra.mxu0 %v996
      %v1689 = vpop.f32.mrf.mxu0
      %v1690 = vadd.f32 0.0, %v1689
      %1691 = vmatmul.f32.gmra.mxu0 %v999
      %v1692 = vpop.f32.mrf.mxu0
      %v1693 = vadd.f32 0.0, %v1692
      %1694 = vmatmul.f32.gmra.mxu0 %v1002
      %v1695 = vpop.f32.mrf.mxu0
      %v1696 = vadd.f32 0.0, %v1695
      %1697 = vmatmul.f32.gmra.mxu0 %v1005
      %v1698 = vpop.f32.mrf.mxu0
      %v1699 = vadd.f32 0.0, %v1698
      %1700 = vmatmul.f32.gmra.mxu0 %v1008
      %v1701 = vpop.f32.mrf.mxu0
      %v1702 = vadd.f32 0.0, %v1701
      %1703 = vmatmul.f32.gmra.mxu0 %v1011
      %v1704 = vpop.f32.mrf.mxu0
      %v1705 = vadd.f32 0.0, %v1704
      %1706 = vmatmul.f32.gmra.mxu0 %v1014
      %v1707 = vpop.f32.mrf.mxu0
      %v1708 = vadd.f32 0.0, %v1707
      %1709 = vmatmul.f32.gmra.mxu0 %v1017
      %v1710 = vpop.f32.mrf.mxu0
      %v1711 = vadd.f32 0.0, %v1710
      %1712 = vmatmul.f32.gmra.mxu0 %v1020
      %v1713 = vpop.f32.mrf.mxu0
      %v1714 = vadd.f32 0.0, %v1713
      %1715 = vmatmul.f32.gmra.mxu0 %v1023
      %v1716 = vpop.f32.mrf.mxu0
      %v1717 = vadd.f32 0.0, %v1716
      %1718 = vmatmul.f32.gmra.mxu0 %v1026
      %v1719 = vpop.f32.mrf.mxu0
      %v1720 = vadd.f32 0.0, %v1719
      %1721 = vmatmul.f32.gmra.mxu0 %v1029
      %v1722 = vpop.f32.mrf.mxu0
      %v1723 = vadd.f32 0.0, %v1722
      %1724 = vmatmul.f32.gmra.mxu0 %v1032
      %v1725 = vpop.f32.mrf.mxu0
      %v1726 = vadd.f32 0.0, %v1725
      %1727 = vmatmul.f32.gmra.mxu0 %v1035
      %v1728 = vpop.f32.mrf.mxu0
      %v1729 = vadd.f32 0.0, %v1728
      %1730 = vmatmul.f32.gmra.mxu0 %v1038
      %v1731 = vpop.f32.mrf.mxu0
      %v1732 = vadd.f32 0.0, %v1731
      %1733 = vmatmul.f32.gmra.mxu0 %v1041
      %v1734 = vpop.f32.mrf.mxu0
      %v1735 = vadd.f32 0.0, %v1734
      %1736 = vmatmul.f32.gmra.mxu0 %v1044
      %v1737 = vpop.f32.mrf.mxu0
      %v1738 = vadd.f32 0.0, %v1737
      %1739 = vmatmul.f32.gmra.mxu0 %v1047
      %v1740 = vpop.f32.mrf.mxu0
      %v1741 = vadd.f32 0.0, %v1740
      %1742 = vmatmul.f32.gmra.mxu0 %v1050
      %v1743 = vpop.f32.mrf.mxu0
      %v1744 = vadd.f32 0.0, %v1743
      %1745 = vmatmul.f32.gmra.mxu0 %v1053
      %v1746 = vpop.f32.mrf.mxu0
      %v1747 = vadd.f32 0.0, %v1746
      %1748 = vmatmul.f32.gmra.mxu0 %v1056
      %v1749 = vpop.f32.mrf.mxu0
      %v1750 = vadd.f32 0.0, %v1749
      %1751 = vmatmul.f32.gmra.mxu0 %v1059
      %v1752 = vpop.f32.mrf.mxu0
      %v1753 = vadd.f32 0.0, %v1752
      %1754 = vmatmul.f32.gmra.mxu0 %v1062
      %v1755 = vpop.f32.mrf.mxu0
      %v1756 = vadd.f32 0.0, %v1755
      %1757 = vmatmul.f32.gmra.mxu0 %v1065
      %v1758 = vpop.f32.mrf.mxu0
      %v1759 = vadd.f32 0.0, %v1758
      %1760 = vmatmul.f32.gmra.mxu0 %v1068
      %v1761 = vpop.f32.mrf.mxu0
      %v1762 = vadd.f32 0.0, %v1761
      %1763 = vmatmul.f32.gmra.mxu0 %v1071
      %v1764 = vpop.f32.mrf.mxu0
      %v1765 = vadd.f32 0.0, %v1764
      %1766 = vdwg.mxu0
      %v1767 = vadd.f32 %v1617, %v1672
      %v1768 = vadd.f32 %v1618, %v1675
      %v1769 = vadd.f32 %v1619, %v1678
      %v1770 = vadd.f32 %v1620, %v1681
      %v1771 = vadd.f32 %v1621, %v1684
      %v1772 = vadd.f32 %v1622, %v1687
      %v1773 = vadd.f32 %v1623, %v1690
      %v1774 = vadd.f32 %v1624, %v1693
      %v1775 = vadd.f32 %v1625, %v1696
      %v1776 = vadd.f32 %v1626, %v1699
      %v1777 = vadd.f32 %v1627, %v1702
      %v1778 = vadd.f32 %v1628, %v1705
      %v1779 = vadd.f32 %v1629, %v1708
      %v1780 = vadd.f32 %v1630, %v1711
      %v1781 = vadd.f32 %v1631, %v1714
      %v1782 = vadd.f32 %v1632, %v1717
      %v1783 = vadd.f32 %v1633, %v1720
      %v1784 = vadd.f32 %v1634, %v1723
      %v1785 = vadd.f32 %v1635, %v1726
      %v1786 = vadd.f32 %v1636, %v1729
      %v1787 = vadd.f32 %v1637, %v1732
      %v1788 = vadd.f32 %v1638, %v1735
      %v1789 = vadd.f32 %v1639, %v1738
      %v1790 = vadd.f32 %v1640, %v1741
      %v1791 = vadd.f32 %v1641, %v1744
      %v1792 = vadd.f32 %v1642, %v1747
      %v1793 = vadd.f32 %v1643, %v1750
      %v1794 = vadd.f32 %v1644, %v1753
      %v1795 = vadd.f32 %v1645, %v1756
      %v1796 = vadd.f32 %v1646, %v1759
      %v1797 = vadd.f32 %v1647, %v1762
      %v1798 = vadd.f32 %v1648, %v1765
      %v1799 = vld [vmem:[%s664 + $0x2] sm:$0xff]
      %v1800 = vld [vmem:[%s664 + $0xa] sm:$0xff]
      %v1801 = vld [vmem:[%s664 + $0x1a] sm:$0xff]
      %v1802 = vld [vmem:[%s664 + $0x22] sm:$0xff]
      %v1803 = vld [vmem:[%s664 + $0x32] sm:$0xff]
      %v1804 = vld [vmem:[%s664 + $0x3a] sm:$0xff]
      %v1805 = vld [vmem:[%s664 + $0x4a] sm:$0xff]
      %v1806 = vld [vmem:[%s664 + $0x52] sm:$0xff]
      %v1807 = vld [vmem:[%s664 + $0x62] sm:$0xff]
      %v1808 = vld [vmem:[%s664 + $0x6a] sm:$0xff]
      %v1809 = vld [vmem:[%s664 + $0x7a] sm:$0xff]
      %v1810 = vld [vmem:[%s664 + $0x82] sm:$0xff]
      %v1811 = vld [vmem:[%s664 + $0x92] sm:$0xff]
      %v1812 = vld [vmem:[%s664 + $0x9a] sm:$0xff]
      %v1813 = vld [vmem:[%s664 + $0xaa] sm:$0xff]
      %v1814 = vld [vmem:[%s664 + $0xb2] sm:$0xff]
      %v1815 = vld [vmem:[%s664 + $0xc2] sm:$0xff]
      %v1816 = vld [vmem:[%s664 + $0xca] sm:$0xff]
      %v1817 = vld [vmem:[%s664 + $0xda] sm:$0xff]
      %v1818 = vld [vmem:[%s664 + $0xe2] sm:$0xff]
      %v1819 = vld [vmem:[%s664 + $0xf2] sm:$0xff]
      %v1820 = vld [vmem:[%s664 + $0xfa] sm:$0xff]
      %v1821 = vld [vmem:[%s664 + $0x10a] sm:$0xff]
      %v1822 = vld [vmem:[%s664 + $0x112] sm:$0xff]
      %v1823 = vld [vmem:[%s664 + $0x122] sm:$0xff]
      %v1824 = vld [vmem:[%s664 + $0x12a] sm:$0xff]
      %v1825 = vld [vmem:[%s664 + $0x13a] sm:$0xff]
      %v1826 = vld [vmem:[%s664 + $0x142] sm:$0xff]
      %v1827 = vld [vmem:[%s664 + $0x152] sm:$0xff]
      %v1828 = vld [vmem:[%s664 + $0x15a] sm:$0xff]
      %v1829 = vld [vmem:[%s664 + $0x16a] sm:$0xff]
      %v1830 = vld [vmem:[%s664 + $0x172] sm:$0xff]
      %s1831 = scalar_lea.vmem %s1, 28
      %v1832 = vld [vmem:[%s1831] sm:$0xf]
      %v1834 = vsel %vm238, %v1799, 0
      %v1837 = vsel %vm238, %v1800, 0
      %v1840 = vsel %vm238, %v1801, 0
      %v1843 = vsel %vm238, %v1802, 0
      %v1846 = vsel %vm238, %v1803, 0
      %v1849 = vsel %vm238, %v1804, 0
      %v1852 = vsel %vm238, %v1805, 0
      %v1855 = vsel %vm238, %v1806, 0
      %v1858 = vsel %vm238, %v1807, 0
      %v1861 = vsel %vm238, %v1808, 0
      %v1864 = vsel %vm238, %v1809, 0
      %v1867 = vsel %vm238, %v1810, 0
      %v1870 = vsel %vm238, %v1811, 0
      %v1873 = vsel %vm238, %v1812, 0
      %v1876 = vsel %vm238, %v1813, 0
      %v1879 = vsel %vm238, %v1814, 0
      %v1882 = vsel %vm238, %v1815, 0
      %v1885 = vsel %vm238, %v1816, 0
      %v1888 = vsel %vm238, %v1817, 0
      %v1891 = vsel %vm238, %v1818, 0
      %v1894 = vsel %vm238, %v1819, 0
      %v1897 = vsel %vm238, %v1820, 0
      %v1900 = vsel %vm238, %v1821, 0
      %v1903 = vsel %vm238, %v1822, 0
      %v1906 = vsel %vm238, %v1823, 0
      %v1909 = vsel %vm238, %v1824, 0
      %v1912 = vsel %vm238, %v1825, 0
      %v1915 = vsel %vm238, %v1826, 0
      %v1918 = vsel %vm238, %v1827, 0
      %v1921 = vsel %vm238, %v1828, 0
      %v1924 = vsel %vm238, %v1829, 0
      %v1927 = vsel %vm238, %v1830, 0
      %v1930 = vsel %vm335, %v1832, 0
      %1932 = vmatpush.msra.mxu0 0.0
      %1933 = vmatpush.msra.mxu0 0.0
      %1934 = vmatpush.msra.mxu0 0.0
      %1935 = vmatpush.msra.mxu0 0.0
      %1936 = vmatpush.msra.mxu0 0.0
      %1937 = vmatpush.msra.mxu0 0.0
      %1938 = vmatpush.msra.mxu0 0.0
      %1939 = vmatpush.msra.mxu0 0.0
      %1940 = vmatpush.msra.mxu0 0.0
      %1941 = vmatpush.msra.mxu0 0.0
      %1942 = vmatpush.msra.mxu0 0.0
      %1943 = vmatpush.msra.mxu0 0.0
      %1944 = vmatpush.msra.mxu0 0.0
      %1945 = vmatpush.msra.mxu0 0.0
      %1946 = vmatpush.msra.mxu0 0.0
      %1947 = vmatpush.msra.mxu0 %v1930
      %1948 = vmatmul.f32.gmra.mxu0 %v1834
      %v1949 = vpop.f32.mrf.mxu0
      %v1950 = vadd.f32 0.0, %v1949
      %1951 = vmatmul.f32.gmra.mxu0 %v1837
      %v1952 = vpop.f32.mrf.mxu0
      %v1953 = vadd.f32 0.0, %v1952
      %1954 = vmatmul.f32.gmra.mxu0 %v1840
      %v1955 = vpop.f32.mrf.mxu0
      %v1956 = vadd.f32 0.0, %v1955
      %1957 = vmatmul.f32.gmra.mxu0 %v1843
      %v1958 = vpop.f32.mrf.mxu0
      %v1959 = vadd.f32 0.0, %v1958
      %1960 = vmatmul.f32.gmra.mxu0 %v1846
      %v1961 = vpop.f32.mrf.mxu0
      %v1962 = vadd.f32 0.0, %v1961
      %1963 = vmatmul.f32.gmra.mxu0 %v1849
      %v1964 = vpop.f32.mrf.mxu0
      %v1965 = vadd.f32 0.0, %v1964
      %1966 = vmatmul.f32.gmra.mxu0 %v1852
      %v1967 = vpop.f32.mrf.mxu0
      %v1968 = vadd.f32 0.0, %v1967
      %1969 = vmatmul.f32.gmra.mxu0 %v1855
      %v1970 = vpop.f32.mrf.mxu0
      %v1971 = vadd.f32 0.0, %v1970
      %1972 = vmatmul.f32.gmra.mxu0 %v1858
      %v1973 = vpop.f32.mrf.mxu0
      %v1974 = vadd.f32 0.0, %v1973
      %1975 = vmatmul.f32.gmra.mxu0 %v1861
      %v1976 = vpop.f32.mrf.mxu0
      %v1977 = vadd.f32 0.0, %v1976
      %1978 = vmatmul.f32.gmra.mxu0 %v1864
      %v1979 = vpop.f32.mrf.mxu0
      %v1980 = vadd.f32 0.0, %v1979
      %1981 = vmatmul.f32.gmra.mxu0 %v1867
      %v1982 = vpop.f32.mrf.mxu0
      %v1983 = vadd.f32 0.0, %v1982
      %1984 = vmatmul.f32.gmra.mxu0 %v1870
      %v1985 = vpop.f32.mrf.mxu0
      %v1986 = vadd.f32 0.0, %v1985
      %1987 = vmatmul.f32.gmra.mxu0 %v1873
      %v1988 = vpop.f32.mrf.mxu0
      %v1989 = vadd.f32 0.0, %v1988
      %1990 = vmatmul.f32.gmra.mxu0 %v1876
      %v1991 = vpop.f32.mrf.mxu0
      %v1992 = vadd.f32 0.0, %v1991
      %1993 = vmatmul.f32.gmra.mxu0 %v1879
      %v1994 = vpop.f32.mrf.mxu0
      %v1995 = vadd.f32 0.0, %v1994
      %1996 = vmatmul.f32.gmra.mxu0 %v1882
      %v1997 = vpop.f32.mrf.mxu0
      %v1998 = vadd.f32 0.0, %v1997
      %1999 = vmatmul.f32.gmra.mxu0 %v1885
      %v2000 = vpop.f32.mrf.mxu0
      %v2001 = vadd.f32 0.0, %v2000
      %2002 = vmatmul.f32.gmra.mxu0 %v1888
      %v2003 = vpop.f32.mrf.mxu0
      %v2004 = vadd.f32 0.0, %v2003
      %2005 = vmatmul.f32.gmra.mxu0 %v1891
      %v2006 = vpop.f32.mrf.mxu0
      %v2007 = vadd.f32 0.0, %v2006
      %2008 = vmatmul.f32.gmra.mxu0 %v1894
      %v2009 = vpop.f32.mrf.mxu0
      %v2010 = vadd.f32 0.0, %v2009
      %2011 = vmatmul.f32.gmra.mxu0 %v1897
      %v2012 = vpop.f32.mrf.mxu0
      %v2013 = vadd.f32 0.0, %v2012
      %2014 = vmatmul.f32.gmra.mxu0 %v1900
      %v2015 = vpop.f32.mrf.mxu0
      %v2016 = vadd.f32 0.0, %v2015
      %2017 = vmatmul.f32.gmra.mxu0 %v1903
      %v2018 = vpop.f32.mrf.mxu0
      %v2019 = vadd.f32 0.0, %v2018
      %2020 = vmatmul.f32.gmra.mxu0 %v1906
      %v2021 = vpop.f32.mrf.mxu0
      %v2022 = vadd.f32 0.0, %v2021
      %2023 = vmatmul.f32.gmra.mxu0 %v1909
      %v2024 = vpop.f32.mrf.mxu0
      %v2025 = vadd.f32 0.0, %v2024
      %2026 = vmatmul.f32.gmra.mxu0 %v1912
      %v2027 = vpop.f32.mrf.mxu0
      %v2028 = vadd.f32 0.0, %v2027
      %2029 = vmatmul.f32.gmra.mxu0 %v1915
      %v2030 = vpop.f32.mrf.mxu0
      %v2031 = vadd.f32 0.0, %v2030
      %2032 = vmatmul.f32.gmra.mxu0 %v1918
      %v2033 = vpop.f32.mrf.mxu0
      %v2034 = vadd.f32 0.0, %v2033
      %2035 = vmatmul.f32.gmra.mxu0 %v1921
      %v2036 = vpop.f32.mrf.mxu0
      %v2037 = vadd.f32 0.0, %v2036
      %2038 = vmatmul.f32.gmra.mxu0 %v1924
      %v2039 = vpop.f32.mrf.mxu0
      %v2040 = vadd.f32 0.0, %v2039
      %2041 = vmatmul.f32.gmra.mxu0 %v1927
      %v2042 = vpop.f32.mrf.mxu0
      %v2043 = vadd.f32 0.0, %v2042
      %2044 = vdwg.mxu0
      %v2045 = vadd.f32 %v1767, %v1950
      %v2046 = vadd.f32 %v1768, %v1953
      %v2047 = vadd.f32 %v1769, %v1956
      %v2048 = vadd.f32 %v1770, %v1959
      %v2049 = vadd.f32 %v1771, %v1962
      %v2050 = vadd.f32 %v1772, %v1965
      %v2051 = vadd.f32 %v1773, %v1968
      %v2052 = vadd.f32 %v1774, %v1971
      %v2053 = vadd.f32 %v1775, %v1974
      %v2054 = vadd.f32 %v1776, %v1977
      %v2055 = vadd.f32 %v1777, %v1980
      %v2056 = vadd.f32 %v1778, %v1983
      %v2057 = vadd.f32 %v1779, %v1986
      %v2058 = vadd.f32 %v1780, %v1989
      %v2059 = vadd.f32 %v1781, %v1992
      %v2060 = vadd.f32 %v1782, %v1995
      %v2061 = vadd.f32 %v1783, %v1998
      %v2062 = vadd.f32 %v1784, %v2001
      %v2063 = vadd.f32 %v1785, %v2004
      %v2064 = vadd.f32 %v1786, %v2007
      %v2065 = vadd.f32 %v1787, %v2010
      %v2066 = vadd.f32 %v1788, %v2013
      %v2067 = vadd.f32 %v1789, %v2016
      %v2068 = vadd.f32 %v1790, %v2019
      %v2069 = vadd.f32 %v1791, %v2022
      %v2070 = vadd.f32 %v1792, %v2025
      %v2071 = vadd.f32 %v1793, %v2028
      %v2072 = vadd.f32 %v1794, %v2031
      %v2073 = vadd.f32 %v1795, %v2034
      %v2074 = vadd.f32 %v1796, %v2037
      %v2075 = vadd.f32 %v1797, %v2040
      %v2076 = vadd.f32 %v1798, %v2043
      %v2077 = vld [vmem:[%s2] sm:$0x1]
      %v2079 = vperm.slane %v2077, 0
      %v2081 = vadd.f32 %v2045, %v2079
      %v2082 = vadd.f32 %v2046, %v2079
      %v2083 = vadd.f32 %v2047, %v2079
      %v2084 = vadd.f32 %v2048, %v2079
      %v2085 = vadd.f32 %v2049, %v2079
      %v2086 = vadd.f32 %v2050, %v2079
      %v2087 = vadd.f32 %v2051, %v2079
      %v2088 = vadd.f32 %v2052, %v2079
      %v2089 = vadd.f32 %v2053, %v2079
      %v2090 = vadd.f32 %v2054, %v2079
      %v2091 = vadd.f32 %v2055, %v2079
      %v2092 = vadd.f32 %v2056, %v2079
      %v2093 = vadd.f32 %v2057, %v2079
      %v2094 = vadd.f32 %v2058, %v2079
      %v2095 = vadd.f32 %v2059, %v2079
      %v2096 = vadd.f32 %v2060, %v2079
      %v2097 = vadd.f32 %v2061, %v2079
      %v2098 = vadd.f32 %v2062, %v2079
      %v2099 = vadd.f32 %v2063, %v2079
      %v2100 = vadd.f32 %v2064, %v2079
      %v2101 = vadd.f32 %v2065, %v2079
      %v2102 = vadd.f32 %v2066, %v2079
      %v2103 = vadd.f32 %v2067, %v2079
      %v2104 = vadd.f32 %v2068, %v2079
      %v2105 = vadd.f32 %v2069, %v2079
      %v2106 = vadd.f32 %v2070, %v2079
      %v2107 = vadd.f32 %v2071, %v2079
      %v2108 = vadd.f32 %v2072, %v2079
      %v2109 = vadd.f32 %v2073, %v2079
      %v2110 = vadd.f32 %v2074, %v2079
      %v2111 = vadd.f32 %v2075, %v2079
      %v2112 = vadd.f32 %v2076, %v2079
      %vm2113 = vcmp.gt.f32.partialorder %v2081, 0.0
      %vm2114 = vcmp.gt.f32.partialorder %v2082, 0.0
      %vm2115 = vcmp.gt.f32.partialorder %v2083, 0.0
      %vm2116 = vcmp.gt.f32.partialorder %v2084, 0.0
      %vm2117 = vcmp.gt.f32.partialorder %v2085, 0.0
      %vm2118 = vcmp.gt.f32.partialorder %v2086, 0.0
      %vm2119 = vcmp.gt.f32.partialorder %v2087, 0.0
      %vm2120 = vcmp.gt.f32.partialorder %v2088, 0.0
      %vm2121 = vcmp.gt.f32.partialorder %v2089, 0.0
      %vm2122 = vcmp.gt.f32.partialorder %v2090, 0.0
      %vm2123 = vcmp.gt.f32.partialorder %v2091, 0.0
      %vm2124 = vcmp.gt.f32.partialorder %v2092, 0.0
      %vm2125 = vcmp.gt.f32.partialorder %v2093, 0.0
      %vm2126 = vcmp.gt.f32.partialorder %v2094, 0.0
      %vm2127 = vcmp.gt.f32.partialorder %v2095, 0.0
      %vm2128 = vcmp.gt.f32.partialorder %v2096, 0.0
      %vm2129 = vcmp.gt.f32.partialorder %v2097, 0.0
      %vm2130 = vcmp.gt.f32.partialorder %v2098, 0.0
      %vm2131 = vcmp.gt.f32.partialorder %v2099, 0.0
      %vm2132 = vcmp.gt.f32.partialorder %v2100, 0.0
      %vm2133 = vcmp.gt.f32.partialorder %v2101, 0.0
      %vm2134 = vcmp.gt.f32.partialorder %v2102, 0.0
      %vm2135 = vcmp.gt.f32.partialorder %v2103, 0.0
      %vm2136 = vcmp.gt.f32.partialorder %v2104, 0.0
      %vm2137 = vcmp.gt.f32.partialorder %v2105, 0.0
      %vm2138 = vcmp.gt.f32.partialorder %v2106, 0.0
      %vm2139 = vcmp.gt.f32.partialorder %v2107, 0.0
      %vm2140 = vcmp.gt.f32.partialorder %v2108, 0.0
      %vm2141 = vcmp.gt.f32.partialorder %v2109, 0.0
      %vm2142 = vcmp.gt.f32.partialorder %v2110, 0.0
      %vm2143 = vcmp.gt.f32.partialorder %v2111, 0.0
      %vm2144 = vcmp.gt.f32.partialorder %v2112, 0.0
      %v2145 = vmul.f32 %v2081, 0.2
      %v2146 = vmul.f32 %v2082, 0.2
      %v2147 = vmul.f32 %v2083, 0.2
      %v2148 = vmul.f32 %v2084, 0.2
      %v2149 = vmul.f32 %v2085, 0.2
      %v2150 = vmul.f32 %v2086, 0.2
      %v2151 = vmul.f32 %v2087, 0.2
      %v2152 = vmul.f32 %v2088, 0.2
      %v2153 = vmul.f32 %v2089, 0.2
      %v2154 = vmul.f32 %v2090, 0.2
      %v2155 = vmul.f32 %v2091, 0.2
      %v2156 = vmul.f32 %v2092, 0.2
      %v2157 = vmul.f32 %v2093, 0.2
      %v2158 = vmul.f32 %v2094, 0.2
      %v2159 = vmul.f32 %v2095, 0.2
      %v2160 = vmul.f32 %v2096, 0.2
      %v2161 = vmul.f32 %v2097, 0.2
      %v2162 = vmul.f32 %v2098, 0.2
      %v2163 = vmul.f32 %v2099, 0.2
      %v2164 = vmul.f32 %v2100, 0.2
      %v2165 = vmul.f32 %v2101, 0.2
      %v2166 = vmul.f32 %v2102, 0.2
      %v2167 = vmul.f32 %v2103, 0.2
      %v2168 = vmul.f32 %v2104, 0.2
      %v2169 = vmul.f32 %v2105, 0.2
      %v2170 = vmul.f32 %v2106, 0.2
      %v2171 = vmul.f32 %v2107, 0.2
      %v2172 = vmul.f32 %v2108, 0.2
      %v2173 = vmul.f32 %v2109, 0.2
      %v2174 = vmul.f32 %v2110, 0.2
      %v2175 = vmul.f32 %v2111, 0.2
      %v2176 = vmul.f32 %v2112, 0.2
      %v2177 = vsel %vm2113, %v2081, %v2145
      %v2178 = vsel %vm2114, %v2082, %v2146
      %v2179 = vsel %vm2115, %v2083, %v2147
      %v2180 = vsel %vm2116, %v2084, %v2148
      %v2181 = vsel %vm2117, %v2085, %v2149
      %v2182 = vsel %vm2118, %v2086, %v2150
      %v2183 = vsel %vm2119, %v2087, %v2151
      %v2184 = vsel %vm2120, %v2088, %v2152
      %v2185 = vsel %vm2121, %v2089, %v2153
      %v2186 = vsel %vm2122, %v2090, %v2154
      %v2187 = vsel %vm2123, %v2091, %v2155
      %v2188 = vsel %vm2124, %v2092, %v2156
      %v2189 = vsel %vm2125, %v2093, %v2157
      %v2190 = vsel %vm2126, %v2094, %v2158
      %v2191 = vsel %vm2127, %v2095, %v2159
      %v2192 = vsel %vm2128, %v2096, %v2160
      %v2193 = vsel %vm2129, %v2097, %v2161
      %v2194 = vsel %vm2130, %v2098, %v2162
      %v2195 = vsel %vm2131, %v2099, %v2163
      %v2196 = vsel %vm2132, %v2100, %v2164
      %v2197 = vsel %vm2133, %v2101, %v2165
      %v2198 = vsel %vm2134, %v2102, %v2166
      %v2199 = vsel %vm2135, %v2103, %v2167
      %v2200 = vsel %vm2136, %v2104, %v2168
      %v2201 = vsel %vm2137, %v2105, %v2169
      %v2202 = vsel %vm2138, %v2106, %v2170
      %v2203 = vsel %vm2139, %v2107, %v2171
      %v2204 = vsel %vm2140, %v2108, %v2172
      %v2205 = vsel %vm2141, %v2109, %v2173
      %v2206 = vsel %vm2142, %v2110, %v2174
      %v2207 = vsel %vm2143, %v2111, %v2175
      %v2208 = vsel %vm2144, %v2112, %v2176
      %vm2209 = vcmask 130048
      %2210 = vst.msk [vmem:[%s170] sm:$0xff] %vm2209, %v2177
      %2211 = vst.msk [vmem:[%s170 + $0x8] sm:$0xff] %vm2209, %v2178
      %2212 = vst.msk [vmem:[%s170 + $0x20] sm:$0xff] %vm2209, %v2179
      %2213 = vst.msk [vmem:[%s170 + $0x28] sm:$0xff] %vm2209, %v2180
      %2214 = vst.msk [vmem:[%s170 + $0x40] sm:$0xff] %vm2209, %v2181
      %2215 = vst.msk [vmem:[%s170 + $0x48] sm:$0xff] %vm2209, %v2182
      %2216 = vst.msk [vmem:[%s170 + $0x60] sm:$0xff] %vm2209, %v2183
      %2217 = vst.msk [vmem:[%s170 + $0x68] sm:$0xff] %vm2209, %v2184
      %2218 = vst.msk [vmem:[%s170 + $0x80] sm:$0xff] %vm2209, %v2185
      %2219 = vst.msk [vmem:[%s170 + $0x88] sm:$0xff] %vm2209, %v2186
      %2220 = vst.msk [vmem:[%s170 + $0xa0] sm:$0xff] %vm2209, %v2187
      %2221 = vst.msk [vmem:[%s170 + $0xa8] sm:$0xff] %vm2209, %v2188
      %2222 = vst.msk [vmem:[%s170 + $0xc0] sm:$0xff] %vm2209, %v2189
      %2223 = vst.msk [vmem:[%s170 + $0xc8] sm:$0xff] %vm2209, %v2190
      %2224 = vst.msk [vmem:[%s170 + $0xe0] sm:$0xff] %vm2209, %v2191
      %2225 = vst.msk [vmem:[%s170 + $0xe8] sm:$0xff] %vm2209, %v2192
      %2226 = vst.msk [vmem:[%s170 + $0x100] sm:$0xff] %vm2209, %v2193
      %2227 = vst.msk [vmem:[%s170 + $0x108] sm:$0xff] %vm2209, %v2194
      %2228 = vst.msk [vmem:[%s170 + $0x120] sm:$0xff] %vm2209, %v2195
      %2229 = vst.msk [vmem:[%s170 + $0x128] sm:$0xff] %vm2209, %v2196
      %2230 = vst.msk [vmem:[%s170 + $0x140] sm:$0xff] %vm2209, %v2197
      %2231 = vst.msk [vmem:[%s170 + $0x148] sm:$0xff] %vm2209, %v2198
      %2232 = vst.msk [vmem:[%s170 + $0x160] sm:$0xff] %vm2209, %v2199
      %2233 = vst.msk [vmem:[%s170 + $0x168] sm:$0xff] %vm2209, %v2200
      %2234 = vst.msk [vmem:[%s170 + $0x180] sm:$0xff] %vm2209, %v2201
      %2235 = vst.msk [vmem:[%s170 + $0x188] sm:$0xff] %vm2209, %v2202
      %2236 = vst.msk [vmem:[%s170 + $0x1a0] sm:$0xff] %vm2209, %v2203
      %2237 = vst.msk [vmem:[%s170 + $0x1a8] sm:$0xff] %vm2209, %v2204
      %2238 = vst.msk [vmem:[%s170 + $0x1c0] sm:$0xff] %vm2209, %v2205
      %2239 = vst.msk [vmem:[%s170 + $0x1c8] sm:$0xff] %vm2209, %v2206
      %2240 = vst.msk [vmem:[%s170 + $0x1e0] sm:$0xff] %vm2209, %v2207
      %2241 = vst.msk [vmem:[%s170 + $0x1e8] sm:$0xff] %vm2209, %v2208
      %v2242 = vld [vmem:[%s664] sm:$0xff]
      %v2243 = vld [vmem:[%s664 + $0x8] sm:$0xff]
      %v2244 = vld [vmem:[%s664 + $0x18] sm:$0xff]
      %v2245 = vld [vmem:[%s664 + $0x20] sm:$0xff]
      %v2246 = vld [vmem:[%s664 + $0x30] sm:$0xff]
      %v2247 = vld [vmem:[%s664 + $0x38] sm:$0xff]
      %v2248 = vld [vmem:[%s664 + $0x48] sm:$0xff]
      %v2249 = vld [vmem:[%s664 + $0x50] sm:$0xff]
      %v2250 = vld [vmem:[%s664 + $0x60] sm:$0xff]
      %v2251 = vld [vmem:[%s664 + $0x68] sm:$0xff]
      %v2252 = vld [vmem:[%s664 + $0x78] sm:$0xff]
      %v2253 = vld [vmem:[%s664 + $0x80] sm:$0xff]
      %v2254 = vld [vmem:[%s664 + $0x90] sm:$0xff]
      %v2255 = vld [vmem:[%s664 + $0x98] sm:$0xff]
      %v2256 = vld [vmem:[%s664 + $0xa8] sm:$0xff]
      %v2257 = vld [vmem:[%s664 + $0xb0] sm:$0xff]
      %v2258 = vld [vmem:[%s664 + $0xc0] sm:$0xff]
      %v2259 = vld [vmem:[%s664 + $0xc8] sm:$0xff]
      %v2260 = vld [vmem:[%s664 + $0xd8] sm:$0xff]
      %v2261 = vld [vmem:[%s664 + $0xe0] sm:$0xff]
      %v2262 = vld [vmem:[%s664 + $0xf0] sm:$0xff]
      %v2263 = vld [vmem:[%s664 + $0xf8] sm:$0xff]
      %v2264 = vld [vmem:[%s664 + $0x108] sm:$0xff]
      %v2265 = vld [vmem:[%s664 + $0x110] sm:$0xff]
      %v2266 = vld [vmem:[%s664 + $0x120] sm:$0xff]
      %v2267 = vld [vmem:[%s664 + $0x128] sm:$0xff]
      %v2268 = vld [vmem:[%s664 + $0x138] sm:$0xff]
      %v2269 = vld [vmem:[%s664 + $0x140] sm:$0xff]
      %v2270 = vld [vmem:[%s664 + $0x150] sm:$0xff]
      %v2271 = vld [vmem:[%s664 + $0x158] sm:$0xff]
      %v2272 = vld [vmem:[%s664 + $0x168] sm:$0xff]
      %v2273 = vld [vmem:[%s664 + $0x170] sm:$0xff]
      %s2274 = scalar_lea.vmem %s1, 32
      %v2275 = vld [vmem:[%s2274] sm:$0xf]
      %v2276 = vld [vmem:[%s664 + $0x1] sm:$0xff]
      %v2277 = vld [vmem:[%s664 + $0x9] sm:$0xff]
      %v2278 = vld [vmem:[%s664 + $0x19] sm:$0xff]
      %v2279 = vld [vmem:[%s664 + $0x21] sm:$0xff]
      %v2280 = vld [vmem:[%s664 + $0x31] sm:$0xff]
      %v2281 = vld [vmem:[%s664 + $0x39] sm:$0xff]
      %v2282 = vld [vmem:[%s664 + $0x49] sm:$0xff]
      %v2283 = vld [vmem:[%s664 + $0x51] sm:$0xff]
      %v2284 = vld [vmem:[%s664 + $0x61] sm:$0xff]
      %v2285 = vld [vmem:[%s664 + $0x69] sm:$0xff]
      %v2286 = vld [vmem:[%s664 + $0x79] sm:$0xff]
      %v2287 = vld [vmem:[%s664 + $0x81] sm:$0xff]
      %v2288 = vld [vmem:[%s664 + $0x91] sm:$0xff]
      %v2289 = vld [vmem:[%s664 + $0x99] sm:$0xff]
      %v2290 = vld [vmem:[%s664 + $0xa9] sm:$0xff]
      %v2291 = vld [vmem:[%s664 + $0xb1] sm:$0xff]
      %v2292 = vld [vmem:[%s664 + $0xc1] sm:$0xff]
      %v2293 = vld [vmem:[%s664 + $0xc9] sm:$0xff]
      %v2294 = vld [vmem:[%s664 + $0xd9] sm:$0xff]
      %v2295 = vld [vmem:[%s664 + $0xe1] sm:$0xff]
      %v2296 = vld [vmem:[%s664 + $0xf1] sm:$0xff]
      %v2297 = vld [vmem:[%s664 + $0xf9] sm:$0xff]
      %v2298 = vld [vmem:[%s664 + $0x109] sm:$0xff]
      %v2299 = vld [vmem:[%s664 + $0x111] sm:$0xff]
      %v2300 = vld [vmem:[%s664 + $0x121] sm:$0xff]
      %v2301 = vld [vmem:[%s664 + $0x129] sm:$0xff]
      %v2302 = vld [vmem:[%s664 + $0x139] sm:$0xff]
      %v2303 = vld [vmem:[%s664 + $0x141] sm:$0xff]
      %v2304 = vld [vmem:[%s664 + $0x151] sm:$0xff]
      %v2305 = vld [vmem:[%s664 + $0x159] sm:$0xff]
      %v2306 = vld [vmem:[%s664 + $0x169] sm:$0xff]
      %v2307 = vld [vmem:[%s664 + $0x171] sm:$0xff]
      %s2308 = scalar_lea.vmem %s1, 36
      %v2309 = vld [vmem:[%s2308] sm:$0xf]
      %v2311 = vsel %vm238, %v2276, 0
      %v2314 = vsel %vm238, %v2277, 0
      %v2317 = vsel %vm238, %v2278, 0
      %v2320 = vsel %vm238, %v2279, 0
      %v2323 = vsel %vm238, %v2280, 0
      %v2326 = vsel %vm238, %v2281, 0
      %v2329 = vsel %vm238, %v2282, 0
      %v2332 = vsel %vm238, %v2283, 0
      %v2335 = vsel %vm238, %v2284, 0
      %v2338 = vsel %vm238, %v2285, 0
      %v2341 = vsel %vm238, %v2286, 0
      %v2344 = vsel %vm238, %v2287, 0
      %v2347 = vsel %vm238, %v2288, 0
      %v2350 = vsel %vm238, %v2289, 0
      %v2353 = vsel %vm238, %v2290, 0
      %v2356 = vsel %vm238, %v2291, 0
      %v2359 = vsel %vm238, %v2292, 0
      %v2362 = vsel %vm238, %v2293, 0
      %v2365 = vsel %vm238, %v2294, 0
      %v2368 = vsel %vm238, %v2295, 0
      %v2371 = vsel %vm238, %v2296, 0
      %v2374 = vsel %vm238, %v2297, 0
      %v2377 = vsel %vm238, %v2298, 0
      %v2380 = vsel %vm238, %v2299, 0
      %v2383 = vsel %vm238, %v2300, 0
      %v2386 = vsel %vm238, %v2301, 0
      %v2389 = vsel %vm238, %v2302, 0
      %v2392 = vsel %vm238, %v2303, 0
      %v2395 = vsel %vm238, %v2304, 0
      %v2398 = vsel %vm238, %v2305, 0
      %v2401 = vsel %vm238, %v2306, 0
      %v2404 = vsel %vm238, %v2307, 0
      %v2407 = vsel %vm335, %v2309, 0
      %2409 = vmatpush.msra.mxu0 0.0
      %2410 = vmatpush.msra.mxu0 0.0
      %2411 = vmatpush.msra.mxu0 0.0
      %2412 = vmatpush.msra.mxu0 0.0
      %2413 = vmatpush.msra.mxu0 0.0
      %2414 = vmatpush.msra.mxu0 0.0
      %2415 = vmatpush.msra.mxu0 0.0
      %2416 = vmatpush.msra.mxu0 0.0
      %2417 = vmatpush.msra.mxu0 0.0
      %2418 = vmatpush.msra.mxu0 0.0
      %2419 = vmatpush.msra.mxu0 0.0
      %2420 = vmatpush.msra.mxu0 0.0
      %2421 = vmatpush.msra.mxu0 0.0
      %2422 = vmatpush.msra.mxu0 0.0
      %2423 = vmatpush.msra.mxu0 0.0
      %2424 = vmatpush.msra.mxu0 %v2407
      %2425 = vmatmul.f32.gmra.mxu0 %v2311
      %v2426 = vpop.f32.mrf.mxu0
      %v2427 = vadd.f32 0.0, %v2426
      %2428 = vmatmul.f32.gmra.mxu0 %v2314
      %v2429 = vpop.f32.mrf.mxu0
      %v2430 = vadd.f32 0.0, %v2429
      %2431 = vmatmul.f32.gmra.mxu0 %v2317
      %v2432 = vpop.f32.mrf.mxu0
      %v2433 = vadd.f32 0.0, %v2432
      %2434 = vmatmul.f32.gmra.mxu0 %v2320
      %v2435 = vpop.f32.mrf.mxu0
      %v2436 = vadd.f32 0.0, %v2435
      %2437 = vmatmul.f32.gmra.mxu0 %v2323
      %v2438 = vpop.f32.mrf.mxu0
      %v2439 = vadd.f32 0.0, %v2438
      %2440 = vmatmul.f32.gmra.mxu0 %v2326
      %v2441 = vpop.f32.mrf.mxu0
      %v2442 = vadd.f32 0.0, %v2441
      %2443 = vmatmul.f32.gmra.mxu0 %v2329
      %v2444 = vpop.f32.mrf.mxu0
      %v2445 = vadd.f32 0.0, %v2444
      %2446 = vmatmul.f32.gmra.mxu0 %v2332
      %v2447 = vpop.f32.mrf.mxu0
      %v2448 = vadd.f32 0.0, %v2447
      %2449 = vmatmul.f32.gmra.mxu0 %v2335
      %v2450 = vpop.f32.mrf.mxu0
      %v2451 = vadd.f32 0.0, %v2450
      %2452 = vmatmul.f32.gmra.mxu0 %v2338
      %v2453 = vpop.f32.mrf.mxu0
      %v2454 = vadd.f32 0.0, %v2453
      %2455 = vmatmul.f32.gmra.mxu0 %v2341
      %v2456 = vpop.f32.mrf.mxu0
      %v2457 = vadd.f32 0.0, %v2456
      %2458 = vmatmul.f32.gmra.mxu0 %v2344
      %v2459 = vpop.f32.mrf.mxu0
      %v2460 = vadd.f32 0.0, %v2459
      %2461 = vmatmul.f32.gmra.mxu0 %v2347
      %v2462 = vpop.f32.mrf.mxu0
      %v2463 = vadd.f32 0.0, %v2462
      %2464 = vmatmul.f32.gmra.mxu0 %v2350
      %v2465 = vpop.f32.mrf.mxu0
      %v2466 = vadd.f32 0.0, %v2465
      %2467 = vmatmul.f32.gmra.mxu0 %v2353
      %v2468 = vpop.f32.mrf.mxu0
      %v2469 = vadd.f32 0.0, %v2468
      %2470 = vmatmul.f32.gmra.mxu0 %v2356
      %v2471 = vpop.f32.mrf.mxu0
      %v2472 = vadd.f32 0.0, %v2471
      %2473 = vmatmul.f32.gmra.mxu0 %v2359
      %v2474 = vpop.f32.mrf.mxu0
      %v2475 = vadd.f32 0.0, %v2474
      %2476 = vmatmul.f32.gmra.mxu0 %v2362
      %v2477 = vpop.f32.mrf.mxu0
      %v2478 = vadd.f32 0.0, %v2477
      %2479 = vmatmul.f32.gmra.mxu0 %v2365
      %v2480 = vpop.f32.mrf.mxu0
      %v2481 = vadd.f32 0.0, %v2480
      %2482 = vmatmul.f32.gmra.mxu0 %v2368
      %v2483 = vpop.f32.mrf.mxu0
      %v2484 = vadd.f32 0.0, %v2483
      %2485 = vmatmul.f32.gmra.mxu0 %v2371
      %v2486 = vpop.f32.mrf.mxu0
      %v2487 = vadd.f32 0.0, %v2486
      %2488 = vmatmul.f32.gmra.mxu0 %v2374
      %v2489 = vpop.f32.mrf.mxu0
      %v2490 = vadd.f32 0.0, %v2489
      %2491 = vmatmul.f32.gmra.mxu0 %v2377
      %v2492 = vpop.f32.mrf.mxu0
      %v2493 = vadd.f32 0.0, %v2492
      %2494 = vmatmul.f32.gmra.mxu0 %v2380
      %v2495 = vpop.f32.mrf.mxu0
      %v2496 = vadd.f32 0.0, %v2495
      %2497 = vmatmul.f32.gmra.mxu0 %v2383
      %v2498 = vpop.f32.mrf.mxu0
      %v2499 = vadd.f32 0.0, %v2498
      %2500 = vmatmul.f32.gmra.mxu0 %v2386
      %v2501 = vpop.f32.mrf.mxu0
      %v2502 = vadd.f32 0.0, %v2501
      %2503 = vmatmul.f32.gmra.mxu0 %v2389
      %v2504 = vpop.f32.mrf.mxu0
      %v2505 = vadd.f32 0.0, %v2504
      %2506 = vmatmul.f32.gmra.mxu0 %v2392
      %v2507 = vpop.f32.mrf.mxu0
      %v2508 = vadd.f32 0.0, %v2507
      %2509 = vmatmul.f32.gmra.mxu0 %v2395
      %v2510 = vpop.f32.mrf.mxu0
      %v2511 = vadd.f32 0.0, %v2510
      %2512 = vmatmul.f32.gmra.mxu0 %v2398
      %v2513 = vpop.f32.mrf.mxu0
      %v2514 = vadd.f32 0.0, %v2513
      %2515 = vmatmul.f32.gmra.mxu0 %v2401
      %v2516 = vpop.f32.mrf.mxu0
      %v2517 = vadd.f32 0.0, %v2516
      %2518 = vmatmul.f32.gmra.mxu0 %v2404
      %v2519 = vpop.f32.mrf.mxu0
      %v2520 = vadd.f32 0.0, %v2519
      %2521 = vdwg.mxu0
      %v2523 = vsel %vm238, %v2242, 0
      %v2526 = vsel %vm238, %v2243, 0
      %v2529 = vsel %vm238, %v2244, 0
      %v2532 = vsel %vm238, %v2245, 0
      %v2535 = vsel %vm238, %v2246, 0
      %v2538 = vsel %vm238, %v2247, 0
      %v2541 = vsel %vm238, %v2248, 0
      %v2544 = vsel %vm238, %v2249, 0
      %v2547 = vsel %vm238, %v2250, 0
      %v2550 = vsel %vm238, %v2251, 0
      %v2553 = vsel %vm238, %v2252, 0
      %v2556 = vsel %vm238, %v2253, 0
      %v2559 = vsel %vm238, %v2254, 0
      %v2562 = vsel %vm238, %v2255, 0
      %v2565 = vsel %vm238, %v2256, 0
      %v2568 = vsel %vm238, %v2257, 0
      %v2571 = vsel %vm238, %v2258, 0
      %v2574 = vsel %vm238, %v2259, 0
      %v2577 = vsel %vm238, %v2260, 0
      %v2580 = vsel %vm238, %v2261, 0
      %v2583 = vsel %vm238, %v2262, 0
      %v2586 = vsel %vm238, %v2263, 0
      %v2589 = vsel %vm238, %v2264, 0
      %v2592 = vsel %vm238, %v2265, 0
      %v2595 = vsel %vm238, %v2266, 0
      %v2598 = vsel %vm238, %v2267, 0
      %v2601 = vsel %vm238, %v2268, 0
      %v2604 = vsel %vm238, %v2269, 0
      %v2607 = vsel %vm238, %v2270, 0
      %v2610 = vsel %vm238, %v2271, 0
      %v2613 = vsel %vm238, %v2272, 0
      %v2616 = vsel %vm238, %v2273, 0
      %v2619 = vsel %vm335, %v2275, 0
      %2621 = vmatpush.msra.mxu0 0.0
      %2622 = vmatpush.msra.mxu0 0.0
      %2623 = vmatpush.msra.mxu0 0.0
      %2624 = vmatpush.msra.mxu0 0.0
      %2625 = vmatpush.msra.mxu0 0.0
      %2626 = vmatpush.msra.mxu0 0.0
      %2627 = vmatpush.msra.mxu0 0.0
      %2628 = vmatpush.msra.mxu0 0.0
      %2629 = vmatpush.msra.mxu0 0.0
      %2630 = vmatpush.msra.mxu0 0.0
      %2631 = vmatpush.msra.mxu0 0.0
      %2632 = vmatpush.msra.mxu0 0.0
      %2633 = vmatpush.msra.mxu0 0.0
      %2634 = vmatpush.msra.mxu0 0.0
      %2635 = vmatpush.msra.mxu0 0.0
      %2636 = vmatpush.msra.mxu0 %v2619
      %2637 = vmatmul.f32.gmra.mxu0 %v2523
      %v2638 = vpop.f32.mrf.mxu0
      %v2639 = vadd.f32 %v2427, %v2638
      %2640 = vmatmul.f32.gmra.mxu0 %v2526
      %v2641 = vpop.f32.mrf.mxu0
      %v2642 = vadd.f32 %v2430, %v2641
      %2643 = vmatmul.f32.gmra.mxu0 %v2529
      %v2644 = vpop.f32.mrf.mxu0
      %v2645 = vadd.f32 %v2433, %v2644
      %2646 = vmatmul.f32.gmra.mxu0 %v2532
      %v2647 = vpop.f32.mrf.mxu0
      %v2648 = vadd.f32 %v2436, %v2647
      %2649 = vmatmul.f32.gmra.mxu0 %v2535
      %v2650 = vpop.f32.mrf.mxu0
      %v2651 = vadd.f32 %v2439, %v2650
      %2652 = vmatmul.f32.gmra.mxu0 %v2538
      %v2653 = vpop.f32.mrf.mxu0
      %v2654 = vadd.f32 %v2442, %v2653
      %2655 = vmatmul.f32.gmra.mxu0 %v2541
      %v2656 = vpop.f32.mrf.mxu0
      %v2657 = vadd.f32 %v2445, %v2656
      %2658 = vmatmul.f32.gmra.mxu0 %v2544
      %v2659 = vpop.f32.mrf.mxu0
      %v2660 = vadd.f32 %v2448, %v2659
      %2661 = vmatmul.f32.gmra.mxu0 %v2547
      %v2662 = vpop.f32.mrf.mxu0
      %v2663 = vadd.f32 %v2451, %v2662
      %2664 = vmatmul.f32.gmra.mxu0 %v2550
      %v2665 = vpop.f32.mrf.mxu0
      %v2666 = vadd.f32 %v2454, %v2665
      %2667 = vmatmul.f32.gmra.mxu0 %v2553
      %v2668 = vpop.f32.mrf.mxu0
      %v2669 = vadd.f32 %v2457, %v2668
      %2670 = vmatmul.f32.gmra.mxu0 %v2556
      %v2671 = vpop.f32.mrf.mxu0
      %v2672 = vadd.f32 %v2460, %v2671
      %2673 = vmatmul.f32.gmra.mxu0 %v2559
      %v2674 = vpop.f32.mrf.mxu0
      %v2675 = vadd.f32 %v2463, %v2674
      %2676 = vmatmul.f32.gmra.mxu0 %v2562
      %v2677 = vpop.f32.mrf.mxu0
      %v2678 = vadd.f32 %v2466, %v2677
      %2679 = vmatmul.f32.gmra.mxu0 %v2565
      %v2680 = vpop.f32.mrf.mxu0
      %v2681 = vadd.f32 %v2469, %v2680
      %2682 = vmatmul.f32.gmra.mxu0 %v2568
      %v2683 = vpop.f32.mrf.mxu0
      %v2684 = vadd.f32 %v2472, %v2683
      %2685 = vmatmul.f32.gmra.mxu0 %v2571
      %v2686 = vpop.f32.mrf.mxu0
      %v2687 = vadd.f32 %v2475, %v2686
      %2688 = vmatmul.f32.gmra.mxu0 %v2574
      %v2689 = vpop.f32.mrf.mxu0
      %v2690 = vadd.f32 %v2478, %v2689
      %2691 = vmatmul.f32.gmra.mxu0 %v2577
      %v2692 = vpop.f32.mrf.mxu0
      %v2693 = vadd.f32 %v2481, %v2692
      %2694 = vmatmul.f32.gmra.mxu0 %v2580
      %v2695 = vpop.f32.mrf.mxu0
      %v2696 = vadd.f32 %v2484, %v2695
      %2697 = vmatmul.f32.gmra.mxu0 %v2583
      %v2698 = vpop.f32.mrf.mxu0
      %v2699 = vadd.f32 %v2487, %v2698
      %2700 = vmatmul.f32.gmra.mxu0 %v2586
      %v2701 = vpop.f32.mrf.mxu0
      %v2702 = vadd.f32 %v2490, %v2701
      %2703 = vmatmul.f32.gmra.mxu0 %v2589
      %v2704 = vpop.f32.mrf.mxu0
      %v2705 = vadd.f32 %v2493, %v2704
      %2706 = vmatmul.f32.gmra.mxu0 %v2592
      %v2707 = vpop.f32.mrf.mxu0
      %v2708 = vadd.f32 %v2496, %v2707
      %2709 = vmatmul.f32.gmra.mxu0 %v2595
      %v2710 = vpop.f32.mrf.mxu0
      %v2711 = vadd.f32 %v2499, %v2710
      %2712 = vmatmul.f32.gmra.mxu0 %v2598
      %v2713 = vpop.f32.mrf.mxu0
      %v2714 = vadd.f32 %v2502, %v2713
      %2715 = vmatmul.f32.gmra.mxu0 %v2601
      %v2716 = vpop.f32.mrf.mxu0
      %v2717 = vadd.f32 %v2505, %v2716
      %2718 = vmatmul.f32.gmra.mxu0 %v2604
      %v2719 = vpop.f32.mrf.mxu0
      %v2720 = vadd.f32 %v2508, %v2719
      %2721 = vmatmul.f32.gmra.mxu0 %v2607
      %v2722 = vpop.f32.mrf.mxu0
      %v2723 = vadd.f32 %v2511, %v2722
      %2724 = vmatmul.f32.gmra.mxu0 %v2610
      %v2725 = vpop.f32.mrf.mxu0
      %v2726 = vadd.f32 %v2514, %v2725
      %2727 = vmatmul.f32.gmra.mxu0 %v2613
      %v2728 = vpop.f32.mrf.mxu0
      %v2729 = vadd.f32 %v2517, %v2728
      %2730 = vmatmul.f32.gmra.mxu0 %v2616
      %v2731 = vpop.f32.mrf.mxu0
      %v2732 = vadd.f32 %v2520, %v2731
      %2733 = vdwg.mxu0
      %s2734 = scalar_lea.vmem %s165, 48
      %v2735 = vld [vmem:[%s2734] sm:$0xff]
      %v2736 = vld [vmem:[%s2734 + $0x8] sm:$0xff]
      %v2737 = vld [vmem:[%s2734 + $0x18] sm:$0xff]
      %v2738 = vld [vmem:[%s2734 + $0x20] sm:$0xff]
      %v2739 = vld [vmem:[%s2734 + $0x30] sm:$0xff]
      %v2740 = vld [vmem:[%s2734 + $0x38] sm:$0xff]
      %v2741 = vld [vmem:[%s2734 + $0x48] sm:$0xff]
      %v2742 = vld [vmem:[%s2734 + $0x50] sm:$0xff]
      %v2743 = vld [vmem:[%s2734 + $0x60] sm:$0xff]
      %v2744 = vld [vmem:[%s2734 + $0x68] sm:$0xff]
      %v2745 = vld [vmem:[%s2734 + $0x78] sm:$0xff]
      %v2746 = vld [vmem:[%s2734 + $0x80] sm:$0xff]
      %v2747 = vld [vmem:[%s2734 + $0x90] sm:$0xff]
      %v2748 = vld [vmem:[%s2734 + $0x98] sm:$0xff]
      %v2749 = vld [vmem:[%s2734 + $0xa8] sm:$0xff]
      %v2750 = vld [vmem:[%s2734 + $0xb0] sm:$0xff]
      %v2751 = vld [vmem:[%s2734 + $0xc0] sm:$0xff]
      %v2752 = vld [vmem:[%s2734 + $0xc8] sm:$0xff]
      %v2753 = vld [vmem:[%s2734 + $0xd8] sm:$0xff]
      %v2754 = vld [vmem:[%s2734 + $0xe0] sm:$0xff]
      %v2755 = vld [vmem:[%s2734 + $0xf0] sm:$0xff]
      %v2756 = vld [vmem:[%s2734 + $0xf8] sm:$0xff]
      %v2757 = vld [vmem:[%s2734 + $0x108] sm:$0xff]
      %v2758 = vld [vmem:[%s2734 + $0x110] sm:$0xff]
      %v2759 = vld [vmem:[%s2734 + $0x120] sm:$0xff]
      %v2760 = vld [vmem:[%s2734 + $0x128] sm:$0xff]
      %v2761 = vld [vmem:[%s2734 + $0x138] sm:$0xff]
      %v2762 = vld [vmem:[%s2734 + $0x140] sm:$0xff]
      %v2763 = vld [vmem:[%s2734 + $0x150] sm:$0xff]
      %v2764 = vld [vmem:[%s2734 + $0x158] sm:$0xff]
      %v2765 = vld [vmem:[%s2734 + $0x168] sm:$0xff]
      %v2766 = vld [vmem:[%s2734 + $0x170] sm:$0xff]
      %s2767 = scalar_lea.vmem %s1, 40
      %v2768 = vld [vmem:[%s2767] sm:$0xf]
      %v2770 = vsel %vm238, %v2735, 0
      %v2773 = vsel %vm238, %v2736, 0
      %v2776 = vsel %vm238, %v2737, 0
      %v2779 = vsel %vm238, %v2738, 0
      %v2782 = vsel %vm238, %v2739, 0
      %v2785 = vsel %vm238, %v2740, 0
      %v2788 = vsel %vm238, %v2741, 0
      %v2791 = vsel %vm238, %v2742, 0
      %v2794 = vsel %vm238, %v2743, 0
      %v2797 = vsel %vm238, %v2744, 0
      %v2800 = vsel %vm238, %v2745, 0
      %v2803 = vsel %vm238, %v2746, 0
      %v2806 = vsel %vm238, %v2747, 0
      %v2809 = vsel %vm238, %v2748, 0
      %v2812 = vsel %vm238, %v2749, 0
      %v2815 = vsel %vm238, %v2750, 0
      %v2818 = vsel %vm238, %v2751, 0
      %v2821 = vsel %vm238, %v2752, 0
      %v2824 = vsel %vm238, %v2753, 0
      %v2827 = vsel %vm238, %v2754, 0
      %v2830 = vsel %vm238, %v2755, 0
      %v2833 = vsel %vm238, %v2756, 0
      %v2836 = vsel %vm238, %v2757, 0
      %v2839 = vsel %vm238, %v2758, 0
      %v2842 = vsel %vm238, %v2759, 0
      %v2845 = vsel %vm238, %v2760, 0
      %v2848 = vsel %vm238, %v2761, 0
      %v2851 = vsel %vm238, %v2762, 0
      %v2854 = vsel %vm238, %v2763, 0
      %v2857 = vsel %vm238, %v2764, 0
      %v2860 = vsel %vm238, %v2765, 0
      %v2863 = vsel %vm238, %v2766, 0
      %v2866 = vsel %vm335, %v2768, 0
      %2868 = vmatpush.msra.mxu0 0.0
      %2869 = vmatpush.msra.mxu0 0.0
      %2870 = vmatpush.msra.mxu0 0.0
      %2871 = vmatpush.msra.mxu0 0.0
      %2872 = vmatpush.msra.mxu0 0.0
      %2873 = vmatpush.msra.mxu0 0.0
      %2874 = vmatpush.msra.mxu0 0.0
      %2875 = vmatpush.msra.mxu0 0.0
      %2876 = vmatpush.msra.mxu0 0.0
      %2877 = vmatpush.msra.mxu0 0.0
      %2878 = vmatpush.msra.mxu0 0.0
      %2879 = vmatpush.msra.mxu0 0.0
      %2880 = vmatpush.msra.mxu0 0.0
      %2881 = vmatpush.msra.mxu0 0.0
      %2882 = vmatpush.msra.mxu0 0.0
      %2883 = vmatpush.msra.mxu0 %v2866
      %2884 = vmatmul.f32.gmra.mxu0 %v2770
      %v2885 = vpop.f32.mrf.mxu0
      %v2886 = vadd.f32 0.0, %v2885
      %2887 = vmatmul.f32.gmra.mxu0 %v2773
      %v2888 = vpop.f32.mrf.mxu0
      %v2889 = vadd.f32 0.0, %v2888
      %2890 = vmatmul.f32.gmra.mxu0 %v2776
      %v2891 = vpop.f32.mrf.mxu0
      %v2892 = vadd.f32 0.0, %v2891
      %2893 = vmatmul.f32.gmra.mxu0 %v2779
      %v2894 = vpop.f32.mrf.mxu0
      %v2895 = vadd.f32 0.0, %v2894
      %2896 = vmatmul.f32.gmra.mxu0 %v2782
      %v2897 = vpop.f32.mrf.mxu0
      %v2898 = vadd.f32 0.0, %v2897
      %2899 = vmatmul.f32.gmra.mxu0 %v2785
      %v2900 = vpop.f32.mrf.mxu0
      %v2901 = vadd.f32 0.0, %v2900
      %2902 = vmatmul.f32.gmra.mxu0 %v2788
      %v2903 = vpop.f32.mrf.mxu0
      %v2904 = vadd.f32 0.0, %v2903
      %2905 = vmatmul.f32.gmra.mxu0 %v2791
      %v2906 = vpop.f32.mrf.mxu0
      %v2907 = vadd.f32 0.0, %v2906
      %2908 = vmatmul.f32.gmra.mxu0 %v2794
      %v2909 = vpop.f32.mrf.mxu0
      %v2910 = vadd.f32 0.0, %v2909
      %2911 = vmatmul.f32.gmra.mxu0 %v2797
      %v2912 = vpop.f32.mrf.mxu0
      %v2913 = vadd.f32 0.0, %v2912
      %2914 = vmatmul.f32.gmra.mxu0 %v2800
      %v2915 = vpop.f32.mrf.mxu0
      %v2916 = vadd.f32 0.0, %v2915
      %2917 = vmatmul.f32.gmra.mxu0 %v2803
      %v2918 = vpop.f32.mrf.mxu0
      %v2919 = vadd.f32 0.0, %v2918
      %2920 = vmatmul.f32.gmra.mxu0 %v2806
      %v2921 = vpop.f32.mrf.mxu0
      %v2922 = vadd.f32 0.0, %v2921
      %2923 = vmatmul.f32.gmra.mxu0 %v2809
      %v2924 = vpop.f32.mrf.mxu0
      %v2925 = vadd.f32 0.0, %v2924
      %2926 = vmatmul.f32.gmra.mxu0 %v2812
      %v2927 = vpop.f32.mrf.mxu0
      %v2928 = vadd.f32 0.0, %v2927
      %2929 = vmatmul.f32.gmra.mxu0 %v2815
      %v2930 = vpop.f32.mrf.mxu0
      %v2931 = vadd.f32 0.0, %v2930
      %2932 = vmatmul.f32.gmra.mxu0 %v2818
      %v2933 = vpop.f32.mrf.mxu0
      %v2934 = vadd.f32 0.0, %v2933
      %2935 = vmatmul.f32.gmra.mxu0 %v2821
      %v2936 = vpop.f32.mrf.mxu0
      %v2937 = vadd.f32 0.0, %v2936
      %2938 = vmatmul.f32.gmra.mxu0 %v2824
      %v2939 = vpop.f32.mrf.mxu0
      %v2940 = vadd.f32 0.0, %v2939
      %2941 = vmatmul.f32.gmra.mxu0 %v2827
      %v2942 = vpop.f32.mrf.mxu0
      %v2943 = vadd.f32 0.0, %v2942
      %2944 = vmatmul.f32.gmra.mxu0 %v2830
      %v2945 = vpop.f32.mrf.mxu0
      %v2946 = vadd.f32 0.0, %v2945
      %2947 = vmatmul.f32.gmra.mxu0 %v2833
      %v2948 = vpop.f32.mrf.mxu0
      %v2949 = vadd.f32 0.0, %v2948
      %2950 = vmatmul.f32.gmra.mxu0 %v2836
      %v2951 = vpop.f32.mrf.mxu0
      %v2952 = vadd.f32 0.0, %v2951
      %2953 = vmatmul.f32.gmra.mxu0 %v2839
      %v2954 = vpop.f32.mrf.mxu0
      %v2955 = vadd.f32 0.0, %v2954
      %2956 = vmatmul.f32.gmra.mxu0 %v2842
      %v2957 = vpop.f32.mrf.mxu0
      %v2958 = vadd.f32 0.0, %v2957
      %2959 = vmatmul.f32.gmra.mxu0 %v2845
      %v2960 = vpop.f32.mrf.mxu0
      %v2961 = vadd.f32 0.0, %v2960
      %2962 = vmatmul.f32.gmra.mxu0 %v2848
      %v2963 = vpop.f32.mrf.mxu0
      %v2964 = vadd.f32 0.0, %v2963
      %2965 = vmatmul.f32.gmra.mxu0 %v2851
      %v2966 = vpop.f32.mrf.mxu0
      %v2967 = vadd.f32 0.0, %v2966
      %2968 = vmatmul.f32.gmra.mxu0 %v2854
      %v2969 = vpop.f32.mrf.mxu0
      %v2970 = vadd.f32 0.0, %v2969
      %2971 = vmatmul.f32.gmra.mxu0 %v2857
      %v2972 = vpop.f32.mrf.mxu0
      %v2973 = vadd.f32 0.0, %v2972
      %2974 = vmatmul.f32.gmra.mxu0 %v2860
      %v2975 = vpop.f32.mrf.mxu0
      %v2976 = vadd.f32 0.0, %v2975
      %2977 = vmatmul.f32.gmra.mxu0 %v2863
      %v2978 = vpop.f32.mrf.mxu0
      %v2979 = vadd.f32 0.0, %v2978
      %2980 = vdwg.mxu0
      %v2981 = vadd.f32 %v2639, %v2886
      %v2982 = vadd.f32 %v2642, %v2889
      %v2983 = vadd.f32 %v2645, %v2892
      %v2984 = vadd.f32 %v2648, %v2895
      %v2985 = vadd.f32 %v2651, %v2898
      %v2986 = vadd.f32 %v2654, %v2901
      %v2987 = vadd.f32 %v2657, %v2904
      %v2988 = vadd.f32 %v2660, %v2907
      %v2989 = vadd.f32 %v2663, %v2910
      %v2990 = vadd.f32 %v2666, %v2913
      %v2991 = vadd.f32 %v2669, %v2916
      %v2992 = vadd.f32 %v2672, %v2919
      %v2993 = vadd.f32 %v2675, %v2922
      %v2994 = vadd.f32 %v2678, %v2925
      %v2995 = vadd.f32 %v2681, %v2928
      %v2996 = vadd.f32 %v2684, %v2931
      %v2997 = vadd.f32 %v2687, %v2934
      %v2998 = vadd.f32 %v2690, %v2937
      %v2999 = vadd.f32 %v2693, %v2940
      %v3000 = vadd.f32 %v2696, %v2943
      %v3001 = vadd.f32 %v2699, %v2946
      %v3002 = vadd.f32 %v2702, %v2949
      %v3003 = vadd.f32 %v2705, %v2952
      %v3004 = vadd.f32 %v2708, %v2955
      %v3005 = vadd.f32 %v2711, %v2958
      %v3006 = vadd.f32 %v2714, %v2961
      %v3007 = vadd.f32 %v2717, %v2964
      %v3008 = vadd.f32 %v2720, %v2967
      %v3009 = vadd.f32 %v2723, %v2970
      %v3010 = vadd.f32 %v2726, %v2973
      %v3011 = vadd.f32 %v2729, %v2976
      %v3012 = vadd.f32 %v2732, %v2979
      %v3013 = vld [vmem:[%s2734 + $0x1] sm:$0xff]
      %v3014 = vld [vmem:[%s2734 + $0x9] sm:$0xff]
      %v3015 = vld [vmem:[%s2734 + $0x19] sm:$0xff]
      %v3016 = vld [vmem:[%s2734 + $0x21] sm:$0xff]
      %v3017 = vld [vmem:[%s2734 + $0x31] sm:$0xff]
      %v3018 = vld [vmem:[%s2734 + $0x39] sm:$0xff]
      %v3019 = vld [vmem:[%s2734 + $0x49] sm:$0xff]
      %v3020 = vld [vmem:[%s2734 + $0x51] sm:$0xff]
      %v3021 = vld [vmem:[%s2734 + $0x61] sm:$0xff]
      %v3022 = vld [vmem:[%s2734 + $0x69] sm:$0xff]
      %v3023 = vld [vmem:[%s2734 + $0x79] sm:$0xff]
      %v3024 = vld [vmem:[%s2734 + $0x81] sm:$0xff]
      %v3025 = vld [vmem:[%s2734 + $0x91] sm:$0xff]
      %v3026 = vld [vmem:[%s2734 + $0x99] sm:$0xff]
      %v3027 = vld [vmem:[%s2734 + $0xa9] sm:$0xff]
      %v3028 = vld [vmem:[%s2734 + $0xb1] sm:$0xff]
      %v3029 = vld [vmem:[%s2734 + $0xc1] sm:$0xff]
      %v3030 = vld [vmem:[%s2734 + $0xc9] sm:$0xff]
      %v3031 = vld [vmem:[%s2734 + $0xd9] sm:$0xff]
      %v3032 = vld [vmem:[%s2734 + $0xe1] sm:$0xff]
      %v3033 = vld [vmem:[%s2734 + $0xf1] sm:$0xff]
      %v3034 = vld [vmem:[%s2734 + $0xf9] sm:$0xff]
      %v3035 = vld [vmem:[%s2734 + $0x109] sm:$0xff]
      %v3036 = vld [vmem:[%s2734 + $0x111] sm:$0xff]
      %v3037 = vld [vmem:[%s2734 + $0x121] sm:$0xff]
      %v3038 = vld [vmem:[%s2734 + $0x129] sm:$0xff]
      %v3039 = vld [vmem:[%s2734 + $0x139] sm:$0xff]
      %v3040 = vld [vmem:[%s2734 + $0x141] sm:$0xff]
      %v3041 = vld [vmem:[%s2734 + $0x151] sm:$0xff]
      %v3042 = vld [vmem:[%s2734 + $0x159] sm:$0xff]
      %v3043 = vld [vmem:[%s2734 + $0x169] sm:$0xff]
      %v3044 = vld [vmem:[%s2734 + $0x171] sm:$0xff]
      %s3045 = scalar_lea.vmem %s1, 44
      %v3046 = vld [vmem:[%s3045] sm:$0xf]
      %v3048 = vsel %vm238, %v3013, 0
      %v3051 = vsel %vm238, %v3014, 0
      %v3054 = vsel %vm238, %v3015, 0
      %v3057 = vsel %vm238, %v3016, 0
      %v3060 = vsel %vm238, %v3017, 0
      %v3063 = vsel %vm238, %v3018, 0
      %v3066 = vsel %vm238, %v3019, 0
      %v3069 = vsel %vm238, %v3020, 0
      %v3072 = vsel %vm238, %v3021, 0
      %v3075 = vsel %vm238, %v3022, 0
      %v3078 = vsel %vm238, %v3023, 0
      %v3081 = vsel %vm238, %v3024, 0
      %v3084 = vsel %vm238, %v3025, 0
      %v3087 = vsel %vm238, %v3026, 0
      %v3090 = vsel %vm238, %v3027, 0
      %v3093 = vsel %vm238, %v3028, 0
      %v3096 = vsel %vm238, %v3029, 0
      %v3099 = vsel %vm238, %v3030, 0
      %v3102 = vsel %vm238, %v3031, 0
      %v3105 = vsel %vm238, %v3032, 0
      %v3108 = vsel %vm238, %v3033, 0
      %v3111 = vsel %vm238, %v3034, 0
      %v3114 = vsel %vm238, %v3035, 0
      %v3117 = vsel %vm238, %v3036, 0
      %v3120 = vsel %vm238, %v3037, 0
      %v3123 = vsel %vm238, %v3038, 0
      %v3126 = vsel %vm238, %v3039, 0
      %v3129 = vsel %vm238, %v3040, 0
      %v3132 = vsel %vm238, %v3041, 0
      %v3135 = vsel %vm238, %v3042, 0
      %v3138 = vsel %vm238, %v3043, 0
      %v3141 = vsel %vm238, %v3044, 0
      %v3144 = vsel %vm335, %v3046, 0
      %3146 = vmatpush.msra.mxu0 0.0
      %3147 = vmatpush.msra.mxu0 0.0
      %3148 = vmatpush.msra.mxu0 0.0
      %3149 = vmatpush.msra.mxu0 0.0
      %3150 = vmatpush.msra.mxu0 0.0
      %3151 = vmatpush.msra.mxu0 0.0
      %3152 = vmatpush.msra.mxu0 0.0
      %3153 = vmatpush.msra.mxu0 0.0
      %3154 = vmatpush.msra.mxu0 0.0
      %3155 = vmatpush.msra.mxu0 0.0
      %3156 = vmatpush.msra.mxu0 0.0
      %3157 = vmatpush.msra.mxu0 0.0
      %3158 = vmatpush.msra.mxu0 0.0
      %3159 = vmatpush.msra.mxu0 0.0
      %3160 = vmatpush.msra.mxu0 0.0
      %3161 = vmatpush.msra.mxu0 %v3144
      %3162 = vmatmul.f32.gmra.mxu0 %v3048
      %v3163 = vpop.f32.mrf.mxu0
      %v3164 = vadd.f32 0.0, %v3163
      %3165 = vmatmul.f32.gmra.mxu0 %v3051
      %v3166 = vpop.f32.mrf.mxu0
      %v3167 = vadd.f32 0.0, %v3166
      %3168 = vmatmul.f32.gmra.mxu0 %v3054
      %v3169 = vpop.f32.mrf.mxu0
      %v3170 = vadd.f32 0.0, %v3169
      %3171 = vmatmul.f32.gmra.mxu0 %v3057
      %v3172 = vpop.f32.mrf.mxu0
      %v3173 = vadd.f32 0.0, %v3172
      %3174 = vmatmul.f32.gmra.mxu0 %v3060
      %v3175 = vpop.f32.mrf.mxu0
      %v3176 = vadd.f32 0.0, %v3175
      %3177 = vmatmul.f32.gmra.mxu0 %v3063
      %v3178 = vpop.f32.mrf.mxu0
      %v3179 = vadd.f32 0.0, %v3178
      %3180 = vmatmul.f32.gmra.mxu0 %v3066
      %v3181 = vpop.f32.mrf.mxu0
      %v3182 = vadd.f32 0.0, %v3181
      %3183 = vmatmul.f32.gmra.mxu0 %v3069
      %v3184 = vpop.f32.mrf.mxu0
      %v3185 = vadd.f32 0.0, %v3184
      %3186 = vmatmul.f32.gmra.mxu0 %v3072
      %v3187 = vpop.f32.mrf.mxu0
      %v3188 = vadd.f32 0.0, %v3187
      %3189 = vmatmul.f32.gmra.mxu0 %v3075
      %v3190 = vpop.f32.mrf.mxu0
      %v3191 = vadd.f32 0.0, %v3190
      %3192 = vmatmul.f32.gmra.mxu0 %v3078
      %v3193 = vpop.f32.mrf.mxu0
      %v3194 = vadd.f32 0.0, %v3193
      %3195 = vmatmul.f32.gmra.mxu0 %v3081
      %v3196 = vpop.f32.mrf.mxu0
      %v3197 = vadd.f32 0.0, %v3196
      %3198 = vmatmul.f32.gmra.mxu0 %v3084
      %v3199 = vpop.f32.mrf.mxu0
      %v3200 = vadd.f32 0.0, %v3199
      %3201 = vmatmul.f32.gmra.mxu0 %v3087
      %v3202 = vpop.f32.mrf.mxu0
      %v3203 = vadd.f32 0.0, %v3202
      %3204 = vmatmul.f32.gmra.mxu0 %v3090
      %v3205 = vpop.f32.mrf.mxu0
      %v3206 = vadd.f32 0.0, %v3205
      %3207 = vmatmul.f32.gmra.mxu0 %v3093
      %v3208 = vpop.f32.mrf.mxu0
      %v3209 = vadd.f32 0.0, %v3208
      %3210 = vmatmul.f32.gmra.mxu0 %v3096
      %v3211 = vpop.f32.mrf.mxu0
      %v3212 = vadd.f32 0.0, %v3211
      %3213 = vmatmul.f32.gmra.mxu0 %v3099
      %v3214 = vpop.f32.mrf.mxu0
      %v3215 = vadd.f32 0.0, %v3214
      %3216 = vmatmul.f32.gmra.mxu0 %v3102
      %v3217 = vpop.f32.mrf.mxu0
      %v3218 = vadd.f32 0.0, %v3217
      %3219 = vmatmul.f32.gmra.mxu0 %v3105
      %v3220 = vpop.f32.mrf.mxu0
      %v3221 = vadd.f32 0.0, %v3220
      %3222 = vmatmul.f32.gmra.mxu0 %v3108
      %v3223 = vpop.f32.mrf.mxu0
      %v3224 = vadd.f32 0.0, %v3223
      %3225 = vmatmul.f32.gmra.mxu0 %v3111
      %v3226 = vpop.f32.mrf.mxu0
      %v3227 = vadd.f32 0.0, %v3226
      %3228 = vmatmul.f32.gmra.mxu0 %v3114
      %v3229 = vpop.f32.mrf.mxu0
      %v3230 = vadd.f32 0.0, %v3229
      %3231 = vmatmul.f32.gmra.mxu0 %v3117
      %v3232 = vpop.f32.mrf.mxu0
      %v3233 = vadd.f32 0.0, %v3232
      %3234 = vmatmul.f32.gmra.mxu0 %v3120
      %v3235 = vpop.f32.mrf.mxu0
      %v3236 = vadd.f32 0.0, %v3235
      %3237 = vmatmul.f32.gmra.mxu0 %v3123
      %v3238 = vpop.f32.mrf.mxu0
      %v3239 = vadd.f32 0.0, %v3238
      %3240 = vmatmul.f32.gmra.mxu0 %v3126
      %v3241 = vpop.f32.mrf.mxu0
      %v3242 = vadd.f32 0.0, %v3241
      %3243 = vmatmul.f32.gmra.mxu0 %v3129
      %v3244 = vpop.f32.mrf.mxu0
      %v3245 = vadd.f32 0.0, %v3244
      %3246 = vmatmul.f32.gmra.mxu0 %v3132
      %v3247 = vpop.f32.mrf.mxu0
      %v3248 = vadd.f32 0.0, %v3247
      %3249 = vmatmul.f32.gmra.mxu0 %v3135
      %v3250 = vpop.f32.mrf.mxu0
      %v3251 = vadd.f32 0.0, %v3250
      %3252 = vmatmul.f32.gmra.mxu0 %v3138
      %v3253 = vpop.f32.mrf.mxu0
      %v3254 = vadd.f32 0.0, %v3253
      %3255 = vmatmul.f32.gmra.mxu0 %v3141
      %v3256 = vpop.f32.mrf.mxu0
      %v3257 = vadd.f32 0.0, %v3256
      %3258 = vdwg.mxu0
      %v3259 = vadd.f32 %v2981, %v3164
      %v3260 = vadd.f32 %v2982, %v3167
      %v3261 = vadd.f32 %v2983, %v3170
      %v3262 = vadd.f32 %v2984, %v3173
      %v3263 = vadd.f32 %v2985, %v3176
      %v3264 = vadd.f32 %v2986, %v3179
      %v3265 = vadd.f32 %v2987, %v3182
      %v3266 = vadd.f32 %v2988, %v3185
      %v3267 = vadd.f32 %v2989, %v3188
      %v3268 = vadd.f32 %v2990, %v3191
      %v3269 = vadd.f32 %v2991, %v3194
      %v3270 = vadd.f32 %v2992, %v3197
      %v3271 = vadd.f32 %v2993, %v3200
      %v3272 = vadd.f32 %v2994, %v3203
      %v3273 = vadd.f32 %v2995, %v3206
      %v3274 = vadd.f32 %v2996, %v3209
      %v3275 = vadd.f32 %v2997, %v3212
      %v3276 = vadd.f32 %v2998, %v3215
      %v3277 = vadd.f32 %v2999, %v3218
      %v3278 = vadd.f32 %v3000, %v3221
      %v3279 = vadd.f32 %v3001, %v3224
      %v3280 = vadd.f32 %v3002, %v3227
      %v3281 = vadd.f32 %v3003, %v3230
      %v3282 = vadd.f32 %v3004, %v3233
      %v3283 = vadd.f32 %v3005, %v3236
      %v3284 = vadd.f32 %v3006, %v3239
      %v3285 = vadd.f32 %v3007, %v3242
      %v3286 = vadd.f32 %v3008, %v3245
      %v3287 = vadd.f32 %v3009, %v3248
      %v3288 = vadd.f32 %v3010, %v3251
      %v3289 = vadd.f32 %v3011, %v3254
      %v3290 = vadd.f32 %v3012, %v3257
      %s3291 = scalar_lea.vmem %s1, 48
      %v3292 = vld [vmem:[%s3291] sm:$0xf]
      %v3294 = vsel %vm335, %v3292, 0
      %3296 = vmatpush.msra.mxu0 0.0
      %3297 = vmatpush.msra.mxu0 0.0
      %3298 = vmatpush.msra.mxu0 0.0
      %3299 = vmatpush.msra.mxu0 0.0
      %3300 = vmatpush.msra.mxu0 0.0
      %3301 = vmatpush.msra.mxu0 0.0
      %3302 = vmatpush.msra.mxu0 0.0
      %3303 = vmatpush.msra.mxu0 0.0
      %3304 = vmatpush.msra.mxu0 0.0
      %3305 = vmatpush.msra.mxu0 0.0
      %3306 = vmatpush.msra.mxu0 0.0
      %3307 = vmatpush.msra.mxu0 0.0
      %3308 = vmatpush.msra.mxu0 0.0
      %3309 = vmatpush.msra.mxu0 0.0
      %3310 = vmatpush.msra.mxu0 0.0
      %3311 = vmatpush.msra.mxu0 %v3294
      %3312 = vmatmul.f32.gmra.mxu0 %v2311
      %v3313 = vpop.f32.mrf.mxu0
      %v3314 = vadd.f32 0.0, %v3313
      %3315 = vmatmul.f32.gmra.mxu0 %v2314
      %v3316 = vpop.f32.mrf.mxu0
      %v3317 = vadd.f32 0.0, %v3316
      %3318 = vmatmul.f32.gmra.mxu0 %v2317
      %v3319 = vpop.f32.mrf.mxu0
      %v3320 = vadd.f32 0.0, %v3319
      %3321 = vmatmul.f32.gmra.mxu0 %v2320
      %v3322 = vpop.f32.mrf.mxu0
      %v3323 = vadd.f32 0.0, %v3322
      %3324 = vmatmul.f32.gmra.mxu0 %v2323
      %v3325 = vpop.f32.mrf.mxu0
      %v3326 = vadd.f32 0.0, %v3325
      %3327 = vmatmul.f32.gmra.mxu0 %v2326
      %v3328 = vpop.f32.mrf.mxu0
      %v3329 = vadd.f32 0.0, %v3328
      %3330 = vmatmul.f32.gmra.mxu0 %v2329
      %v3331 = vpop.f32.mrf.mxu0
      %v3332 = vadd.f32 0.0, %v3331
      %3333 = vmatmul.f32.gmra.mxu0 %v2332
      %v3334 = vpop.f32.mrf.mxu0
      %v3335 = vadd.f32 0.0, %v3334
      %3336 = vmatmul.f32.gmra.mxu0 %v2335
      %v3337 = vpop.f32.mrf.mxu0
      %v3338 = vadd.f32 0.0, %v3337
      %3339 = vmatmul.f32.gmra.mxu0 %v2338
      %v3340 = vpop.f32.mrf.mxu0
      %v3341 = vadd.f32 0.0, %v3340
      %3342 = vmatmul.f32.gmra.mxu0 %v2341
      %v3343 = vpop.f32.mrf.mxu0
      %v3344 = vadd.f32 0.0, %v3343
      %3345 = vmatmul.f32.gmra.mxu0 %v2344
      %v3346 = vpop.f32.mrf.mxu0
      %v3347 = vadd.f32 0.0, %v3346
      %3348 = vmatmul.f32.gmra.mxu0 %v2347
      %v3349 = vpop.f32.mrf.mxu0
      %v3350 = vadd.f32 0.0, %v3349
      %3351 = vmatmul.f32.gmra.mxu0 %v2350
      %v3352 = vpop.f32.mrf.mxu0
      %v3353 = vadd.f32 0.0, %v3352
      %3354 = vmatmul.f32.gmra.mxu0 %v2353
      %v3355 = vpop.f32.mrf.mxu0
      %v3356 = vadd.f32 0.0, %v3355
      %3357 = vmatmul.f32.gmra.mxu0 %v2356
      %v3358 = vpop.f32.mrf.mxu0
      %v3359 = vadd.f32 0.0, %v3358
      %3360 = vmatmul.f32.gmra.mxu0 %v2359
      %v3361 = vpop.f32.mrf.mxu0
      %v3362 = vadd.f32 0.0, %v3361
      %3363 = vmatmul.f32.gmra.mxu0 %v2362
      %v3364 = vpop.f32.mrf.mxu0
      %v3365 = vadd.f32 0.0, %v3364
      %3366 = vmatmul.f32.gmra.mxu0 %v2365
      %v3367 = vpop.f32.mrf.mxu0
      %v3368 = vadd.f32 0.0, %v3367
      %3369 = vmatmul.f32.gmra.mxu0 %v2368
      %v3370 = vpop.f32.mrf.mxu0
      %v3371 = vadd.f32 0.0, %v3370
      %3372 = vmatmul.f32.gmra.mxu0 %v2371
      %v3373 = vpop.f32.mrf.mxu0
      %v3374 = vadd.f32 0.0, %v3373
      %3375 = vmatmul.f32.gmra.mxu0 %v2374
      %v3376 = vpop.f32.mrf.mxu0
      %v3377 = vadd.f32 0.0, %v3376
      %3378 = vmatmul.f32.gmra.mxu0 %v2377
      %v3379 = vpop.f32.mrf.mxu0
      %v3380 = vadd.f32 0.0, %v3379
      %3381 = vmatmul.f32.gmra.mxu0 %v2380
      %v3382 = vpop.f32.mrf.mxu0
      %v3383 = vadd.f32 0.0, %v3382
      %3384 = vmatmul.f32.gmra.mxu0 %v2383
      %v3385 = vpop.f32.mrf.mxu0
      %v3386 = vadd.f32 0.0, %v3385
      %3387 = vmatmul.f32.gmra.mxu0 %v2386
      %v3388 = vpop.f32.mrf.mxu0
      %v3389 = vadd.f32 0.0, %v3388
      %3390 = vmatmul.f32.gmra.mxu0 %v2389
      %v3391 = vpop.f32.mrf.mxu0
      %v3392 = vadd.f32 0.0, %v3391
      %3393 = vmatmul.f32.gmra.mxu0 %v2392
      %v3394 = vpop.f32.mrf.mxu0
      %v3395 = vadd.f32 0.0, %v3394
      %3396 = vmatmul.f32.gmra.mxu0 %v2395
      %v3397 = vpop.f32.mrf.mxu0
      %v3398 = vadd.f32 0.0, %v3397
      %3399 = vmatmul.f32.gmra.mxu0 %v2398
      %v3400 = vpop.f32.mrf.mxu0
      %v3401 = vadd.f32 0.0, %v3400
      %3402 = vmatmul.f32.gmra.mxu0 %v2401
      %v3403 = vpop.f32.mrf.mxu0
      %v3404 = vadd.f32 0.0, %v3403
      %3405 = vmatmul.f32.gmra.mxu0 %v2404
      %v3406 = vpop.f32.mrf.mxu0
      %v3407 = vadd.f32 0.0, %v3406
      %3408 = vdwg.mxu0
      %v3409 = vadd.f32 %v3259, %v3314
      %v3410 = vadd.f32 %v3260, %v3317
      %v3411 = vadd.f32 %v3261, %v3320
      %v3412 = vadd.f32 %v3262, %v3323
      %v3413 = vadd.f32 %v3263, %v3326
      %v3414 = vadd.f32 %v3264, %v3329
      %v3415 = vadd.f32 %v3265, %v3332
      %v3416 = vadd.f32 %v3266, %v3335
      %v3417 = vadd.f32 %v3267, %v3338
      %v3418 = vadd.f32 %v3268, %v3341
      %v3419 = vadd.f32 %v3269, %v3344
      %v3420 = vadd.f32 %v3270, %v3347
      %v3421 = vadd.f32 %v3271, %v3350
      %v3422 = vadd.f32 %v3272, %v3353
      %v3423 = vadd.f32 %v3273, %v3356
      %v3424 = vadd.f32 %v3274, %v3359
      %v3425 = vadd.f32 %v3275, %v3362
      %v3426 = vadd.f32 %v3276, %v3365
      %v3427 = vadd.f32 %v3277, %v3368
      %v3428 = vadd.f32 %v3278, %v3371
      %v3429 = vadd.f32 %v3279, %v3374
      %v3430 = vadd.f32 %v3280, %v3377
      %v3431 = vadd.f32 %v3281, %v3380
      %v3432 = vadd.f32 %v3282, %v3383
      %v3433 = vadd.f32 %v3283, %v3386
      %v3434 = vadd.f32 %v3284, %v3389
      %v3435 = vadd.f32 %v3285, %v3392
      %v3436 = vadd.f32 %v3286, %v3395
      %v3437 = vadd.f32 %v3287, %v3398
      %v3438 = vadd.f32 %v3288, %v3401
      %v3439 = vadd.f32 %v3289, %v3404
      %v3440 = vadd.f32 %v3290, %v3407
      %v3441 = vld [vmem:[%s664 + $0x2] sm:$0xff]
      %v3442 = vld [vmem:[%s664 + $0xa] sm:$0xff]
      %v3443 = vld [vmem:[%s664 + $0x1a] sm:$0xff]
      %v3444 = vld [vmem:[%s664 + $0x22] sm:$0xff]
      %v3445 = vld [vmem:[%s664 + $0x32] sm:$0xff]
      %v3446 = vld [vmem:[%s664 + $0x3a] sm:$0xff]
      %v3447 = vld [vmem:[%s664 + $0x4a] sm:$0xff]
      %v3448 = vld [vmem:[%s664 + $0x52] sm:$0xff]
      %v3449 = vld [vmem:[%s664 + $0x62] sm:$0xff]
      %v3450 = vld [vmem:[%s664 + $0x6a] sm:$0xff]
      %v3451 = vld [vmem:[%s664 + $0x7a] sm:$0xff]
      %v3452 = vld [vmem:[%s664 + $0x82] sm:$0xff]
      %v3453 = vld [vmem:[%s664 + $0x92] sm:$0xff]
      %v3454 = vld [vmem:[%s664 + $0x9a] sm:$0xff]
      %v3455 = vld [vmem:[%s664 + $0xaa] sm:$0xff]
      %v3456 = vld [vmem:[%s664 + $0xb2] sm:$0xff]
      %v3457 = vld [vmem:[%s664 + $0xc2] sm:$0xff]
      %v3458 = vld [vmem:[%s664 + $0xca] sm:$0xff]
      %v3459 = vld [vmem:[%s664 + $0xda] sm:$0xff]
      %v3460 = vld [vmem:[%s664 + $0xe2] sm:$0xff]
      %v3461 = vld [vmem:[%s664 + $0xf2] sm:$0xff]
      %v3462 = vld [vmem:[%s664 + $0xfa] sm:$0xff]
      %v3463 = vld [vmem:[%s664 + $0x10a] sm:$0xff]
      %v3464 = vld [vmem:[%s664 + $0x112] sm:$0xff]
      %v3465 = vld [vmem:[%s664 + $0x122] sm:$0xff]
      %v3466 = vld [vmem:[%s664 + $0x12a] sm:$0xff]
      %v3467 = vld [vmem:[%s664 + $0x13a] sm:$0xff]
      %v3468 = vld [vmem:[%s664 + $0x142] sm:$0xff]
      %v3469 = vld [vmem:[%s664 + $0x152] sm:$0xff]
      %v3470 = vld [vmem:[%s664 + $0x15a] sm:$0xff]
      %v3471 = vld [vmem:[%s664 + $0x16a] sm:$0xff]
      %v3472 = vld [vmem:[%s664 + $0x172] sm:$0xff]
      %s3473 = scalar_lea.vmem %s1, 52
      %v3474 = vld [vmem:[%s3473] sm:$0xf]
      %v3476 = vsel %vm238, %v3441, 0
      %v3479 = vsel %vm238, %v3442, 0
      %v3482 = vsel %vm238, %v3443, 0
      %v3485 = vsel %vm238, %v3444, 0
      %v3488 = vsel %vm238, %v3445, 0
      %v3491 = vsel %vm238, %v3446, 0
      %v3494 = vsel %vm238, %v3447, 0
      %v3497 = vsel %vm238, %v3448, 0
      %v3500 = vsel %vm238, %v3449, 0
      %v3503 = vsel %vm238, %v3450, 0
      %v3506 = vsel %vm238, %v3451, 0
      %v3509 = vsel %vm238, %v3452, 0
      %v3512 = vsel %vm238, %v3453, 0
      %v3515 = vsel %vm238, %v3454, 0
      %v3518 = vsel %vm238, %v3455, 0
      %v3521 = vsel %vm238, %v3456, 0
      %v3524 = vsel %vm238, %v3457, 0
      %v3527 = vsel %vm238, %v3458, 0
      %v3530 = vsel %vm238, %v3459, 0
      %v3533 = vsel %vm238, %v3460, 0
      %v3536 = vsel %vm238, %v3461, 0
      %v3539 = vsel %vm238, %v3462, 0
      %v3542 = vsel %vm238, %v3463, 0
      %v3545 = vsel %vm238, %v3464, 0
      %v3548 = vsel %vm238, %v3465, 0
      %v3551 = vsel %vm238, %v3466, 0
      %v3554 = vsel %vm238, %v3467, 0
      %v3557 = vsel %vm238, %v3468, 0
      %v3560 = vsel %vm238, %v3469, 0
      %v3563 = vsel %vm238, %v3470, 0
      %v3566 = vsel %vm238, %v3471, 0
      %v3569 = vsel %vm238, %v3472, 0
      %v3572 = vsel %vm335, %v3474, 0
      %3574 = vmatpush.msra.mxu0 0.0
      %3575 = vmatpush.msra.mxu0 0.0
      %3576 = vmatpush.msra.mxu0 0.0
      %3577 = vmatpush.msra.mxu0 0.0
      %3578 = vmatpush.msra.mxu0 0.0
      %3579 = vmatpush.msra.mxu0 0.0
      %3580 = vmatpush.msra.mxu0 0.0
      %3581 = vmatpush.msra.mxu0 0.0
      %3582 = vmatpush.msra.mxu0 0.0
      %3583 = vmatpush.msra.mxu0 0.0
      %3584 = vmatpush.msra.mxu0 0.0
      %3585 = vmatpush.msra.mxu0 0.0
      %3586 = vmatpush.msra.mxu0 0.0
      %3587 = vmatpush.msra.mxu0 0.0
      %3588 = vmatpush.msra.mxu0 0.0
      %3589 = vmatpush.msra.mxu0 %v3572
      %3590 = vmatmul.f32.gmra.mxu0 %v3476
      %v3591 = vpop.f32.mrf.mxu0
      %v3592 = vadd.f32 0.0, %v3591
      %3593 = vmatmul.f32.gmra.mxu0 %v3479
      %v3594 = vpop.f32.mrf.mxu0
      %v3595 = vadd.f32 0.0, %v3594
      %3596 = vmatmul.f32.gmra.mxu0 %v3482
      %v3597 = vpop.f32.mrf.mxu0
      %v3598 = vadd.f32 0.0, %v3597
      %3599 = vmatmul.f32.gmra.mxu0 %v3485
      %v3600 = vpop.f32.mrf.mxu0
      %v3601 = vadd.f32 0.0, %v3600
      %3602 = vmatmul.f32.gmra.mxu0 %v3488
      %v3603 = vpop.f32.mrf.mxu0
      %v3604 = vadd.f32 0.0, %v3603
      %3605 = vmatmul.f32.gmra.mxu0 %v3491
      %v3606 = vpop.f32.mrf.mxu0
      %v3607 = vadd.f32 0.0, %v3606
      %3608 = vmatmul.f32.gmra.mxu0 %v3494
      %v3609 = vpop.f32.mrf.mxu0
      %v3610 = vadd.f32 0.0, %v3609
      %3611 = vmatmul.f32.gmra.mxu0 %v3497
      %v3612 = vpop.f32.mrf.mxu0
      %v3613 = vadd.f32 0.0, %v3612
      %3614 = vmatmul.f32.gmra.mxu0 %v3500
      %v3615 = vpop.f32.mrf.mxu0
      %v3616 = vadd.f32 0.0, %v3615
      %3617 = vmatmul.f32.gmra.mxu0 %v3503
      %v3618 = vpop.f32.mrf.mxu0
      %v3619 = vadd.f32 0.0, %v3618
      %3620 = vmatmul.f32.gmra.mxu0 %v3506
      %v3621 = vpop.f32.mrf.mxu0
      %v3622 = vadd.f32 0.0, %v3621
      %3623 = vmatmul.f32.gmra.mxu0 %v3509
      %v3624 = vpop.f32.mrf.mxu0
      %v3625 = vadd.f32 0.0, %v3624
      %3626 = vmatmul.f32.gmra.mxu0 %v3512
      %v3627 = vpop.f32.mrf.mxu0
      %v3628 = vadd.f32 0.0, %v3627
      %3629 = vmatmul.f32.gmra.mxu0 %v3515
      %v3630 = vpop.f32.mrf.mxu0
      %v3631 = vadd.f32 0.0, %v3630
      %3632 = vmatmul.f32.gmra.mxu0 %v3518
      %v3633 = vpop.f32.mrf.mxu0
      %v3634 = vadd.f32 0.0, %v3633
      %3635 = vmatmul.f32.gmra.mxu0 %v3521
      %v3636 = vpop.f32.mrf.mxu0
      %v3637 = vadd.f32 0.0, %v3636
      %3638 = vmatmul.f32.gmra.mxu0 %v3524
      %v3639 = vpop.f32.mrf.mxu0
      %v3640 = vadd.f32 0.0, %v3639
      %3641 = vmatmul.f32.gmra.mxu0 %v3527
      %v3642 = vpop.f32.mrf.mxu0
      %v3643 = vadd.f32 0.0, %v3642
      %3644 = vmatmul.f32.gmra.mxu0 %v3530
      %v3645 = vpop.f32.mrf.mxu0
      %v3646 = vadd.f32 0.0, %v3645
      %3647 = vmatmul.f32.gmra.mxu0 %v3533
      %v3648 = vpop.f32.mrf.mxu0
      %v3649 = vadd.f32 0.0, %v3648
      %3650 = vmatmul.f32.gmra.mxu0 %v3536
      %v3651 = vpop.f32.mrf.mxu0
      %v3652 = vadd.f32 0.0, %v3651
      %3653 = vmatmul.f32.gmra.mxu0 %v3539
      %v3654 = vpop.f32.mrf.mxu0
      %v3655 = vadd.f32 0.0, %v3654
      %3656 = vmatmul.f32.gmra.mxu0 %v3542
      %v3657 = vpop.f32.mrf.mxu0
      %v3658 = vadd.f32 0.0, %v3657
      %3659 = vmatmul.f32.gmra.mxu0 %v3545
      %v3660 = vpop.f32.mrf.mxu0
      %v3661 = vadd.f32 0.0, %v3660
      %3662 = vmatmul.f32.gmra.mxu0 %v3548
      %v3663 = vpop.f32.mrf.mxu0
      %v3664 = vadd.f32 0.0, %v3663
      %3665 = vmatmul.f32.gmra.mxu0 %v3551
      %v3666 = vpop.f32.mrf.mxu0
      %v3667 = vadd.f32 0.0, %v3666
      %3668 = vmatmul.f32.gmra.mxu0 %v3554
      %v3669 = vpop.f32.mrf.mxu0
      %v3670 = vadd.f32 0.0, %v3669
      %3671 = vmatmul.f32.gmra.mxu0 %v3557
      %v3672 = vpop.f32.mrf.mxu0
      %v3673 = vadd.f32 0.0, %v3672
      %3674 = vmatmul.f32.gmra.mxu0 %v3560
      %v3675 = vpop.f32.mrf.mxu0
      %v3676 = vadd.f32 0.0, %v3675
      %3677 = vmatmul.f32.gmra.mxu0 %v3563
      %v3678 = vpop.f32.mrf.mxu0
      %v3679 = vadd.f32 0.0, %v3678
      %3680 = vmatmul.f32.gmra.mxu0 %v3566
      %v3681 = vpop.f32.mrf.mxu0
      %v3682 = vadd.f32 0.0, %v3681
      %3683 = vmatmul.f32.gmra.mxu0 %v3569
      %v3684 = vpop.f32.mrf.mxu0
      %v3685 = vadd.f32 0.0, %v3684
      %3686 = vdwg.mxu0
      %v3687 = vadd.f32 %v3409, %v3592
      %v3688 = vadd.f32 %v3410, %v3595
      %v3689 = vadd.f32 %v3411, %v3598
      %v3690 = vadd.f32 %v3412, %v3601
      %v3691 = vadd.f32 %v3413, %v3604
      %v3692 = vadd.f32 %v3414, %v3607
      %v3693 = vadd.f32 %v3415, %v3610
      %v3694 = vadd.f32 %v3416, %v3613
      %v3695 = vadd.f32 %v3417, %v3616
      %v3696 = vadd.f32 %v3418, %v3619
      %v3697 = vadd.f32 %v3419, %v3622
      %v3698 = vadd.f32 %v3420, %v3625
      %v3699 = vadd.f32 %v3421, %v3628
      %v3700 = vadd.f32 %v3422, %v3631
      %v3701 = vadd.f32 %v3423, %v3634
      %v3702 = vadd.f32 %v3424, %v3637
      %v3703 = vadd.f32 %v3425, %v3640
      %v3704 = vadd.f32 %v3426, %v3643
      %v3705 = vadd.f32 %v3427, %v3646
      %v3706 = vadd.f32 %v3428, %v3649
      %v3707 = vadd.f32 %v3429, %v3652
      %v3708 = vadd.f32 %v3430, %v3655
      %v3709 = vadd.f32 %v3431, %v3658
      %v3710 = vadd.f32 %v3432, %v3661
      %v3711 = vadd.f32 %v3433, %v3664
      %v3712 = vadd.f32 %v3434, %v3667
      %v3713 = vadd.f32 %v3435, %v3670
      %v3714 = vadd.f32 %v3436, %v3673
      %v3715 = vadd.f32 %v3437, %v3676
      %v3716 = vadd.f32 %v3438, %v3679
      %v3717 = vadd.f32 %v3439, %v3682
      %v3718 = vadd.f32 %v3440, %v3685
      %s3719 = scalar_lea.vmem %s1, 56
      %v3720 = vld [vmem:[%s3719] sm:$0xf]
      %v3722 = vsel %vm335, %v3720, 0
      %3724 = vmatpush.msra.mxu0 0.0
      %3725 = vmatpush.msra.mxu0 0.0
      %3726 = vmatpush.msra.mxu0 0.0
      %3727 = vmatpush.msra.mxu0 0.0
      %3728 = vmatpush.msra.mxu0 0.0
      %3729 = vmatpush.msra.mxu0 0.0
      %3730 = vmatpush.msra.mxu0 0.0
      %3731 = vmatpush.msra.mxu0 0.0
      %3732 = vmatpush.msra.mxu0 0.0
      %3733 = vmatpush.msra.mxu0 0.0
      %3734 = vmatpush.msra.mxu0 0.0
      %3735 = vmatpush.msra.mxu0 0.0
      %3736 = vmatpush.msra.mxu0 0.0
      %3737 = vmatpush.msra.mxu0 0.0
      %3738 = vmatpush.msra.mxu0 0.0
      %3739 = vmatpush.msra.mxu0 %v3722
      %3740 = vmatmul.f32.gmra.mxu0 %v3048
      %v3741 = vpop.f32.mrf.mxu0
      %v3742 = vadd.f32 0.0, %v3741
      %3743 = vmatmul.f32.gmra.mxu0 %v3051
      %v3744 = vpop.f32.mrf.mxu0
      %v3745 = vadd.f32 0.0, %v3744
      %3746 = vmatmul.f32.gmra.mxu0 %v3054
      %v3747 = vpop.f32.mrf.mxu0
      %v3748 = vadd.f32 0.0, %v3747
      %3749 = vmatmul.f32.gmra.mxu0 %v3057
      %v3750 = vpop.f32.mrf.mxu0
      %v3751 = vadd.f32 0.0, %v3750
      %3752 = vmatmul.f32.gmra.mxu0 %v3060
      %v3753 = vpop.f32.mrf.mxu0
      %v3754 = vadd.f32 0.0, %v3753
      %3755 = vmatmul.f32.gmra.mxu0 %v3063
      %v3756 = vpop.f32.mrf.mxu0
      %v3757 = vadd.f32 0.0, %v3756
      %3758 = vmatmul.f32.gmra.mxu0 %v3066
      %v3759 = vpop.f32.mrf.mxu0
      %v3760 = vadd.f32 0.0, %v3759
      %3761 = vmatmul.f32.gmra.mxu0 %v3069
      %v3762 = vpop.f32.mrf.mxu0
      %v3763 = vadd.f32 0.0, %v3762
      %3764 = vmatmul.f32.gmra.mxu0 %v3072
      %v3765 = vpop.f32.mrf.mxu0
      %v3766 = vadd.f32 0.0, %v3765
      %3767 = vmatmul.f32.gmra.mxu0 %v3075
      %v3768 = vpop.f32.mrf.mxu0
      %v3769 = vadd.f32 0.0, %v3768
      %3770 = vmatmul.f32.gmra.mxu0 %v3078
      %v3771 = vpop.f32.mrf.mxu0
      %v3772 = vadd.f32 0.0, %v3771
      %3773 = vmatmul.f32.gmra.mxu0 %v3081
      %v3774 = vpop.f32.mrf.mxu0
      %v3775 = vadd.f32 0.0, %v3774
      %3776 = vmatmul.f32.gmra.mxu0 %v3084
      %v3777 = vpop.f32.mrf.mxu0
      %v3778 = vadd.f32 0.0, %v3777
      %3779 = vmatmul.f32.gmra.mxu0 %v3087
      %v3780 = vpop.f32.mrf.mxu0
      %v3781 = vadd.f32 0.0, %v3780
      %3782 = vmatmul.f32.gmra.mxu0 %v3090
      %v3783 = vpop.f32.mrf.mxu0
      %v3784 = vadd.f32 0.0, %v3783
      %3785 = vmatmul.f32.gmra.mxu0 %v3093
      %v3786 = vpop.f32.mrf.mxu0
      %v3787 = vadd.f32 0.0, %v3786
      %3788 = vmatmul.f32.gmra.mxu0 %v3096
      %v3789 = vpop.f32.mrf.mxu0
      %v3790 = vadd.f32 0.0, %v3789
      %3791 = vmatmul.f32.gmra.mxu0 %v3099
      %v3792 = vpop.f32.mrf.mxu0
      %v3793 = vadd.f32 0.0, %v3792
      %3794 = vmatmul.f32.gmra.mxu0 %v3102
      %v3795 = vpop.f32.mrf.mxu0
      %v3796 = vadd.f32 0.0, %v3795
      %3797 = vmatmul.f32.gmra.mxu0 %v3105
      %v3798 = vpop.f32.mrf.mxu0
      %v3799 = vadd.f32 0.0, %v3798
      %3800 = vmatmul.f32.gmra.mxu0 %v3108
      %v3801 = vpop.f32.mrf.mxu0
      %v3802 = vadd.f32 0.0, %v3801
      %3803 = vmatmul.f32.gmra.mxu0 %v3111
      %v3804 = vpop.f32.mrf.mxu0
      %v3805 = vadd.f32 0.0, %v3804
      %3806 = vmatmul.f32.gmra.mxu0 %v3114
      %v3807 = vpop.f32.mrf.mxu0
      %v3808 = vadd.f32 0.0, %v3807
      %3809 = vmatmul.f32.gmra.mxu0 %v3117
      %v3810 = vpop.f32.mrf.mxu0
      %v3811 = vadd.f32 0.0, %v3810
      %3812 = vmatmul.f32.gmra.mxu0 %v3120
      %v3813 = vpop.f32.mrf.mxu0
      %v3814 = vadd.f32 0.0, %v3813
      %3815 = vmatmul.f32.gmra.mxu0 %v3123
      %v3816 = vpop.f32.mrf.mxu0
      %v3817 = vadd.f32 0.0, %v3816
      %3818 = vmatmul.f32.gmra.mxu0 %v3126
      %v3819 = vpop.f32.mrf.mxu0
      %v3820 = vadd.f32 0.0, %v3819
      %3821 = vmatmul.f32.gmra.mxu0 %v3129
      %v3822 = vpop.f32.mrf.mxu0
      %v3823 = vadd.f32 0.0, %v3822
      %3824 = vmatmul.f32.gmra.mxu0 %v3132
      %v3825 = vpop.f32.mrf.mxu0
      %v3826 = vadd.f32 0.0, %v3825
      %3827 = vmatmul.f32.gmra.mxu0 %v3135
      %v3828 = vpop.f32.mrf.mxu0
      %v3829 = vadd.f32 0.0, %v3828
      %3830 = vmatmul.f32.gmra.mxu0 %v3138
      %v3831 = vpop.f32.mrf.mxu0
      %v3832 = vadd.f32 0.0, %v3831
      %3833 = vmatmul.f32.gmra.mxu0 %v3141
      %v3834 = vpop.f32.mrf.mxu0
      %v3835 = vadd.f32 0.0, %v3834
      %3836 = vdwg.mxu0
      %v3837 = vadd.f32 %v3687, %v3742
      %v3838 = vadd.f32 %v3688, %v3745
      %v3839 = vadd.f32 %v3689, %v3748
      %v3840 = vadd.f32 %v3690, %v3751
      %v3841 = vadd.f32 %v3691, %v3754
      %v3842 = vadd.f32 %v3692, %v3757
      %v3843 = vadd.f32 %v3693, %v3760
      %v3844 = vadd.f32 %v3694, %v3763
      %v3845 = vadd.f32 %v3695, %v3766
      %v3846 = vadd.f32 %v3696, %v3769
      %v3847 = vadd.f32 %v3697, %v3772
      %v3848 = vadd.f32 %v3698, %v3775
      %v3849 = vadd.f32 %v3699, %v3778
      %v3850 = vadd.f32 %v3700, %v3781
      %v3851 = vadd.f32 %v3701, %v3784
      %v3852 = vadd.f32 %v3702, %v3787
      %v3853 = vadd.f32 %v3703, %v3790
      %v3854 = vadd.f32 %v3704, %v3793
      %v3855 = vadd.f32 %v3705, %v3796
      %v3856 = vadd.f32 %v3706, %v3799
      %v3857 = vadd.f32 %v3707, %v3802
      %v3858 = vadd.f32 %v3708, %v3805
      %v3859 = vadd.f32 %v3709, %v3808
      %v3860 = vadd.f32 %v3710, %v3811
      %v3861 = vadd.f32 %v3711, %v3814
      %v3862 = vadd.f32 %v3712, %v3817
      %v3863 = vadd.f32 %v3713, %v3820
      %v3864 = vadd.f32 %v3714, %v3823
      %v3865 = vadd.f32 %v3715, %v3826
      %v3866 = vadd.f32 %v3716, %v3829
      %v3867 = vadd.f32 %v3717, %v3832
      %v3868 = vadd.f32 %v3718, %v3835
      %v3869 = vld [vmem:[%s2734 + $0x2] sm:$0xff]
      %v3870 = vld [vmem:[%s2734 + $0xa] sm:$0xff]
      %v3871 = vld [vmem:[%s2734 + $0x1a] sm:$0xff]
      %v3872 = vld [vmem:[%s2734 + $0x22] sm:$0xff]
      %v3873 = vld [vmem:[%s2734 + $0x32] sm:$0xff]
      %v3874 = vld [vmem:[%s2734 + $0x3a] sm:$0xff]
      %v3875 = vld [vmem:[%s2734 + $0x4a] sm:$0xff]
      %v3876 = vld [vmem:[%s2734 + $0x52] sm:$0xff]
      %v3877 = vld [vmem:[%s2734 + $0x62] sm:$0xff]
      %v3878 = vld [vmem:[%s2734 + $0x6a] sm:$0xff]
      %v3879 = vld [vmem:[%s2734 + $0x7a] sm:$0xff]
      %v3880 = vld [vmem:[%s2734 + $0x82] sm:$0xff]
      %v3881 = vld [vmem:[%s2734 + $0x92] sm:$0xff]
      %v3882 = vld [vmem:[%s2734 + $0x9a] sm:$0xff]
      %v3883 = vld [vmem:[%s2734 + $0xaa] sm:$0xff]
      %v3884 = vld [vmem:[%s2734 + $0xb2] sm:$0xff]
      %v3885 = vld [vmem:[%s2734 + $0xc2] sm:$0xff]
      %v3886 = vld [vmem:[%s2734 + $0xca] sm:$0xff]
      %v3887 = vld [vmem:[%s2734 + $0xda] sm:$0xff]
      %v3888 = vld [vmem:[%s2734 + $0xe2] sm:$0xff]
      %v3889 = vld [vmem:[%s2734 + $0xf2] sm:$0xff]
      %v3890 = vld [vmem:[%s2734 + $0xfa] sm:$0xff]
      %v3891 = vld [vmem:[%s2734 + $0x10a] sm:$0xff]
      %v3892 = vld [vmem:[%s2734 + $0x112] sm:$0xff]
      %v3893 = vld [vmem:[%s2734 + $0x122] sm:$0xff]
      %v3894 = vld [vmem:[%s2734 + $0x12a] sm:$0xff]
      %v3895 = vld [vmem:[%s2734 + $0x13a] sm:$0xff]
      %v3896 = vld [vmem:[%s2734 + $0x142] sm:$0xff]
      %v3897 = vld [vmem:[%s2734 + $0x152] sm:$0xff]
      %v3898 = vld [vmem:[%s2734 + $0x15a] sm:$0xff]
      %v3899 = vld [vmem:[%s2734 + $0x16a] sm:$0xff]
      %v3900 = vld [vmem:[%s2734 + $0x172] sm:$0xff]
      %s3901 = scalar_lea.vmem %s1, 60
      %v3902 = vld [vmem:[%s3901] sm:$0xf]
      %v3904 = vsel %vm238, %v3869, 0
      %v3907 = vsel %vm238, %v3870, 0
      %v3910 = vsel %vm238, %v3871, 0
      %v3913 = vsel %vm238, %v3872, 0
      %v3916 = vsel %vm238, %v3873, 0
      %v3919 = vsel %vm238, %v3874, 0
      %v3922 = vsel %vm238, %v3875, 0
      %v3925 = vsel %vm238, %v3876, 0
      %v3928 = vsel %vm238, %v3877, 0
      %v3931 = vsel %vm238, %v3878, 0
      %v3934 = vsel %vm238, %v3879, 0
      %v3937 = vsel %vm238, %v3880, 0
      %v3940 = vsel %vm238, %v3881, 0
      %v3943 = vsel %vm238, %v3882, 0
      %v3946 = vsel %vm238, %v3883, 0
      %v3949 = vsel %vm238, %v3884, 0
      %v3952 = vsel %vm238, %v3885, 0
      %v3955 = vsel %vm238, %v3886, 0
      %v3958 = vsel %vm238, %v3887, 0
      %v3961 = vsel %vm238, %v3888, 0
      %v3964 = vsel %vm238, %v3889, 0
      %v3967 = vsel %vm238, %v3890, 0
      %v3970 = vsel %vm238, %v3891, 0
      %v3973 = vsel %vm238, %v3892, 0
      %v3976 = vsel %vm238, %v3893, 0
      %v3979 = vsel %vm238, %v3894, 0
      %v3982 = vsel %vm238, %v3895, 0
      %v3985 = vsel %vm238, %v3896, 0
      %v3988 = vsel %vm238, %v3897, 0
      %v3991 = vsel %vm238, %v3898, 0
      %v3994 = vsel %vm238, %v3899, 0
      %v3997 = vsel %vm238, %v3900, 0
      %v4000 = vsel %vm335, %v3902, 0
      %4002 = vmatpush.msra.mxu0 0.0
      %4003 = vmatpush.msra.mxu0 0.0
      %4004 = vmatpush.msra.mxu0 0.0
      %4005 = vmatpush.msra.mxu0 0.0
      %4006 = vmatpush.msra.mxu0 0.0
      %4007 = vmatpush.msra.mxu0 0.0
      %4008 = vmatpush.msra.mxu0 0.0
      %4009 = vmatpush.msra.mxu0 0.0
      %4010 = vmatpush.msra.mxu0 0.0
      %4011 = vmatpush.msra.mxu0 0.0
      %4012 = vmatpush.msra.mxu0 0.0
      %4013 = vmatpush.msra.mxu0 0.0
      %4014 = vmatpush.msra.mxu0 0.0
      %4015 = vmatpush.msra.mxu0 0.0
      %4016 = vmatpush.msra.mxu0 0.0
      %4017 = vmatpush.msra.mxu0 %v4000
      %4018 = vmatmul.f32.gmra.mxu0 %v3904
      %v4019 = vpop.f32.mrf.mxu0
      %v4020 = vadd.f32 0.0, %v4019
      %4021 = vmatmul.f32.gmra.mxu0 %v3907
      %v4022 = vpop.f32.mrf.mxu0
      %v4023 = vadd.f32 0.0, %v4022
      %4024 = vmatmul.f32.gmra.mxu0 %v3910
      %v4025 = vpop.f32.mrf.mxu0
      %v4026 = vadd.f32 0.0, %v4025
      %4027 = vmatmul.f32.gmra.mxu0 %v3913
      %v4028 = vpop.f32.mrf.mxu0
      %v4029 = vadd.f32 0.0, %v4028
      %4030 = vmatmul.f32.gmra.mxu0 %v3916
      %v4031 = vpop.f32.mrf.mxu0
      %v4032 = vadd.f32 0.0, %v4031
      %4033 = vmatmul.f32.gmra.mxu0 %v3919
      %v4034 = vpop.f32.mrf.mxu0
      %v4035 = vadd.f32 0.0, %v4034
      %4036 = vmatmul.f32.gmra.mxu0 %v3922
      %v4037 = vpop.f32.mrf.mxu0
      %v4038 = vadd.f32 0.0, %v4037
      %4039 = vmatmul.f32.gmra.mxu0 %v3925
      %v4040 = vpop.f32.mrf.mxu0
      %v4041 = vadd.f32 0.0, %v4040
      %4042 = vmatmul.f32.gmra.mxu0 %v3928
      %v4043 = vpop.f32.mrf.mxu0
      %v4044 = vadd.f32 0.0, %v4043
      %4045 = vmatmul.f32.gmra.mxu0 %v3931
      %v4046 = vpop.f32.mrf.mxu0
      %v4047 = vadd.f32 0.0, %v4046
      %4048 = vmatmul.f32.gmra.mxu0 %v3934
      %v4049 = vpop.f32.mrf.mxu0
      %v4050 = vadd.f32 0.0, %v4049
      %4051 = vmatmul.f32.gmra.mxu0 %v3937
      %v4052 = vpop.f32.mrf.mxu0
      %v4053 = vadd.f32 0.0, %v4052
      %4054 = vmatmul.f32.gmra.mxu0 %v3940
      %v4055 = vpop.f32.mrf.mxu0
      %v4056 = vadd.f32 0.0, %v4055
      %4057 = vmatmul.f32.gmra.mxu0 %v3943
      %v4058 = vpop.f32.mrf.mxu0
      %v4059 = vadd.f32 0.0, %v4058
      %4060 = vmatmul.f32.gmra.mxu0 %v3946
      %v4061 = vpop.f32.mrf.mxu0
      %v4062 = vadd.f32 0.0, %v4061
      %4063 = vmatmul.f32.gmra.mxu0 %v3949
      %v4064 = vpop.f32.mrf.mxu0
      %v4065 = vadd.f32 0.0, %v4064
      %4066 = vmatmul.f32.gmra.mxu0 %v3952
      %v4067 = vpop.f32.mrf.mxu0
      %v4068 = vadd.f32 0.0, %v4067
      %4069 = vmatmul.f32.gmra.mxu0 %v3955
      %v4070 = vpop.f32.mrf.mxu0
      %v4071 = vadd.f32 0.0, %v4070
      %4072 = vmatmul.f32.gmra.mxu0 %v3958
      %v4073 = vpop.f32.mrf.mxu0
      %v4074 = vadd.f32 0.0, %v4073
      %4075 = vmatmul.f32.gmra.mxu0 %v3961
      %v4076 = vpop.f32.mrf.mxu0
      %v4077 = vadd.f32 0.0, %v4076
      %4078 = vmatmul.f32.gmra.mxu0 %v3964
      %v4079 = vpop.f32.mrf.mxu0
      %v4080 = vadd.f32 0.0, %v4079
      %4081 = vmatmul.f32.gmra.mxu0 %v3967
      %v4082 = vpop.f32.mrf.mxu0
      %v4083 = vadd.f32 0.0, %v4082
      %4084 = vmatmul.f32.gmra.mxu0 %v3970
      %v4085 = vpop.f32.mrf.mxu0
      %v4086 = vadd.f32 0.0, %v4085
      %4087 = vmatmul.f32.gmra.mxu0 %v3973
      %v4088 = vpop.f32.mrf.mxu0
      %v4089 = vadd.f32 0.0, %v4088
      %4090 = vmatmul.f32.gmra.mxu0 %v3976
      %v4091 = vpop.f32.mrf.mxu0
      %v4092 = vadd.f32 0.0, %v4091
      %4093 = vmatmul.f32.gmra.mxu0 %v3979
      %v4094 = vpop.f32.mrf.mxu0
      %v4095 = vadd.f32 0.0, %v4094
      %4096 = vmatmul.f32.gmra.mxu0 %v3982
      %v4097 = vpop.f32.mrf.mxu0
      %v4098 = vadd.f32 0.0, %v4097
      %4099 = vmatmul.f32.gmra.mxu0 %v3985
      %v4100 = vpop.f32.mrf.mxu0
      %v4101 = vadd.f32 0.0, %v4100
      %4102 = vmatmul.f32.gmra.mxu0 %v3988
      %v4103 = vpop.f32.mrf.mxu0
      %v4104 = vadd.f32 0.0, %v4103
      %4105 = vmatmul.f32.gmra.mxu0 %v3991
      %v4106 = vpop.f32.mrf.mxu0
      %v4107 = vadd.f32 0.0, %v4106
      %4108 = vmatmul.f32.gmra.mxu0 %v3994
      %v4109 = vpop.f32.mrf.mxu0
      %v4110 = vadd.f32 0.0, %v4109
      %4111 = vmatmul.f32.gmra.mxu0 %v3997
      %v4112 = vpop.f32.mrf.mxu0
      %v4113 = vadd.f32 0.0, %v4112
      %4114 = vdwg.mxu0
      %v4115 = vadd.f32 %v3837, %v4020
      %v4116 = vadd.f32 %v3838, %v4023
      %v4117 = vadd.f32 %v3839, %v4026
      %v4118 = vadd.f32 %v3840, %v4029
      %v4119 = vadd.f32 %v3841, %v4032
      %v4120 = vadd.f32 %v3842, %v4035
      %v4121 = vadd.f32 %v3843, %v4038
      %v4122 = vadd.f32 %v3844, %v4041
      %v4123 = vadd.f32 %v3845, %v4044
      %v4124 = vadd.f32 %v3846, %v4047
      %v4125 = vadd.f32 %v3847, %v4050
      %v4126 = vadd.f32 %v3848, %v4053
      %v4127 = vadd.f32 %v3849, %v4056
      %v4128 = vadd.f32 %v3850, %v4059
      %v4129 = vadd.f32 %v3851, %v4062
      %v4130 = vadd.f32 %v3852, %v4065
      %v4131 = vadd.f32 %v3853, %v4068
      %v4132 = vadd.f32 %v3854, %v4071
      %v4133 = vadd.f32 %v3855, %v4074
      %v4134 = vadd.f32 %v3856, %v4077
      %v4135 = vadd.f32 %v3857, %v4080
      %v4136 = vadd.f32 %v3858, %v4083
      %v4137 = vadd.f32 %v3859, %v4086
      %v4138 = vadd.f32 %v3860, %v4089
      %v4139 = vadd.f32 %v3861, %v4092
      %v4140 = vadd.f32 %v3862, %v4095
      %v4141 = vadd.f32 %v3863, %v4098
      %v4142 = vadd.f32 %v3864, %v4101
      %v4143 = vadd.f32 %v3865, %v4104
      %v4144 = vadd.f32 %v3866, %v4107
      %v4145 = vadd.f32 %v3867, %v4110
      %v4146 = vadd.f32 %v3868, %v4113
      %v4147 = vld [vmem:[%s2] sm:$0x1]
      %v4149 = vperm.slane %v4147, 0
      %v4151 = vadd.f32 %v4115, %v4149
      %v4152 = vadd.f32 %v4116, %v4149
      %v4153 = vadd.f32 %v4117, %v4149
      %v4154 = vadd.f32 %v4118, %v4149
      %v4155 = vadd.f32 %v4119, %v4149
      %v4156 = vadd.f32 %v4120, %v4149
      %v4157 = vadd.f32 %v4121, %v4149
      %v4158 = vadd.f32 %v4122, %v4149
      %v4159 = vadd.f32 %v4123, %v4149
      %v4160 = vadd.f32 %v4124, %v4149
      %v4161 = vadd.f32 %v4125, %v4149
      %v4162 = vadd.f32 %v4126, %v4149
      %v4163 = vadd.f32 %v4127, %v4149
      %v4164 = vadd.f32 %v4128, %v4149
      %v4165 = vadd.f32 %v4129, %v4149
      %v4166 = vadd.f32 %v4130, %v4149
      %v4167 = vadd.f32 %v4131, %v4149
      %v4168 = vadd.f32 %v4132, %v4149
      %v4169 = vadd.f32 %v4133, %v4149
      %v4170 = vadd.f32 %v4134, %v4149
      %v4171 = vadd.f32 %v4135, %v4149
      %v4172 = vadd.f32 %v4136, %v4149
      %v4173 = vadd.f32 %v4137, %v4149
      %v4174 = vadd.f32 %v4138, %v4149
      %v4175 = vadd.f32 %v4139, %v4149
      %v4176 = vadd.f32 %v4140, %v4149
      %v4177 = vadd.f32 %v4141, %v4149
      %v4178 = vadd.f32 %v4142, %v4149
      %v4179 = vadd.f32 %v4143, %v4149
      %v4180 = vadd.f32 %v4144, %v4149
      %v4181 = vadd.f32 %v4145, %v4149
      %v4182 = vadd.f32 %v4146, %v4149
      %vm4183 = vcmp.gt.f32.partialorder %v4151, 0.0
      %vm4184 = vcmp.gt.f32.partialorder %v4152, 0.0
      %vm4185 = vcmp.gt.f32.partialorder %v4153, 0.0
      %vm4186 = vcmp.gt.f32.partialorder %v4154, 0.0
      %vm4187 = vcmp.gt.f32.partialorder %v4155, 0.0
      %vm4188 = vcmp.gt.f32.partialorder %v4156, 0.0
      %vm4189 = vcmp.gt.f32.partialorder %v4157, 0.0
      %vm4190 = vcmp.gt.f32.partialorder %v4158, 0.0
      %vm4191 = vcmp.gt.f32.partialorder %v4159, 0.0
      %vm4192 = vcmp.gt.f32.partialorder %v4160, 0.0
      %vm4193 = vcmp.gt.f32.partialorder %v4161, 0.0
      %vm4194 = vcmp.gt.f32.partialorder %v4162, 0.0
      %vm4195 = vcmp.gt.f32.partialorder %v4163, 0.0
      %vm4196 = vcmp.gt.f32.partialorder %v4164, 0.0
      %vm4197 = vcmp.gt.f32.partialorder %v4165, 0.0
      %vm4198 = vcmp.gt.f32.partialorder %v4166, 0.0
      %vm4199 = vcmp.gt.f32.partialorder %v4167, 0.0
      %vm4200 = vcmp.gt.f32.partialorder %v4168, 0.0
      %vm4201 = vcmp.gt.f32.partialorder %v4169, 0.0
      %vm4202 = vcmp.gt.f32.partialorder %v4170, 0.0
      %vm4203 = vcmp.gt.f32.partialorder %v4171, 0.0
      %vm4204 = vcmp.gt.f32.partialorder %v4172, 0.0
      %vm4205 = vcmp.gt.f32.partialorder %v4173, 0.0
      %vm4206 = vcmp.gt.f32.partialorder %v4174, 0.0
      %vm4207 = vcmp.gt.f32.partialorder %v4175, 0.0
      %vm4208 = vcmp.gt.f32.partialorder %v4176, 0.0
      %vm4209 = vcmp.gt.f32.partialorder %v4177, 0.0
      %vm4210 = vcmp.gt.f32.partialorder %v4178, 0.0
      %vm4211 = vcmp.gt.f32.partialorder %v4179, 0.0
      %vm4212 = vcmp.gt.f32.partialorder %v4180, 0.0
      %vm4213 = vcmp.gt.f32.partialorder %v4181, 0.0
      %vm4214 = vcmp.gt.f32.partialorder %v4182, 0.0
      %v4215 = vmul.f32 %v4151, 0.2
      %v4216 = vmul.f32 %v4152, 0.2
      %v4217 = vmul.f32 %v4153, 0.2
      %v4218 = vmul.f32 %v4154, 0.2
      %v4219 = vmul.f32 %v4155, 0.2
      %v4220 = vmul.f32 %v4156, 0.2
      %v4221 = vmul.f32 %v4157, 0.2
      %v4222 = vmul.f32 %v4158, 0.2
      %v4223 = vmul.f32 %v4159, 0.2
      %v4224 = vmul.f32 %v4160, 0.2
      %v4225 = vmul.f32 %v4161, 0.2
      %v4226 = vmul.f32 %v4162, 0.2
      %v4227 = vmul.f32 %v4163, 0.2
      %v4228 = vmul.f32 %v4164, 0.2
      %v4229 = vmul.f32 %v4165, 0.2
      %v4230 = vmul.f32 %v4166, 0.2
      %v4231 = vmul.f32 %v4167, 0.2
      %v4232 = vmul.f32 %v4168, 0.2
      %v4233 = vmul.f32 %v4169, 0.2
      %v4234 = vmul.f32 %v4170, 0.2
      %v4235 = vmul.f32 %v4171, 0.2
      %v4236 = vmul.f32 %v4172, 0.2
      %v4237 = vmul.f32 %v4173, 0.2
      %v4238 = vmul.f32 %v4174, 0.2
      %v4239 = vmul.f32 %v4175, 0.2
      %v4240 = vmul.f32 %v4176, 0.2
      %v4241 = vmul.f32 %v4177, 0.2
      %v4242 = vmul.f32 %v4178, 0.2
      %v4243 = vmul.f32 %v4179, 0.2
      %v4244 = vmul.f32 %v4180, 0.2
      %v4245 = vmul.f32 %v4181, 0.2
      %v4246 = vmul.f32 %v4182, 0.2
      %v4247 = vsel %vm4183, %v4151, %v4215
      %v4248 = vsel %vm4184, %v4152, %v4216
      %v4249 = vsel %vm4185, %v4153, %v4217
      %v4250 = vsel %vm4186, %v4154, %v4218
      %v4251 = vsel %vm4187, %v4155, %v4219
      %v4252 = vsel %vm4188, %v4156, %v4220
      %v4253 = vsel %vm4189, %v4157, %v4221
      %v4254 = vsel %vm4190, %v4158, %v4222
      %v4255 = vsel %vm4191, %v4159, %v4223
      %v4256 = vsel %vm4192, %v4160, %v4224
      %v4257 = vsel %vm4193, %v4161, %v4225
      %v4258 = vsel %vm4194, %v4162, %v4226
      %v4259 = vsel %vm4195, %v4163, %v4227
      %v4260 = vsel %vm4196, %v4164, %v4228
      %v4261 = vsel %vm4197, %v4165, %v4229
      %v4262 = vsel %vm4198, %v4166, %v4230
      %v4263 = vsel %vm4199, %v4167, %v4231
      %v4264 = vsel %vm4200, %v4168, %v4232
      %v4265 = vsel %vm4201, %v4169, %v4233
      %v4266 = vsel %vm4202, %v4170, %v4234
      %v4267 = vsel %vm4203, %v4171, %v4235
      %v4268 = vsel %vm4204, %v4172, %v4236
      %v4269 = vsel %vm4205, %v4173, %v4237
      %v4270 = vsel %vm4206, %v4174, %v4238
      %v4271 = vsel %vm4207, %v4175, %v4239
      %v4272 = vsel %vm4208, %v4176, %v4240
      %v4273 = vsel %vm4209, %v4177, %v4241
      %v4274 = vsel %vm4210, %v4178, %v4242
      %v4275 = vsel %vm4211, %v4179, %v4243
      %v4276 = vsel %vm4212, %v4180, %v4244
      %v4277 = vsel %vm4213, %v4181, %v4245
      %v4278 = vsel %vm4214, %v4182, %v4246
      %s4279 = scalar_lea.vmem %s170, 16
      %4280 = vst.msk [vmem:[%s4279] sm:$0xff] %vm2209, %v4247
      %4281 = vst.msk [vmem:[%s4279 + $0x8] sm:$0xff] %vm2209, %v4248
      %4282 = vst.msk [vmem:[%s4279 + $0x20] sm:$0xff] %vm2209, %v4249
      %4283 = vst.msk [vmem:[%s4279 + $0x28] sm:$0xff] %vm2209, %v4250
      %4284 = vst.msk [vmem:[%s4279 + $0x40] sm:$0xff] %vm2209, %v4251
      %4285 = vst.msk [vmem:[%s4279 + $0x48] sm:$0xff] %vm2209, %v4252
      %4286 = vst.msk [vmem:[%s4279 + $0x60] sm:$0xff] %vm2209, %v4253
      %4287 = vst.msk [vmem:[%s4279 + $0x68] sm:$0xff] %vm2209, %v4254
      %4288 = vst.msk [vmem:[%s4279 + $0x80] sm:$0xff] %vm2209, %v4255
      %4289 = vst.msk [vmem:[%s4279 + $0x88] sm:$0xff] %vm2209, %v4256
      %4290 = vst.msk [vmem:[%s4279 + $0xa0] sm:$0xff] %vm2209, %v4257
      %4291 = vst.msk [vmem:[%s4279 + $0xa8] sm:$0xff] %vm2209, %v4258
      %4292 = vst.msk [vmem:[%s4279 + $0xc0] sm:$0xff] %vm2209, %v4259
      %4293 = vst.msk [vmem:[%s4279 + $0xc8] sm:$0xff] %vm2209, %v4260
      %4294 = vst.msk [vmem:[%s4279 + $0xe0] sm:$0xff] %vm2209, %v4261
      %4295 = vst.msk [vmem:[%s4279 + $0xe8] sm:$0xff] %vm2209, %v4262
      %4296 = vst.msk [vmem:[%s4279 + $0x100] sm:$0xff] %vm2209, %v4263
      %4297 = vst.msk [vmem:[%s4279 + $0x108] sm:$0xff] %vm2209, %v4264
      %4298 = vst.msk [vmem:[%s4279 + $0x120] sm:$0xff] %vm2209, %v4265
      %4299 = vst.msk [vmem:[%s4279 + $0x128] sm:$0xff] %vm2209, %v4266
      %4300 = vst.msk [vmem:[%s4279 + $0x140] sm:$0xff] %vm2209, %v4267
      %4301 = vst.msk [vmem:[%s4279 + $0x148] sm:$0xff] %vm2209, %v4268
      %4302 = vst.msk [vmem:[%s4279 + $0x160] sm:$0xff] %vm2209, %v4269
      %4303 = vst.msk [vmem:[%s4279 + $0x168] sm:$0xff] %vm2209, %v4270
      %4304 = vst.msk [vmem:[%s4279 + $0x180] sm:$0xff] %vm2209, %v4271
      %4305 = vst.msk [vmem:[%s4279 + $0x188] sm:$0xff] %vm2209, %v4272
      %4306 = vst.msk [vmem:[%s4279 + $0x1a0] sm:$0xff] %vm2209, %v4273
      %4307 = vst.msk [vmem:[%s4279 + $0x1a8] sm:$0xff] %vm2209, %v4274
      %4308 = vst.msk [vmem:[%s4279 + $0x1c0] sm:$0xff] %vm2209, %v4275
      %4309 = vst.msk [vmem:[%s4279 + $0x1c8] sm:$0xff] %vm2209, %v4276
      %4310 = vst.msk [vmem:[%s4279 + $0x1e0] sm:$0xff] %vm2209, %v4277
      %4311 = vst.msk [vmem:[%s4279 + $0x1e8] sm:$0xff] %vm2209, %v4278
      %p4312 = scmp.lt.s32.totalorder %s14, 1
      %s4313 = scalar_select %p4312, %s14, 1
      %s4314 = smul.addr %s4313, 64
      %s4315 = smul.addr %s4314, 8
      %s4316 = scalar_lea.vmem %s3, %s4315
      // Predicated region
      $region33: #{cup_forward_nhwc.1} parent=31 // pred_check
        %p4317 = pneg %p100
      $region34: #{cup_forward_nhwc.1} parent=31 // pred_check_branch
        %4319 = sbr.rel (%p4317) target = $region36
      $region35: #{cup_forward_nhwc.1} parent=31 // pred_region
        _
      $region36: #{cup_forward_nhwc.1} parent=31 // pred_fallthru
        _
    $region32: #{cup_forward_nhwc.1} parent=5 // pred_fallthru
      _
    %p4320 = scmp.le.s32.totalorder 2, %s9
    // Predicated region
    $region37: #{cup_forward_nhwc.1} parent=5 // pred_check
      %p4321 = pneg %p4320
    $region38: #{cup_forward_nhwc.1} parent=5 // pred_check_branch
      %4323 = sbr.rel (%p4321) target = $region40
    $region39: #{cup_forward_nhwc.1} parent=5 // pred_region
      %s4324 = ssub.s32 %s9, 2
      // Predicated region
      $region41: #{cup_forward_nhwc.1} parent=39 // pred_check
        %p4325 = pneg %p106
      $region42: #{cup_forward_nhwc.1} parent=39 // pred_check_branch
        %4327 = sbr.rel (%p4325) target = $region44
      $region43: #{cup_forward_nhwc.1} parent=39 // pred_region
        %p4328 = scmp.lt.s32.totalorder %s15, 1
        %s4329 = scalar_select %p4328, %s15, 1
        %s4330 = smul.addr %s4329, 64
        %s4331 = smul.addr %s4330, 8
        %s4332 = scalar_lea.vmem %s3, %s4331
      $region44: #{cup_forward_nhwc.1} parent=39 // pred_fallthru
        _
    $region40: #{cup_forward_nhwc.1} parent=5 // pred_fallthru
      _
  $region6: #{cup_forward_nhwc.1} parent=0 // loop_footer
    %s13 = sadd.s32 1, %s9
  $region7: #{cup_forward_nhwc.1} parent=0 // loop_footer_branch
    %8 = sbr.rel target = $region3
  $region8: #{cup_forward_nhwc.1} parent=0 // loop_exit
    _

</llo_original>
